<compile_context>
chip_gen: v7x
topology: tpu7x:2x2x1
jax: 0.10.0
libtpu: 0.0.40
codegen_flags: <defaults>
</compile_context>

<pallas_src>
import math

import jax
import jax.numpy as jnp
from jax.experimental import pallas as pl
from jax.experimental.pallas import tpu as pltpu  # noqa: F401  (kept for TPU-specific tuning hooks)

# ----------------------------- small config ---------------------------------
B = 2               # batch
MAX_LENGTH = 16     # time frames
NUM_MEL = 16        # mel bins
PATCH = 8           # patch size (torch AST uses 16)
STRIDE = 4          # fstride = tstride (torch AST uses 10)
HIDDEN = 32         # hidden_size
NUM_HEADS = 4
HEAD_DIM = HIDDEN // NUM_HEADS
NUM_LAYERS = 2
RANK = 4
ALPHA = 1
SCALING = ALPHA / RANK
LORA_DIM = round(HIDDEN / RANK)
NUM_CLASSES = 5
FINAL_OUTPUT = "CLS"          # 'CLS' or 'ALL'
FREQ_H = 14                   # FreqFit h
FREQ_BLOCK = 8                # FreqFit block
LN_EPS = 1e-12

F_OUT = (NUM_MEL - PATCH) // STRIDE + 1
T_OUT = (MAX_LENGTH - PATCH) // STRIDE + 1
NUM_PATCHES = F_OUT * T_OUT
SEQ = NUM_PATCHES + 2         # + cls + distillation tokens
KFREQ = SEQ // 2 + 1          # rfft length along sequence
KPAD = ((KFREQ + 7) // 8) * 8 # sublane-aligned padding for the stacked DFT
KK = PATCH * PATCH


# ------------------------------- fused kernel --------------------------------
def fused_forward_kernel(
    patches_ref,     # (B, SEQ, KK)   rows 0,1 are zero (cls/dist slots)
    tokpos_ref,      # (SEQ, HIDDEN)  cls/dist tokens + pos emb (+patch bias on patch rows)
    patch_w_ref,     # (KK, HIDDEN)
    wqkv_ref,        # (L, HIDDEN, 3*HIDDEN)   LoRA already folded into Wq / Wv
    bqkv_ref,        # (L, 1, 3*HIDDEN)
    wo_ref,          # (L, HIDDEN, HIDDEN)
    bo_ref,          # (L, 1, HIDDEN)
    fwd_dft_ref,     # (2*KPAD, SEQ)   stacked [rfft_real; 0; rfft_imag; 0]
    inv_dft_ref,     # (SEQ, 2*KPAD)   stacked [irfft_real | 0 | irfft_imag | 0]
    wfr_ref,         # (L, KPAD, HIDDEN)  real freq weight * ssf_scale (zero padded)
    wfi_ref,         # (L, KPAD, HIDDEN)  imag freq weight * ssf_scale (zero padded)
    ssf_shift_ref,   # (L, 1, HIDDEN)
    ln_g_ref,        # (1, HIDDEN)
    ln_b_ref,        # (1, HIDDEN)
    head_w_ref,      # (HIDDEN, NUM_CLASSES)
    head_b_ref,      # (1, NUM_CLASSES)
    out_ref,         # (B, NUM_CLASSES)
):
    f32 = jnp.float32
    inv_sqrt_d = 1.0 / math.sqrt(HEAD_DIM)

    patch_w = patch_w_ref[...]
    tokpos = tokpos_ref[...]
    fr_fi = fwd_dft_ref[...]
    ar_ai = inv_dft_ref[...]
    ln_g = ln_g_ref[...]
    ln_b = ln_b_ref[...]
    head_w = head_w_ref[...]
    head_b = head_b_ref[...]

    for b in range(B):                       # static unroll over tiny batch
        # ---- patch embedding + cls/dist tokens + positional embedding ----
        # rows 0,1 of patches are zero -> those rows become cls/dist + pos.
        hidden = jnp.dot(patches_ref[b], patch_w,
                         preferred_element_type=f32) + tokpos          # (SEQ, H)

        # ---- encoder layers: (LoRA-folded attention -> output dense) -> FreqFit ----
        for l in range(NUM_LAYERS):
            # fused QKV projection (LoRA folded into Wq / Wv in the glue)
            qkv = jnp.dot(hidden, wqkv_ref[l],
                          preferred_element_type=f32) + bqkv_ref[l]    # (SEQ, 3H)
            q = qkv[:, 0:HIDDEN]
            k = qkv[:, HIDDEN:2 * HIDDEN]
            v = qkv[:, 2 * HIDDEN:3 * HIDDEN]

            ctx_parts = []
            for h in range(NUM_HEADS):       # static unroll over heads
                lo, hi = h * HEAD_DIM, (h + 1) * HEAD_DIM
                qh = q[:, lo:hi]
                kh = k[:, lo:hi]
                vh = v[:, lo:hi]
                s = jax.lax.dot_general(qh, kh, (((1,), (1,)), ((), ())),
                                        preferred_element_type=f32) * inv_sqrt_d
                s = s - jnp.max(s, axis=-1, keepdims=True)
                p = jnp.exp(s)
                p = p * pl.reciprocal(jnp.sum(p, axis=-1, keepdims=True),
                                      approx=True)
                ctx_parts.append(jnp.dot(p, vh, preferred_element_type=f32))
            ctx = jnp.concatenate(ctx_parts, axis=-1)                  # (SEQ, H)
            # single output-projection matmul for all heads
            attn = jnp.dot(ctx, wo_ref[l],
                           preferred_element_type=f32) + bo_ref[l]     # (SEQ, H)

            # ---- FreqFit: rfft/irfft as padded real-DFT matmuls (ortho) ----
            xri = jnp.dot(fr_fi, attn, preferred_element_type=f32)     # (2*KPAD, H)
            xr = xri[0:KPAD, :]
            xi = xri[KPAD:2 * KPAD, :]
            wr = wfr_ref[l]                                            # (KPAD, H)
            wi = wfi_ref[l]
            yri = jnp.concatenate([xr * wr - xi * wi,
                                   xr * wi + xi * wr], axis=0)         # (2*KPAD, H)
            y = jnp.dot(ar_ai, yri, preferred_element_type=f32)        # (SEQ, H)
            # ssf_scale already folded into wr/wi; add shift + residual
            hidden = y + ssf_shift_ref[l] + attn

        # ---- final LayerNorm + classification head ----
        if FINAL_OUTPUT == "CLS":
            pooled_in = hidden[0:1, :]       # LN is per-token, so CLS row suffices
        else:
            pooled_in = hidden
        mu = jnp.mean(pooled_in, axis=-1, keepdims=True)
        xc = pooled_in - mu
        var = jnp.mean(xc * xc, axis=-1, keepdims=True)
        normed = xc * jax.lax.rsqrt(var + LN_EPS) * ln_g + ln_b
        if FINAL_OUTPUT == "CLS":
            pooled = normed                                            # (1, H)
        else:
            pooled = jnp.mean(normed, axis=0, keepdims=True)           # (1, H)
        out_ref[b:b + 1, :] = (jnp.dot(pooled, head_w,
                                       preferred_element_type=f32) + head_b)


# ------------------------- glue: DFT / interpolation -------------------------
def dft_matrices(a):
    """Real matrices implementing rfft (ortho) and irfft (ortho, n=a)."""
    n = jnp.arange(a, dtype=jnp.float32)
    k = jnp.arange(a // 2 + 1, dtype=jnp.float32)
    ang = 2.0 * jnp.pi * k[:, None] * n[None, :] / a
    inv = 1.0 / jnp.sqrt(jnp.float32(a))
    fr = jnp.cos(ang) * inv                 # (K, a): real part of rfft
    fi = -jnp.sin(ang) * inv                # (K, a): imag part of rfft
    mult = jnp.where(k == 0, 1.0, 2.0)
    if a % 2 == 0:
        mult = mult.at[-1].set(1.0)         # Nyquist counted once
    ar = (jnp.cos(ang) * mult[:, None]).T * inv     # (a, K)
    ai = (-jnp.sin(ang) * mult[:, None]).T * inv    # (a, K)
    return fr, fi, ar, ai


def interp_rows(w, out_size):
    """Bilinear (align_corners=False) interpolation along axis 0; axis 1 unchanged."""
    in_size = w.shape[0]
    scale = in_size / out_size
    i = jnp.arange(out_size, dtype=jnp.float32)
    src = jnp.maximum((i + 0.5) * scale - 0.5, 0.0)
    i0 = jnp.minimum(jnp.floor(src).astype(jnp.int32), in_size - 1)
    i1 = jnp.minimum(i0 + 1, in_size - 1)
    lam = jnp.clip(src - i0.astype(jnp.float32), 0.0, 1.0)
    return (1.0 - lam)[:, None] * w[i0] + lam[:, None] * w[i1]


def interp_freq_weight(complex_weight):
    cw = complex_weight[0]                   # (h, HIDDEN, 2)   (block index 0, as in torch)
    wr = interp_rows(cw[..., 0], KFREQ)      # (K, HIDDEN)
    wi = interp_rows(cw[..., 1], KFREQ)
    return wr, wi


# ------------------------------ parameters -----------------------------------
def init_params(key):
    keys = iter(jax.random.split(key, 16 + NUM_LAYERS * 32))

    def nrm(shape, std=0.02):
        return std * jax.random.normal(next(keys), shape, jnp.float32)

    p = {
        "patch_w": nrm((KK, HIDDEN)),        # conv weight reshaped (kk, H)
        "patch_b": nrm((1, HIDDEN)),
        "cls_token": nrm((1, 1, HIDDEN)),
        "dist_token": nrm((1, 1, HIDDEN)),
        "pos_emb": nrm((1, SEQ, HIDDEN)),
        "ln_g": jnp.ones((1, HIDDEN), jnp.float32),
        "ln_b": jnp.zeros((1, HIDDEN), jnp.float32),
        "head_w": nrm((HIDDEN, NUM_CLASSES)),
        "head_b": nrm((1, NUM_CLASSES)),
        "layers": [],
    }
    for _ in range(NUM_LAYERS):
        lp = {
            "wq": nrm((HIDDEN, HIDDEN)), "bq": nrm((1, HIDDEN)),
            "wk": nrm((HIDDEN, HIDDEN)), "bk": nrm((1, HIDDEN)),
            "wv": nrm((HIDDEN, HIDDEN)), "bv": nrm((1, HIDDEN)),
            "wo": nrm((HIDDEN, HIDDEN)), "bo": nrm((1, HIDDEN)),
            # torch zero-inits lora_down; random here so the LoRA path is exercised
            "wdq": nrm((HIDDEN, LORA_DIM)), "wuq": nrm((LORA_DIM, HIDDEN)),
            "wdv": nrm((HIDDEN, LORA_DIM)), "wuv": nrm((LORA_DIM, HIDDEN)),
            "complex_weight": nrm((FREQ_BLOCK, FREQ_H, HIDDEN, 2)),
            "ssf_scale": 1.0 + nrm((FREQ_BLOCK, HIDDEN)),
            "ssf_shift": nrm((FREQ_BLOCK, HIDDEN)),
        }
        p["layers"].append(lp)
    return p


def prepare_inference_params(params):
    """One-time precompute: DFT matrices, interpolated freq weights, folded LoRA,
    fused QKV weights, token+positional table. All become plain kernel inputs."""
    fr, fi, ar, ai = dft_matrices(SEQ)
    fwd_dft = jnp.zeros((2 * KPAD, SEQ), jnp.float32)
    fwd_dft = fwd_dft.at[0:KFREQ, :].set(fr).at[KPAD:KPAD + KFREQ, :].set(fi)
    inv_dft = jnp.zeros((SEQ, 2 * KPAD), jnp.float32)
    inv_dft = inv_dft.at[:, 0:KFREQ].set(ar).at[:, KPAD:KPAD + KFREQ].set(ai)

    # cls/dist tokens + positional embedding; patch bias folded into the patch rows
    tokpos = jnp.concatenate(
        [params["cls_token"][0], params["dist_token"][0],
         jnp.broadcast_to(params["patch_b"], (NUM_PATCHES, HIDDEN))],
        axis=0) + params["pos_emb"][0]                                 # (SEQ, H)

    wqkv, bqkv, wo, bo, wfr, wfi, ssf_sh = [], [], [], [], [], [], []
    for lp in params["layers"]:
        # fold LoRA into the base projections (forward-equivalent)
        wq_eff = lp["wq"] + SCALING * (lp["wdq"] @ lp["wuq"])
        wv_eff = lp["wv"] + SCALING * (lp["wdv"] @ lp["wuv"])
        wqkv.append(jnp.concatenate([wq_eff, lp["wk"], wv_eff], axis=1))   # (H, 3H)
        bqkv.append(jnp.concatenate([lp["bq"], lp["bk"], lp["bv"]], axis=1))
        wo.append(lp["wo"])
        bo.append(lp["bo"])
        wr, wi = interp_freq_weight(lp["complex_weight"])                  # (K, H)
        sc = lp["ssf_scale"][0][None, :]                                   # block 0
        wr_pad = jnp.zeros((KPAD, HIDDEN), jnp.float32).at[0:KFREQ].set(wr * sc)
        wi_pad = jnp.zeros((KPAD, HIDDEN), jnp.float32).at[0:KFREQ].set(wi * sc)
        wfr.append(wr_pad)
        wfi.append(wi_pad)
        ssf_sh.append(lp["ssf_shift"][0][None, :])                         # block 0

    return {
        "tokpos": tokpos,
        "patch_w": params["patch_w"],
        "wqkv": jnp.stack(wqkv), "bqkv": jnp.stack(bqkv),
        "wo": jnp.stack(wo), "bo": jnp.stack(bo),
        "fwd_dft": fwd_dft, "inv_dft": inv_dft,
        "wfr": jnp.stack(wfr), "wfi": jnp.stack(wfi),
        "ssf_shift": jnp.stack(ssf_sh),
        "ln_g": params["ln_g"], "ln_b": params["ln_b"],
        "head_w": params["head_w"], "head_b": params["head_b"],
    }


# ------------------------------- forward -------------------------------------
def ast_lora_freq_forward(x, prep):
    # im2col in one XLA op (frequency-major patch order, matching flatten(2))
    x_img = jnp.transpose(x, (0, 2, 1))[:, None, :, :].astype(jnp.float32)  # (B,1,mel,time)
    patches = jax.lax.conv_general_dilated_patches(
        x_img, filter_shape=(PATCH, PATCH), window_strides=(STRIDE, STRIDE),
        padding="VALID")                                  # (B, KK, F_OUT, T_OUT)
    patches = jnp.transpose(patches, (0, 2, 3, 1)).reshape(B, NUM_PATCHES, KK)
    # pad two zero rows in front so the patch matmul directly produces SEQ rows
    patches_pad = jnp.concatenate(
        [jnp.zeros((B, 2, KK), jnp.float32), patches], axis=1)             # (B, SEQ, KK)

    return pl.pallas_call(
        fused_forward_kernel,
        out_shape=jax.ShapeDtypeStruct((B, NUM_CLASSES), jnp.float32),
    )(patches_pad, prep["tokpos"], prep["patch_w"],
      prep["wqkv"], prep["bqkv"], prep["wo"], prep["bo"],
      prep["fwd_dft"], prep["inv_dft"], prep["wfr"], prep["wfi"],
      prep["ssf_shift"], prep["ln_g"], prep["ln_b"],
      prep["head_w"], prep["head_b"])


# --------------------------------- main ---------------------------------------
if __name__ == "__main__":
    key = jax.random.PRNGKey(0)
    k_param, k_x = jax.random.split(key)
    params = init_params(k_param)
    prep = prepare_inference_params(params)      # one-time, outside jit
    x = jax.random.normal(k_x, (B, MAX_LENGTH, NUM_MEL), jnp.float32)

    fwd = jax.jit(ast_lora_freq_forward)
    logits = fwd(x, prep)
    jax.block_until_ready(logits)
    assert logits.shape == (B, NUM_CLASSES)
    assert bool(jnp.all(jnp.isfinite(logits)))
    print("KERNEL_OK")
</pallas_src>

<mosaic_0001>
module attributes {stable_mosaic.version = 11 : i64} {
  func.func @fused_forward_kernel(%arg0: memref<2x11x64xf32, #tpu.memory_space<vmem>>, %arg1: memref<11x32xf32, #tpu.memory_space<vmem>>, %arg2: memref<64x32xf32, #tpu.memory_space<vmem>>, %arg3: memref<2x32x96xf32, #tpu.memory_space<vmem>>, %arg4: memref<2x1x96xf32, #tpu.memory_space<vmem>>, %arg5: memref<2x32x32xf32, #tpu.memory_space<vmem>>, %arg6: memref<2x1x32xf32, #tpu.memory_space<vmem>>, %arg7: memref<16x11xf32, #tpu.memory_space<vmem>>, %arg8: memref<11x16xf32, #tpu.memory_space<vmem>>, %arg9: memref<2x8x32xf32, #tpu.memory_space<vmem>>, %arg10: memref<2x8x32xf32, #tpu.memory_space<vmem>>, %arg11: memref<2x1x32xf32, #tpu.memory_space<vmem>>, %arg12: memref<1x32xf32, #tpu.memory_space<vmem>>, %arg13: memref<1x32xf32, #tpu.memory_space<vmem>>, %arg14: memref<32x5xf32, #tpu.memory_space<vmem>>, %arg15: memref<1x5xf32, #tpu.memory_space<vmem>>, %arg16: memref<2x5xf32, #tpu.memory_space<vmem>>) attributes {dimension_semantics = [], scalar_prefetch = 0 : i64, scratch_operands = 0 : i64, tpu.core_type = #tpu.core_type<tc>} {
    %c0 = arith.constant 0 : index
    %c0_0 = arith.constant 0 : index
    %0 = vector.load %arg2[%c0, %c0_0] : memref<64x32xf32, #tpu.memory_space<vmem>>, vector<64x32xf32>
    %c0_1 = arith.constant 0 : index
    %c0_2 = arith.constant 0 : index
    %1 = vector.load %arg1[%c0_1, %c0_2] : memref<11x32xf32, #tpu.memory_space<vmem>>, vector<11x32xf32>
    %c0_3 = arith.constant 0 : index
    %c0_4 = arith.constant 0 : index
    %2 = vector.load %arg7[%c0_3, %c0_4] : memref<16x11xf32, #tpu.memory_space<vmem>>, vector<16x11xf32>
    %c0_5 = arith.constant 0 : index
    %c0_6 = arith.constant 0 : index
    %3 = vector.load %arg8[%c0_5, %c0_6] : memref<11x16xf32, #tpu.memory_space<vmem>>, vector<11x16xf32>
    %c0_7 = arith.constant 0 : index
    %c0_8 = arith.constant 0 : index
    %4 = vector.load %arg12[%c0_7, %c0_8] : memref<1x32xf32, #tpu.memory_space<vmem>>, vector<1x32xf32>
    %c0_9 = arith.constant 0 : index
    %c0_10 = arith.constant 0 : index
    %5 = vector.load %arg13[%c0_9, %c0_10] : memref<1x32xf32, #tpu.memory_space<vmem>>, vector<1x32xf32>
    %c0_11 = arith.constant 0 : index
    %c0_12 = arith.constant 0 : index
    %6 = vector.load %arg14[%c0_11, %c0_12] : memref<32x5xf32, #tpu.memory_space<vmem>>, vector<32x5xf32>
    %c0_13 = arith.constant 0 : index
    %c0_14 = arith.constant 0 : index
    %7 = vector.load %arg15[%c0_13, %c0_14] : memref<1x5xf32, #tpu.memory_space<vmem>>, vector<1x5xf32>
    %c0_15 = arith.constant 0 : index
    %c0_16 = arith.constant 0 : index
    %c0_17 = arith.constant 0 : index
    %8 = vector.load %arg0[%c0_15, %c0_16, %c0_17] : memref<2x11x64xf32, #tpu.memory_space<vmem>>, vector<1x11x64xf32>
    %9 = vector.shape_cast %8 : vector<1x11x64xf32> to vector<11x64xf32>
    %cst = arith.constant dense<0.000000e+00> : vector<11x32xf32>
    %10 = tpu.matmul %9, %0, %cst {dimension_numbers = #tpu.dot_dimension_numbers<[1], [0], [0], [1], [0, 0, 1, 1], [], []>} : vector<11x64xf32>, vector<64x32xf32>, vector<11x32xf32> -> vector<11x32xf32>
    %11 = arith.addf %10, %1 : vector<11x32xf32>
    %c0_18 = arith.constant 0 : index
    %c0_19 = arith.constant 0 : index
    %c0_20 = arith.constant 0 : index
    %12 = vector.load %arg3[%c0_18, %c0_19, %c0_20] : memref<2x32x96xf32, #tpu.memory_space<vmem>>, vector<1x32x96xf32>
    %13 = vector.shape_cast %12 : vector<1x32x96xf32> to vector<32x96xf32>
    %cst_21 = arith.constant dense<0.000000e+00> : vector<11x96xf32>
    %14 = tpu.matmul %11, %13, %cst_21 {dimension_numbers = #tpu.dot_dimension_numbers<[1], [0], [0], [1], [0, 0, 1, 1], [], []>} : vector<11x32xf32>, vector<32x96xf32>, vector<11x96xf32> -> vector<11x96xf32>
    %c0_22 = arith.constant 0 : index
    %c0_23 = arith.constant 0 : index
    %c0_24 = arith.constant 0 : index
    %15 = vector.load %arg4[%c0_22, %c0_23, %c0_24] : memref<2x1x96xf32, #tpu.memory_space<vmem>>, vector<1x1x96xf32>
    %16 = vector.shape_cast %15 : vector<1x1x96xf32> to vector<1x96xf32>
    %17 = vector.broadcast %16 : vector<1x96xf32> to vector<11x96xf32>
    %18 = arith.addf %14, %17 : vector<11x96xf32>
    %19 = vector.extract_strided_slice %18 {offsets = [0, 0], sizes = [11, 32], strides = [1, 1]} : vector<11x96xf32> to vector<11x32xf32>
    %20 = vector.extract_strided_slice %18 {offsets = [0, 32], sizes = [11, 32], strides = [1, 1]} : vector<11x96xf32> to vector<11x32xf32>
    %21 = vector.extract_strided_slice %18 {offsets = [0, 64], sizes = [11, 32], strides = [1, 1]} : vector<11x96xf32> to vector<11x32xf32>
    %22 = vector.extract_strided_slice %19 {offsets = [0, 0], sizes = [11, 8], strides = [1, 1]} : vector<11x32xf32> to vector<11x8xf32>
    %23 = vector.extract_strided_slice %20 {offsets = [0, 0], sizes = [11, 8], strides = [1, 1]} : vector<11x32xf32> to vector<11x8xf32>
    %24 = vector.extract_strided_slice %21 {offsets = [0, 0], sizes = [11, 8], strides = [1, 1]} : vector<11x32xf32> to vector<11x8xf32>
    %cst_25 = arith.constant dense<0.000000e+00> : vector<11x11xf32>
    %25 = tpu.matmul %22, %23, %cst_25 {dimension_numbers = #tpu.dot_dimension_numbers<[1], [1], [0], [0], [0, 0, 1, 0], [], []>} : vector<11x8xf32>, vector<11x8xf32>, vector<11x11xf32> -> vector<11x11xf32>
    %cst_26 = arith.constant 0.353553385 : f32
    %26 = vector.broadcast %cst_26 : f32 to vector<11x11xf32>
    %27 = arith.mulf %25, %26 : vector<11x11xf32>
    %cst_27 = arith.constant dense<0xFF800000> : vector<11xf32>
    %28 = vector.multi_reduction <maximumf>, %27, %cst_27 [1] : vector<11x11xf32> to vector<11xf32>
    %29 = vector.shape_cast %28 : vector<11xf32> to vector<11x1xf32>
    %30 = vector.broadcast %29 : vector<11x1xf32> to vector<11x11xf32>
    %31 = arith.subf %27, %30 : vector<11x11xf32>
    %32 = math.exp %31 : vector<11x11xf32>
    %cst_28 = arith.constant dense<0.000000e+00> : vector<11xf32>
    %33 = vector.multi_reduction <add>, %32, %cst_28 [1] : vector<11x11xf32> to vector<11xf32>
    %34 = vector.shape_cast %33 : vector<11xf32> to vector<11x1xf32>
    %35 = tpu.reciprocal %34 {approx = true} : vector<11x1xf32> -> vector<11x1xf32>
    %36 = vector.broadcast %35 : vector<11x1xf32> to vector<11x11xf32>
    %37 = arith.mulf %32, %36 : vector<11x11xf32>
    %cst_29 = arith.constant dense<0.000000e+00> : vector<11x8xf32>
    %38 = tpu.matmul %37, %24, %cst_29 {dimension_numbers = #tpu.dot_dimension_numbers<[1], [0], [0], [1], [0, 0, 1, 1], [], []>} : vector<11x11xf32>, vector<11x8xf32>, vector<11x8xf32> -> vector<11x8xf32>
    %39 = vector.extract_strided_slice %19 {offsets = [0, 8], sizes = [11, 8], strides = [1, 1]} : vector<11x32xf32> to vector<11x8xf32>
    %40 = vector.extract_strided_slice %20 {offsets = [0, 8], sizes = [11, 8], strides = [1, 1]} : vector<11x32xf32> to vector<11x8xf32>
    %41 = vector.extract_strided_slice %21 {offsets = [0, 8], sizes = [11, 8], strides = [1, 1]} : vector<11x32xf32> to vector<11x8xf32>
    %cst_30 = arith.constant dense<0.000000e+00> : vector<11x11xf32>
    %42 = tpu.matmul %39, %40, %cst_30 {dimension_numbers = #tpu.dot_dimension_numbers<[1], [1], [0], [0], [0, 0, 1, 0], [], []>} : vector<11x8xf32>, vector<11x8xf32>, vector<11x11xf32> -> vector<11x11xf32>
    %cst_31 = arith.constant 0.353553385 : f32
    %43 = vector.broadcast %cst_31 : f32 to vector<11x11xf32>
    %44 = arith.mulf %42, %43 : vector<11x11xf32>
    %cst_32 = arith.constant dense<0xFF800000> : vector<11xf32>
    %45 = vector.multi_reduction <maximumf>, %44, %cst_32 [1] : vector<11x11xf32> to vector<11xf32>
    %46 = vector.shape_cast %45 : vector<11xf32> to vector<11x1xf32>
    %47 = vector.broadcast %46 : vector<11x1xf32> to vector<11x11xf32>
    %48 = arith.subf %44, %47 : vector<11x11xf32>
    %49 = math.exp %48 : vector<11x11xf32>
    %cst_33 = arith.constant dense<0.000000e+00> : vector<11xf32>
    %50 = vector.multi_reduction <add>, %49, %cst_33 [1] : vector<11x11xf32> to vector<11xf32>
    %51 = vector.shape_cast %50 : vector<11xf32> to vector<11x1xf32>
    %52 = tpu.reciprocal %51 {approx = true} : vector<11x1xf32> -> vector<11x1xf32>
    %53 = vector.broadcast %52 : vector<11x1xf32> to vector<11x11xf32>
    %54 = arith.mulf %49, %53 : vector<11x11xf32>
    %cst_34 = arith.constant dense<0.000000e+00> : vector<11x8xf32>
    %55 = tpu.matmul %54, %41, %cst_34 {dimension_numbers = #tpu.dot_dimension_numbers<[1], [0], [0], [1], [0, 0, 1, 1], [], []>} : vector<11x11xf32>, vector<11x8xf32>, vector<11x8xf32> -> vector<11x8xf32>
    %56 = vector.extract_strided_slice %19 {offsets = [0, 16], sizes = [11, 8], strides = [1, 1]} : vector<11x32xf32> to vector<11x8xf32>
    %57 = vector.extract_strided_slice %20 {offsets = [0, 16], sizes = [11, 8], strides = [1, 1]} : vector<11x32xf32> to vector<11x8xf32>
    %58 = vector.extract_strided_slice %21 {offsets = [0, 16], sizes = [11, 8], strides = [1, 1]} : vector<11x32xf32> to vector<11x8xf32>
    %cst_35 = arith.constant dense<0.000000e+00> : vector<11x11xf32>
    %59 = tpu.matmul %56, %57, %cst_35 {dimension_numbers = #tpu.dot_dimension_numbers<[1], [1], [0], [0], [0, 0, 1, 0], [], []>} : vector<11x8xf32>, vector<11x8xf32>, vector<11x11xf32> -> vector<11x11xf32>
    %cst_36 = arith.constant 0.353553385 : f32
    %60 = vector.broadcast %cst_36 : f32 to vector<11x11xf32>
    %61 = arith.mulf %59, %60 : vector<11x11xf32>
    %cst_37 = arith.constant dense<0xFF800000> : vector<11xf32>
    %62 = vector.multi_reduction <maximumf>, %61, %cst_37 [1] : vector<11x11xf32> to vector<11xf32>
    %63 = vector.shape_cast %62 : vector<11xf32> to vector<11x1xf32>
    %64 = vector.broadcast %63 : vector<11x1xf32> to vector<11x11xf32>
    %65 = arith.subf %61, %64 : vector<11x11xf32>
    %66 = math.exp %65 : vector<11x11xf32>
    %cst_38 = arith.constant dense<0.000000e+00> : vector<11xf32>
    %67 = vector.multi_reduction <add>, %66, %cst_38 [1] : vector<11x11xf32> to vector<11xf32>
    %68 = vector.shape_cast %67 : vector<11xf32> to vector<11x1xf32>
    %69 = tpu.reciprocal %68 {approx = true} : vector<11x1xf32> -> vector<11x1xf32>
    %70 = vector.broadcast %69 : vector<11x1xf32> to vector<11x11xf32>
    %71 = arith.mulf %66, %70 : vector<11x11xf32>
    %cst_39 = arith.constant dense<0.000000e+00> : vector<11x8xf32>
    %72 = tpu.matmul %71, %58, %cst_39 {dimension_numbers = #tpu.dot_dimension_numbers<[1], [0], [0], [1], [0, 0, 1, 1], [], []>} : vector<11x11xf32>, vector<11x8xf32>, vector<11x8xf32> -> vector<11x8xf32>
    %73 = vector.extract_strided_slice %19 {offsets = [0, 24], sizes = [11, 8], strides = [1, 1]} : vector<11x32xf32> to vector<11x8xf32>
    %74 = vector.extract_strided_slice %20 {offsets = [0, 24], sizes = [11, 8], strides = [1, 1]} : vector<11x32xf32> to vector<11x8xf32>
    %75 = vector.extract_strided_slice %21 {offsets = [0, 24], sizes = [11, 8], strides = [1, 1]} : vector<11x32xf32> to vector<11x8xf32>
    %cst_40 = arith.constant dense<0.000000e+00> : vector<11x11xf32>
    %76 = tpu.matmul %73, %74, %cst_40 {dimension_numbers = #tpu.dot_dimension_numbers<[1], [1], [0], [0], [0, 0, 1, 0], [], []>} : vector<11x8xf32>, vector<11x8xf32>, vector<11x11xf32> -> vector<11x11xf32>
    %cst_41 = arith.constant 0.353553385 : f32
    %77 = vector.broadcast %cst_41 : f32 to vector<11x11xf32>
    %78 = arith.mulf %76, %77 : vector<11x11xf32>
    %cst_42 = arith.constant dense<0xFF800000> : vector<11xf32>
    %79 = vector.multi_reduction <maximumf>, %78, %cst_42 [1] : vector<11x11xf32> to vector<11xf32>
    %80 = vector.shape_cast %79 : vector<11xf32> to vector<11x1xf32>
    %81 = vector.broadcast %80 : vector<11x1xf32> to vector<11x11xf32>
    %82 = arith.subf %78, %81 : vector<11x11xf32>
    %83 = math.exp %82 : vector<11x11xf32>
    %cst_43 = arith.constant dense<0.000000e+00> : vector<11xf32>
    %84 = vector.multi_reduction <add>, %83, %cst_43 [1] : vector<11x11xf32> to vector<11xf32>
    %85 = vector.shape_cast %84 : vector<11xf32> to vector<11x1xf32>
    %86 = tpu.reciprocal %85 {approx = true} : vector<11x1xf32> -> vector<11x1xf32>
    %87 = vector.broadcast %86 : vector<11x1xf32> to vector<11x11xf32>
    %88 = arith.mulf %83, %87 : vector<11x11xf32>
    %cst_44 = arith.constant dense<0.000000e+00> : vector<11x8xf32>
    %89 = tpu.matmul %88, %75, %cst_44 {dimension_numbers = #tpu.dot_dimension_numbers<[1], [0], [0], [1], [0, 0, 1, 1], [], []>} : vector<11x11xf32>, vector<11x8xf32>, vector<11x8xf32> -> vector<11x8xf32>
    %90 = tpu.concatenate %38, %55, %72, %89 in 1 : vector<11x8xf32>, vector<11x8xf32>, vector<11x8xf32>, vector<11x8xf32> -> vector<11x32xf32>
    %c0_45 = arith.constant 0 : index
    %c0_46 = arith.constant 0 : index
    %c0_47 = arith.constant 0 : index
    %91 = vector.load %arg5[%c0_45, %c0_46, %c0_47] : memref<2x32x32xf32, #tpu.memory_space<vmem>>, vector<1x32x32xf32>
    %92 = vector.shape_cast %91 : vector<1x32x32xf32> to vector<32x32xf32>
    %cst_48 = arith.constant dense<0.000000e+00> : vector<11x32xf32>
    %93 = tpu.matmul %90, %92, %cst_48 {dimension_numbers = #tpu.dot_dimension_numbers<[1], [0], [0], [1], [0, 0, 1, 1], [], []>} : vector<11x32xf32>, vector<32x32xf32>, vector<11x32xf32> -> vector<11x32xf32>
    %c0_49 = arith.constant 0 : index
    %c0_50 = arith.constant 0 : index
    %c0_51 = arith.constant 0 : index
    %94 = vector.load %arg6[%c0_49, %c0_50, %c0_51] : memref<2x1x32xf32, #tpu.memory_space<vmem>>, vector<1x1x32xf32>
    %95 = vector.shape_cast %94 : vector<1x1x32xf32> to vector<1x32xf32>
    %96 = vector.broadcast %95 : vector<1x32xf32> to vector<11x32xf32>
    %97 = arith.addf %93, %96 : vector<11x32xf32>
    %cst_52 = arith.constant dense<0.000000e+00> : vector<16x32xf32>
    %98 = tpu.matmul %2, %97, %cst_52 {dimension_numbers = #tpu.dot_dimension_numbers<[1], [0], [0], [1], [0, 0, 1, 1], [], []>} : vector<16x11xf32>, vector<11x32xf32>, vector<16x32xf32> -> vector<16x32xf32>
    %99 = vector.extract_strided_slice %98 {offsets = [0, 0], sizes = [8, 32], strides = [1, 1]} : vector<16x32xf32> to vector<8x32xf32>
    %100 = vector.extract_strided_slice %98 {offsets = [8, 0], sizes = [8, 32], strides = [1, 1]} : vector<16x32xf32> to vector<8x32xf32>
    %c0_53 = arith.constant 0 : index
    %c0_54 = arith.constant 0 : index
    %c0_55 = arith.constant 0 : index
    %101 = vector.load %arg9[%c0_53, %c0_54, %c0_55] : memref<2x8x32xf32, #tpu.memory_space<vmem>>, vector<1x8x32xf32>
    %102 = vector.shape_cast %101 : vector<1x8x32xf32> to vector<8x32xf32>
    %c0_56 = arith.constant 0 : index
    %c0_57 = arith.constant 0 : index
    %c0_58 = arith.constant 0 : index
    %103 = vector.load %arg10[%c0_56, %c0_57, %c0_58] : memref<2x8x32xf32, #tpu.memory_space<vmem>>, vector<1x8x32xf32>
    %104 = vector.shape_cast %103 : vector<1x8x32xf32> to vector<8x32xf32>
    %105 = arith.mulf %99, %102 : vector<8x32xf32>
    %106 = arith.mulf %100, %104 : vector<8x32xf32>
    %107 = arith.subf %105, %106 : vector<8x32xf32>
    %108 = arith.mulf %99, %104 : vector<8x32xf32>
    %109 = arith.mulf %100, %102 : vector<8x32xf32>
    %110 = arith.addf %108, %109 : vector<8x32xf32>
    %111 = tpu.concatenate %107, %110 in 0 : vector<8x32xf32>, vector<8x32xf32> -> vector<16x32xf32>
    %cst_59 = arith.constant dense<0.000000e+00> : vector<11x32xf32>
    %112 = tpu.matmul %3, %111, %cst_59 {dimension_numbers = #tpu.dot_dimension_numbers<[1], [0], [0], [1], [0, 0, 1, 1], [], []>} : vector<11x16xf32>, vector<16x32xf32>, vector<11x32xf32> -> vector<11x32xf32>
    %c0_60 = arith.constant 0 : index
    %c0_61 = arith.constant 0 : index
    %c0_62 = arith.constant 0 : index
    %113 = vector.load %arg11[%c0_60, %c0_61, %c0_62] : memref<2x1x32xf32, #tpu.memory_space<vmem>>, vector<1x1x32xf32>
    %114 = vector.shape_cast %113 : vector<1x1x32xf32> to vector<1x32xf32>
    %115 = vector.broadcast %114 : vector<1x32xf32> to vector<11x32xf32>
    %116 = arith.addf %112, %115 : vector<11x32xf32>
    %117 = arith.addf %116, %97 : vector<11x32xf32>
    %c1 = arith.constant 1 : index
    %c0_63 = arith.constant 0 : index
    %c0_64 = arith.constant 0 : index
    %118 = vector.load %arg3[%c1, %c0_63, %c0_64] : memref<2x32x96xf32, #tpu.memory_space<vmem>>, vector<1x32x96xf32>
    %119 = vector.shape_cast %118 : vector<1x32x96xf32> to vector<32x96xf32>
    %cst_65 = arith.constant dense<0.000000e+00> : vector<11x96xf32>
    %120 = tpu.matmul %117, %119, %cst_65 {dimension_numbers = #tpu.dot_dimension_numbers<[1], [0], [0], [1], [0, 0, 1, 1], [], []>} : vector<11x32xf32>, vector<32x96xf32>, vector<11x96xf32> -> vector<11x96xf32>
    %c1_66 = arith.constant 1 : index
    %c0_67 = arith.constant 0 : index
    %c0_68 = arith.constant 0 : index
    %121 = vector.load %arg4[%c1_66, %c0_67, %c0_68] : memref<2x1x96xf32, #tpu.memory_space<vmem>>, vector<1x1x96xf32>
    %122 = vector.shape_cast %121 : vector<1x1x96xf32> to vector<1x96xf32>
    %123 = vector.broadcast %122 : vector<1x96xf32> to vector<11x96xf32>
    %124 = arith.addf %120, %123 : vector<11x96xf32>
    %125 = vector.extract_strided_slice %124 {offsets = [0, 0], sizes = [11, 32], strides = [1, 1]} : vector<11x96xf32> to vector<11x32xf32>
    %126 = vector.extract_strided_slice %124 {offsets = [0, 32], sizes = [11, 32], strides = [1, 1]} : vector<11x96xf32> to vector<11x32xf32>
    %127 = vector.extract_strided_slice %124 {offsets = [0, 64], sizes = [11, 32], strides = [1, 1]} : vector<11x96xf32> to vector<11x32xf32>
    %128 = vector.extract_strided_slice %125 {offsets = [0, 0], sizes = [11, 8], strides = [1, 1]} : vector<11x32xf32> to vector<11x8xf32>
    %129 = vector.extract_strided_slice %126 {offsets = [0, 0], sizes = [11, 8], strides = [1, 1]} : vector<11x32xf32> to vector<11x8xf32>
    %130 = vector.extract_strided_slice %127 {offsets = [0, 0], sizes = [11, 8], strides = [1, 1]} : vector<11x32xf32> to vector<11x8xf32>
    %cst_69 = arith.constant dense<0.000000e+00> : vector<11x11xf32>
    %131 = tpu.matmul %128, %129, %cst_69 {dimension_numbers = #tpu.dot_dimension_numbers<[1], [1], [0], [0], [0, 0, 1, 0], [], []>} : vector<11x8xf32>, vector<11x8xf32>, vector<11x11xf32> -> vector<11x11xf32>
    %cst_70 = arith.constant 0.353553385 : f32
    %132 = vector.broadcast %cst_70 : f32 to vector<11x11xf32>
    %133 = arith.mulf %131, %132 : vector<11x11xf32>
    %cst_71 = arith.constant dense<0xFF800000> : vector<11xf32>
    %134 = vector.multi_reduction <maximumf>, %133, %cst_71 [1] : vector<11x11xf32> to vector<11xf32>
    %135 = vector.shape_cast %134 : vector<11xf32> to vector<11x1xf32>
    %136 = vector.broadcast %135 : vector<11x1xf32> to vector<11x11xf32>
    %137 = arith.subf %133, %136 : vector<11x11xf32>
    %138 = math.exp %137 : vector<11x11xf32>
    %cst_72 = arith.constant dense<0.000000e+00> : vector<11xf32>
    %139 = vector.multi_reduction <add>, %138, %cst_72 [1] : vector<11x11xf32> to vector<11xf32>
    %140 = vector.shape_cast %139 : vector<11xf32> to vector<11x1xf32>
    %141 = tpu.reciprocal %140 {approx = true} : vector<11x1xf32> -> vector<11x1xf32>
    %142 = vector.broadcast %141 : vector<11x1xf32> to vector<11x11xf32>
    %143 = arith.mulf %138, %142 : vector<11x11xf32>
    %cst_73 = arith.constant dense<0.000000e+00> : vector<11x8xf32>
    %144 = tpu.matmul %143, %130, %cst_73 {dimension_numbers = #tpu.dot_dimension_numbers<[1], [0], [0], [1], [0, 0, 1, 1], [], []>} : vector<11x11xf32>, vector<11x8xf32>, vector<11x8xf32> -> vector<11x8xf32>
    %145 = vector.extract_strided_slice %125 {offsets = [0, 8], sizes = [11, 8], strides = [1, 1]} : vector<11x32xf32> to vector<11x8xf32>
    %146 = vector.extract_strided_slice %126 {offsets = [0, 8], sizes = [11, 8], strides = [1, 1]} : vector<11x32xf32> to vector<11x8xf32>
    %147 = vector.extract_strided_slice %127 {offsets = [0, 8], sizes = [11, 8], strides = [1, 1]} : vector<11x32xf32> to vector<11x8xf32>
    %cst_74 = arith.constant dense<0.000000e+00> : vector<11x11xf32>
    %148 = tpu.matmul %145, %146, %cst_74 {dimension_numbers = #tpu.dot_dimension_numbers<[1], [1], [0], [0], [0, 0, 1, 0], [], []>} : vector<11x8xf32>, vector<11x8xf32>, vector<11x11xf32> -> vector<11x11xf32>
    %cst_75 = arith.constant 0.353553385 : f32
    %149 = vector.broadcast %cst_75 : f32 to vector<11x11xf32>
    %150 = arith.mulf %148, %149 : vector<11x11xf32>
    %cst_76 = arith.constant dense<0xFF800000> : vector<11xf32>
    %151 = vector.multi_reduction <maximumf>, %150, %cst_76 [1] : vector<11x11xf32> to vector<11xf32>
    %152 = vector.shape_cast %151 : vector<11xf32> to vector<11x1xf32>
    %153 = vector.broadcast %152 : vector<11x1xf32> to vector<11x11xf32>
    %154 = arith.subf %150, %153 : vector<11x11xf32>
    %155 = math.exp %154 : vector<11x11xf32>
    %cst_77 = arith.constant dense<0.000000e+00> : vector<11xf32>
    %156 = vector.multi_reduction <add>, %155, %cst_77 [1] : vector<11x11xf32> to vector<11xf32>
    %157 = vector.shape_cast %156 : vector<11xf32> to vector<11x1xf32>
    %158 = tpu.reciprocal %157 {approx = true} : vector<11x1xf32> -> vector<11x1xf32>
    %159 = vector.broadcast %158 : vector<11x1xf32> to vector<11x11xf32>
    %160 = arith.mulf %155, %159 : vector<11x11xf32>
    %cst_78 = arith.constant dense<0.000000e+00> : vector<11x8xf32>
    %161 = tpu.matmul %160, %147, %cst_78 {dimension_numbers = #tpu.dot_dimension_numbers<[1], [0], [0], [1], [0, 0, 1, 1], [], []>} : vector<11x11xf32>, vector<11x8xf32>, vector<11x8xf32> -> vector<11x8xf32>
    %162 = vector.extract_strided_slice %125 {offsets = [0, 16], sizes = [11, 8], strides = [1, 1]} : vector<11x32xf32> to vector<11x8xf32>
    %163 = vector.extract_strided_slice %126 {offsets = [0, 16], sizes = [11, 8], strides = [1, 1]} : vector<11x32xf32> to vector<11x8xf32>
    %164 = vector.extract_strided_slice %127 {offsets = [0, 16], sizes = [11, 8], strides = [1, 1]} : vector<11x32xf32> to vector<11x8xf32>
    %cst_79 = arith.constant dense<0.000000e+00> : vector<11x11xf32>
    %165 = tpu.matmul %162, %163, %cst_79 {dimension_numbers = #tpu.dot_dimension_numbers<[1], [1], [0], [0], [0, 0, 1, 0], [], []>} : vector<11x8xf32>, vector<11x8xf32>, vector<11x11xf32> -> vector<11x11xf32>
    %cst_80 = arith.constant 0.353553385 : f32
    %166 = vector.broadcast %cst_80 : f32 to vector<11x11xf32>
    %167 = arith.mulf %165, %166 : vector<11x11xf32>
    %cst_81 = arith.constant dense<0xFF800000> : vector<11xf32>
    %168 = vector.multi_reduction <maximumf>, %167, %cst_81 [1] : vector<11x11xf32> to vector<11xf32>
    %169 = vector.shape_cast %168 : vector<11xf32> to vector<11x1xf32>
    %170 = vector.broadcast %169 : vector<11x1xf32> to vector<11x11xf32>
    %171 = arith.subf %167, %170 : vector<11x11xf32>
    %172 = math.exp %171 : vector<11x11xf32>
    %cst_82 = arith.constant dense<0.000000e+00> : vector<11xf32>
    %173 = vector.multi_reduction <add>, %172, %cst_82 [1] : vector<11x11xf32> to vector<11xf32>
    %174 = vector.shape_cast %173 : vector<11xf32> to vector<11x1xf32>
    %175 = tpu.reciprocal %174 {approx = true} : vector<11x1xf32> -> vector<11x1xf32>
    %176 = vector.broadcast %175 : vector<11x1xf32> to vector<11x11xf32>
    %177 = arith.mulf %172, %176 : vector<11x11xf32>
    %cst_83 = arith.constant dense<0.000000e+00> : vector<11x8xf32>
    %178 = tpu.matmul %177, %164, %cst_83 {dimension_numbers = #tpu.dot_dimension_numbers<[1], [0], [0], [1], [0, 0, 1, 1], [], []>} : vector<11x11xf32>, vector<11x8xf32>, vector<11x8xf32> -> vector<11x8xf32>
    %179 = vector.extract_strided_slice %125 {offsets = [0, 24], sizes = [11, 8], strides = [1, 1]} : vector<11x32xf32> to vector<11x8xf32>
    %180 = vector.extract_strided_slice %126 {offsets = [0, 24], sizes = [11, 8], strides = [1, 1]} : vector<11x32xf32> to vector<11x8xf32>
    %181 = vector.extract_strided_slice %127 {offsets = [0, 24], sizes = [11, 8], strides = [1, 1]} : vector<11x32xf32> to vector<11x8xf32>
    %cst_84 = arith.constant dense<0.000000e+00> : vector<11x11xf32>
    %182 = tpu.matmul %179, %180, %cst_84 {dimension_numbers = #tpu.dot_dimension_numbers<[1], [1], [0], [0], [0, 0, 1, 0], [], []>} : vector<11x8xf32>, vector<11x8xf32>, vector<11x11xf32> -> vector<11x11xf32>
    %cst_85 = arith.constant 0.353553385 : f32
    %183 = vector.broadcast %cst_85 : f32 to vector<11x11xf32>
    %184 = arith.mulf %182, %183 : vector<11x11xf32>
    %cst_86 = arith.constant dense<0xFF800000> : vector<11xf32>
    %185 = vector.multi_reduction <maximumf>, %184, %cst_86 [1] : vector<11x11xf32> to vector<11xf32>
    %186 = vector.shape_cast %185 : vector<11xf32> to vector<11x1xf32>
    %187 = vector.broadcast %186 : vector<11x1xf32> to vector<11x11xf32>
    %188 = arith.subf %184, %187 : vector<11x11xf32>
    %189 = math.exp %188 : vector<11x11xf32>
    %cst_87 = arith.constant dense<0.000000e+00> : vector<11xf32>
    %190 = vector.multi_reduction <add>, %189, %cst_87 [1] : vector<11x11xf32> to vector<11xf32>
    %191 = vector.shape_cast %190 : vector<11xf32> to vector<11x1xf32>
    %192 = tpu.reciprocal %191 {approx = true} : vector<11x1xf32> -> vector<11x1xf32>
    %193 = vector.broadcast %192 : vector<11x1xf32> to vector<11x11xf32>
    %194 = arith.mulf %189, %193 : vector<11x11xf32>
    %cst_88 = arith.constant dense<0.000000e+00> : vector<11x8xf32>
    %195 = tpu.matmul %194, %181, %cst_88 {dimension_numbers = #tpu.dot_dimension_numbers<[1], [0], [0], [1], [0, 0, 1, 1], [], []>} : vector<11x11xf32>, vector<11x8xf32>, vector<11x8xf32> -> vector<11x8xf32>
    %196 = tpu.concatenate %144, %161, %178, %195 in 1 : vector<11x8xf32>, vector<11x8xf32>, vector<11x8xf32>, vector<11x8xf32> -> vector<11x32xf32>
    %c1_89 = arith.constant 1 : index
    %c0_90 = arith.constant 0 : index
    %c0_91 = arith.constant 0 : index
    %197 = vector.load %arg5[%c1_89, %c0_90, %c0_91] : memref<2x32x32xf32, #tpu.memory_space<vmem>>, vector<1x32x32xf32>
    %198 = vector.shape_cast %197 : vector<1x32x32xf32> to vector<32x32xf32>
    %cst_92 = arith.constant dense<0.000000e+00> : vector<11x32xf32>
    %199 = tpu.matmul %196, %198, %cst_92 {dimension_numbers = #tpu.dot_dimension_numbers<[1], [0], [0], [1], [0, 0, 1, 1], [], []>} : vector<11x32xf32>, vector<32x32xf32>, vector<11x32xf32> -> vector<11x32xf32>
    %c1_93 = arith.constant 1 : index
    %c0_94 = arith.constant 0 : index
    %c0_95 = arith.constant 0 : index
    %200 = vector.load %arg6[%c1_93, %c0_94, %c0_95] : memref<2x1x32xf32, #tpu.memory_space<vmem>>, vector<1x1x32xf32>
    %201 = vector.shape_cast %200 : vector<1x1x32xf32> to vector<1x32xf32>
    %202 = vector.broadcast %201 : vector<1x32xf32> to vector<11x32xf32>
    %203 = arith.addf %199, %202 : vector<11x32xf32>
    %cst_96 = arith.constant dense<0.000000e+00> : vector<16x32xf32>
    %204 = tpu.matmul %2, %203, %cst_96 {dimension_numbers = #tpu.dot_dimension_numbers<[1], [0], [0], [1], [0, 0, 1, 1], [], []>} : vector<16x11xf32>, vector<11x32xf32>, vector<16x32xf32> -> vector<16x32xf32>
    %205 = vector.extract_strided_slice %204 {offsets = [0, 0], sizes = [8, 32], strides = [1, 1]} : vector<16x32xf32> to vector<8x32xf32>
    %206 = vector.extract_strided_slice %204 {offsets = [8, 0], sizes = [8, 32], strides = [1, 1]} : vector<16x32xf32> to vector<8x32xf32>
    %c1_97 = arith.constant 1 : index
    %c0_98 = arith.constant 0 : index
    %c0_99 = arith.constant 0 : index
    %207 = vector.load %arg9[%c1_97, %c0_98, %c0_99] : memref<2x8x32xf32, #tpu.memory_space<vmem>>, vector<1x8x32xf32>
    %208 = vector.shape_cast %207 : vector<1x8x32xf32> to vector<8x32xf32>
    %c1_100 = arith.constant 1 : index
    %c0_101 = arith.constant 0 : index
    %c0_102 = arith.constant 0 : index
    %209 = vector.load %arg10[%c1_100, %c0_101, %c0_102] : memref<2x8x32xf32, #tpu.memory_space<vmem>>, vector<1x8x32xf32>
    %210 = vector.shape_cast %209 : vector<1x8x32xf32> to vector<8x32xf32>
    %211 = arith.mulf %205, %208 : vector<8x32xf32>
    %212 = arith.mulf %206, %210 : vector<8x32xf32>
    %213 = arith.subf %211, %212 : vector<8x32xf32>
    %214 = arith.mulf %205, %210 : vector<8x32xf32>
    %215 = arith.mulf %206, %208 : vector<8x32xf32>
    %216 = arith.addf %214, %215 : vector<8x32xf32>
    %217 = tpu.concatenate %213, %216 in 0 : vector<8x32xf32>, vector<8x32xf32> -> vector<16x32xf32>
    %cst_103 = arith.constant dense<0.000000e+00> : vector<11x32xf32>
    %218 = tpu.matmul %3, %217, %cst_103 {dimension_numbers = #tpu.dot_dimension_numbers<[1], [0], [0], [1], [0, 0, 1, 1], [], []>} : vector<11x16xf32>, vector<16x32xf32>, vector<11x32xf32> -> vector<11x32xf32>
    %c1_104 = arith.constant 1 : index
    %c0_105 = arith.constant 0 : index
    %c0_106 = arith.constant 0 : index
    %219 = vector.load %arg11[%c1_104, %c0_105, %c0_106] : memref<2x1x32xf32, #tpu.memory_space<vmem>>, vector<1x1x32xf32>
    %220 = vector.shape_cast %219 : vector<1x1x32xf32> to vector<1x32xf32>
    %221 = vector.broadcast %220 : vector<1x32xf32> to vector<11x32xf32>
    %222 = arith.addf %218, %221 : vector<11x32xf32>
    %223 = arith.addf %222, %203 : vector<11x32xf32>
    %224 = vector.extract_strided_slice %223 {offsets = [0, 0], sizes = [1, 32], strides = [1, 1]} : vector<11x32xf32> to vector<1x32xf32>
    %cst_107 = arith.constant dense<0.000000e+00> : vector<1xf32>
    %225 = vector.multi_reduction <add>, %224, %cst_107 [1] : vector<1x32xf32> to vector<1xf32>
    %226 = vector.shape_cast %225 : vector<1xf32> to vector<1x1xf32>
    %cst_108 = arith.constant 3.200000e+01 : f32
    %227 = vector.broadcast %cst_108 : f32 to vector<1x1xf32>
    %228 = arith.divf %226, %227 : vector<1x1xf32>
    %229 = vector.broadcast %228 : vector<1x1xf32> to vector<1x32xf32>
    %230 = arith.subf %224, %229 : vector<1x32xf32>
    %231 = arith.mulf %230, %230 : vector<1x32xf32>
    %cst_109 = arith.constant dense<0.000000e+00> : vector<1xf32>
    %232 = vector.multi_reduction <add>, %231, %cst_109 [1] : vector<1x32xf32> to vector<1xf32>
    %233 = vector.shape_cast %232 : vector<1xf32> to vector<1x1xf32>
    %cst_110 = arith.constant 3.200000e+01 : f32
    %234 = vector.broadcast %cst_110 : f32 to vector<1x1xf32>
    %235 = arith.divf %233, %234 : vector<1x1xf32>
    %cst_111 = arith.constant 9.99999996E-13 : f32
    %236 = vector.broadcast %cst_111 : f32 to vector<1x1xf32>
    %237 = arith.addf %235, %236 : vector<1x1xf32>
    %238 = math.rsqrt %237 : vector<1x1xf32>
    %239 = vector.broadcast %238 : vector<1x1xf32> to vector<1x32xf32>
    %240 = arith.mulf %230, %239 : vector<1x32xf32>
    %241 = arith.mulf %240, %4 : vector<1x32xf32>
    %242 = arith.addf %241, %5 : vector<1x32xf32>
    %cst_112 = arith.constant dense<0.000000e+00> : vector<1x5xf32>
    %243 = tpu.matmul %242, %6, %cst_112 {dimension_numbers = #tpu.dot_dimension_numbers<[1], [0], [0], [1], [0, 0, 1, 1], [], []>} : vector<1x32xf32>, vector<32x5xf32>, vector<1x5xf32> -> vector<1x5xf32>
    %244 = arith.addf %243, %7 : vector<1x5xf32>
    %c0_113 = arith.constant 0 : index
    %c0_114 = arith.constant 0 : index
    %245 = vector.load %arg16[%c0_113, %c0_114] : memref<2x5xf32, #tpu.memory_space<vmem>>, vector<1x5xf32>
    tpu.vector_store %arg16[%c0_113, %c0_114], %244 {strides = array<i32>} : memref<2x5xf32, #tpu.memory_space<vmem>>, vector<1x5xf32>,
    %c1_115 = arith.constant 1 : index
    %c0_116 = arith.constant 0 : index
    %c0_117 = arith.constant 0 : index
    %246 = vector.load %arg0[%c1_115, %c0_116, %c0_117] : memref<2x11x64xf32, #tpu.memory_space<vmem>>, vector<1x11x64xf32>
    %247 = vector.shape_cast %246 : vector<1x11x64xf32> to vector<11x64xf32>
    %cst_118 = arith.constant dense<0.000000e+00> : vector<11x32xf32>
    %248 = tpu.matmul %247, %0, %cst_118 {dimension_numbers = #tpu.dot_dimension_numbers<[1], [0], [0], [1], [0, 0, 1, 1], [], []>} : vector<11x64xf32>, vector<64x32xf32>, vector<11x32xf32> -> vector<11x32xf32>
    %249 = arith.addf %248, %1 : vector<11x32xf32>
    %c0_119 = arith.constant 0 : index
    %c0_120 = arith.constant 0 : index
    %c0_121 = arith.constant 0 : index
    %250 = vector.load %arg3[%c0_119, %c0_120, %c0_121] : memref<2x32x96xf32, #tpu.memory_space<vmem>>, vector<1x32x96xf32>
    %251 = vector.shape_cast %250 : vector<1x32x96xf32> to vector<32x96xf32>
    %cst_122 = arith.constant dense<0.000000e+00> : vector<11x96xf32>
    %252 = tpu.matmul %249, %251, %cst_122 {dimension_numbers = #tpu.dot_dimension_numbers<[1], [0], [0], [1], [0, 0, 1, 1], [], []>} : vector<11x32xf32>, vector<32x96xf32>, vector<11x96xf32> -> vector<11x96xf32>
    %c0_123 = arith.constant 0 : index
    %c0_124 = arith.constant 0 : index
    %c0_125 = arith.constant 0 : index
    %253 = vector.load %arg4[%c0_123, %c0_124, %c0_125] : memref<2x1x96xf32, #tpu.memory_space<vmem>>, vector<1x1x96xf32>
    %254 = vector.shape_cast %253 : vector<1x1x96xf32> to vector<1x96xf32>
    %255 = vector.broadcast %254 : vector<1x96xf32> to vector<11x96xf32>
    %256 = arith.addf %252, %255 : vector<11x96xf32>
    %257 = vector.extract_strided_slice %256 {offsets = [0, 0], sizes = [11, 32], strides = [1, 1]} : vector<11x96xf32> to vector<11x32xf32>
    %258 = vector.extract_strided_slice %256 {offsets = [0, 32], sizes = [11, 32], strides = [1, 1]} : vector<11x96xf32> to vector<11x32xf32>
    %259 = vector.extract_strided_slice %256 {offsets = [0, 64], sizes = [11, 32], strides = [1, 1]} : vector<11x96xf32> to vector<11x32xf32>
    %260 = vector.extract_strided_slice %257 {offsets = [0, 0], sizes = [11, 8], strides = [1, 1]} : vector<11x32xf32> to vector<11x8xf32>
    %261 = vector.extract_strided_slice %258 {offsets = [0, 0], sizes = [11, 8], strides = [1, 1]} : vector<11x32xf32> to vector<11x8xf32>
    %262 = vector.extract_strided_slice %259 {offsets = [0, 0], sizes = [11, 8], strides = [1, 1]} : vector<11x32xf32> to vector<11x8xf32>
    %cst_126 = arith.constant dense<0.000000e+00> : vector<11x11xf32>
    %263 = tpu.matmul %260, %261, %cst_126 {dimension_numbers = #tpu.dot_dimension_numbers<[1], [1], [0], [0], [0, 0, 1, 0], [], []>} : vector<11x8xf32>, vector<11x8xf32>, vector<11x11xf32> -> vector<11x11xf32>
    %cst_127 = arith.constant 0.353553385 : f32
    %264 = vector.broadcast %cst_127 : f32 to vector<11x11xf32>
    %265 = arith.mulf %263, %264 : vector<11x11xf32>
    %cst_128 = arith.constant dense<0xFF800000> : vector<11xf32>
    %266 = vector.multi_reduction <maximumf>, %265, %cst_128 [1] : vector<11x11xf32> to vector<11xf32>
    %267 = vector.shape_cast %266 : vector<11xf32> to vector<11x1xf32>
    %268 = vector.broadcast %267 : vector<11x1xf32> to vector<11x11xf32>
    %269 = arith.subf %265, %268 : vector<11x11xf32>
    %270 = math.exp %269 : vector<11x11xf32>
    %cst_129 = arith.constant dense<0.000000e+00> : vector<11xf32>
    %271 = vector.multi_reduction <add>, %270, %cst_129 [1] : vector<11x11xf32> to vector<11xf32>
    %272 = vector.shape_cast %271 : vector<11xf32> to vector<11x1xf32>
    %273 = tpu.reciprocal %272 {approx = true} : vector<11x1xf32> -> vector<11x1xf32>
    %274 = vector.broadcast %273 : vector<11x1xf32> to vector<11x11xf32>
    %275 = arith.mulf %270, %274 : vector<11x11xf32>
    %cst_130 = arith.constant dense<0.000000e+00> : vector<11x8xf32>
    %276 = tpu.matmul %275, %262, %cst_130 {dimension_numbers = #tpu.dot_dimension_numbers<[1], [0], [0], [1], [0, 0, 1, 1], [], []>} : vector<11x11xf32>, vector<11x8xf32>, vector<11x8xf32> -> vector<11x8xf32>
    %277 = vector.extract_strided_slice %257 {offsets = [0, 8], sizes = [11, 8], strides = [1, 1]} : vector<11x32xf32> to vector<11x8xf32>
    %278 = vector.extract_strided_slice %258 {offsets = [0, 8], sizes = [11, 8], strides = [1, 1]} : vector<11x32xf32> to vector<11x8xf32>
    %279 = vector.extract_strided_slice %259 {offsets = [0, 8], sizes = [11, 8], strides = [1, 1]} : vector<11x32xf32> to vector<11x8xf32>
    %cst_131 = arith.constant dense<0.000000e+00> : vector<11x11xf32>
    %280 = tpu.matmul %277, %278, %cst_131 {dimension_numbers = #tpu.dot_dimension_numbers<[1], [1], [0], [0], [0, 0, 1, 0], [], []>} : vector<11x8xf32>, vector<11x8xf32>, vector<11x11xf32> -> vector<11x11xf32>
    %cst_132 = arith.constant 0.353553385 : f32
    %281 = vector.broadcast %cst_132 : f32 to vector<11x11xf32>
    %282 = arith.mulf %280, %281 : vector<11x11xf32>
    %cst_133 = arith.constant dense<0xFF800000> : vector<11xf32>
    %283 = vector.multi_reduction <maximumf>, %282, %cst_133 [1] : vector<11x11xf32> to vector<11xf32>
    %284 = vector.shape_cast %283 : vector<11xf32> to vector<11x1xf32>
    %285 = vector.broadcast %284 : vector<11x1xf32> to vector<11x11xf32>
    %286 = arith.subf %282, %285 : vector<11x11xf32>
    %287 = math.exp %286 : vector<11x11xf32>
    %cst_134 = arith.constant dense<0.000000e+00> : vector<11xf32>
    %288 = vector.multi_reduction <add>, %287, %cst_134 [1] : vector<11x11xf32> to vector<11xf32>
    %289 = vector.shape_cast %288 : vector<11xf32> to vector<11x1xf32>
    %290 = tpu.reciprocal %289 {approx = true} : vector<11x1xf32> -> vector<11x1xf32>
    %291 = vector.broadcast %290 : vector<11x1xf32> to vector<11x11xf32>
    %292 = arith.mulf %287, %291 : vector<11x11xf32>
    %cst_135 = arith.constant dense<0.000000e+00> : vector<11x8xf32>
    %293 = tpu.matmul %292, %279, %cst_135 {dimension_numbers = #tpu.dot_dimension_numbers<[1], [0], [0], [1], [0, 0, 1, 1], [], []>} : vector<11x11xf32>, vector<11x8xf32>, vector<11x8xf32> -> vector<11x8xf32>
    %294 = vector.extract_strided_slice %257 {offsets = [0, 16], sizes = [11, 8], strides = [1, 1]} : vector<11x32xf32> to vector<11x8xf32>
    %295 = vector.extract_strided_slice %258 {offsets = [0, 16], sizes = [11, 8], strides = [1, 1]} : vector<11x32xf32> to vector<11x8xf32>
    %296 = vector.extract_strided_slice %259 {offsets = [0, 16], sizes = [11, 8], strides = [1, 1]} : vector<11x32xf32> to vector<11x8xf32>
    %cst_136 = arith.constant dense<0.000000e+00> : vector<11x11xf32>
    %297 = tpu.matmul %294, %295, %cst_136 {dimension_numbers = #tpu.dot_dimension_numbers<[1], [1], [0], [0], [0, 0, 1, 0], [], []>} : vector<11x8xf32>, vector<11x8xf32>, vector<11x11xf32> -> vector<11x11xf32>
    %cst_137 = arith.constant 0.353553385 : f32
    %298 = vector.broadcast %cst_137 : f32 to vector<11x11xf32>
    %299 = arith.mulf %297, %298 : vector<11x11xf32>
    %cst_138 = arith.constant dense<0xFF800000> : vector<11xf32>
    %300 = vector.multi_reduction <maximumf>, %299, %cst_138 [1] : vector<11x11xf32> to vector<11xf32>
    %301 = vector.shape_cast %300 : vector<11xf32> to vector<11x1xf32>
    %302 = vector.broadcast %301 : vector<11x1xf32> to vector<11x11xf32>
    %303 = arith.subf %299, %302 : vector<11x11xf32>
    %304 = math.exp %303 : vector<11x11xf32>
    %cst_139 = arith.constant dense<0.000000e+00> : vector<11xf32>
    %305 = vector.multi_reduction <add>, %304, %cst_139 [1] : vector<11x11xf32> to vector<11xf32>
    %306 = vector.shape_cast %305 : vector<11xf32> to vector<11x1xf32>
    %307 = tpu.reciprocal %306 {approx = true} : vector<11x1xf32> -> vector<11x1xf32>
    %308 = vector.broadcast %307 : vector<11x1xf32> to vector<11x11xf32>
    %309 = arith.mulf %304, %308 : vector<11x11xf32>
    %cst_140 = arith.constant dense<0.000000e+00> : vector<11x8xf32>
    %310 = tpu.matmul %309, %296, %cst_140 {dimension_numbers = #tpu.dot_dimension_numbers<[1], [0], [0], [1], [0, 0, 1, 1], [], []>} : vector<11x11xf32>, vector<11x8xf32>, vector<11x8xf32> -> vector<11x8xf32>
    %311 = vector.extract_strided_slice %257 {offsets = [0, 24], sizes = [11, 8], strides = [1, 1]} : vector<11x32xf32> to vector<11x8xf32>
    %312 = vector.extract_strided_slice %258 {offsets = [0, 24], sizes = [11, 8], strides = [1, 1]} : vector<11x32xf32> to vector<11x8xf32>
    %313 = vector.extract_strided_slice %259 {offsets = [0, 24], sizes = [11, 8], strides = [1, 1]} : vector<11x32xf32> to vector<11x8xf32>
    %cst_141 = arith.constant dense<0.000000e+00> : vector<11x11xf32>
    %314 = tpu.matmul %311, %312, %cst_141 {dimension_numbers = #tpu.dot_dimension_numbers<[1], [1], [0], [0], [0, 0, 1, 0], [], []>} : vector<11x8xf32>, vector<11x8xf32>, vector<11x11xf32> -> vector<11x11xf32>
    %cst_142 = arith.constant 0.353553385 : f32
    %315 = vector.broadcast %cst_142 : f32 to vector<11x11xf32>
    %316 = arith.mulf %314, %315 : vector<11x11xf32>
    %cst_143 = arith.constant dense<0xFF800000> : vector<11xf32>
    %317 = vector.multi_reduction <maximumf>, %316, %cst_143 [1] : vector<11x11xf32> to vector<11xf32>
    %318 = vector.shape_cast %317 : vector<11xf32> to vector<11x1xf32>
    %319 = vector.broadcast %318 : vector<11x1xf32> to vector<11x11xf32>
    %320 = arith.subf %316, %319 : vector<11x11xf32>
    %321 = math.exp %320 : vector<11x11xf32>
    %cst_144 = arith.constant dense<0.000000e+00> : vector<11xf32>
    %322 = vector.multi_reduction <add>, %321, %cst_144 [1] : vector<11x11xf32> to vector<11xf32>
    %323 = vector.shape_cast %322 : vector<11xf32> to vector<11x1xf32>
    %324 = tpu.reciprocal %323 {approx = true} : vector<11x1xf32> -> vector<11x1xf32>
    %325 = vector.broadcast %324 : vector<11x1xf32> to vector<11x11xf32>
    %326 = arith.mulf %321, %325 : vector<11x11xf32>
    %cst_145 = arith.constant dense<0.000000e+00> : vector<11x8xf32>
    %327 = tpu.matmul %326, %313, %cst_145 {dimension_numbers = #tpu.dot_dimension_numbers<[1], [0], [0], [1], [0, 0, 1, 1], [], []>} : vector<11x11xf32>, vector<11x8xf32>, vector<11x8xf32> -> vector<11x8xf32>
    %328 = tpu.concatenate %276, %293, %310, %327 in 1 : vector<11x8xf32>, vector<11x8xf32>, vector<11x8xf32>, vector<11x8xf32> -> vector<11x32xf32>
    %c0_146 = arith.constant 0 : index
    %c0_147 = arith.constant 0 : index
    %c0_148 = arith.constant 0 : index
    %329 = vector.load %arg5[%c0_146, %c0_147, %c0_148] : memref<2x32x32xf32, #tpu.memory_space<vmem>>, vector<1x32x32xf32>
    %330 = vector.shape_cast %329 : vector<1x32x32xf32> to vector<32x32xf32>
    %cst_149 = arith.constant dense<0.000000e+00> : vector<11x32xf32>
    %331 = tpu.matmul %328, %330, %cst_149 {dimension_numbers = #tpu.dot_dimension_numbers<[1], [0], [0], [1], [0, 0, 1, 1], [], []>} : vector<11x32xf32>, vector<32x32xf32>, vector<11x32xf32> -> vector<11x32xf32>
    %c0_150 = arith.constant 0 : index
    %c0_151 = arith.constant 0 : index
    %c0_152 = arith.constant 0 : index
    %332 = vector.load %arg6[%c0_150, %c0_151, %c0_152] : memref<2x1x32xf32, #tpu.memory_space<vmem>>, vector<1x1x32xf32>
    %333 = vector.shape_cast %332 : vector<1x1x32xf32> to vector<1x32xf32>
    %334 = vector.broadcast %333 : vector<1x32xf32> to vector<11x32xf32>
    %335 = arith.addf %331, %334 : vector<11x32xf32>
    %cst_153 = arith.constant dense<0.000000e+00> : vector<16x32xf32>
    %336 = tpu.matmul %2, %335, %cst_153 {dimension_numbers = #tpu.dot_dimension_numbers<[1], [0], [0], [1], [0, 0, 1, 1], [], []>} : vector<16x11xf32>, vector<11x32xf32>, vector<16x32xf32> -> vector<16x32xf32>
    %337 = vector.extract_strided_slice %336 {offsets = [0, 0], sizes = [8, 32], strides = [1, 1]} : vector<16x32xf32> to vector<8x32xf32>
    %338 = vector.extract_strided_slice %336 {offsets = [8, 0], sizes = [8, 32], strides = [1, 1]} : vector<16x32xf32> to vector<8x32xf32>
    %c0_154 = arith.constant 0 : index
    %c0_155 = arith.constant 0 : index
    %c0_156 = arith.constant 0 : index
    %339 = vector.load %arg9[%c0_154, %c0_155, %c0_156] : memref<2x8x32xf32, #tpu.memory_space<vmem>>, vector<1x8x32xf32>
    %340 = vector.shape_cast %339 : vector<1x8x32xf32> to vector<8x32xf32>
    %c0_157 = arith.constant 0 : index
    %c0_158 = arith.constant 0 : index
    %c0_159 = arith.constant 0 : index
    %341 = vector.load %arg10[%c0_157, %c0_158, %c0_159] : memref<2x8x32xf32, #tpu.memory_space<vmem>>, vector<1x8x32xf32>
    %342 = vector.shape_cast %341 : vector<1x8x32xf32> to vector<8x32xf32>
    %343 = arith.mulf %337, %340 : vector<8x32xf32>
    %344 = arith.mulf %338, %342 : vector<8x32xf32>
    %345 = arith.subf %343, %344 : vector<8x32xf32>
    %346 = arith.mulf %337, %342 : vector<8x32xf32>
    %347 = arith.mulf %338, %340 : vector<8x32xf32>
    %348 = arith.addf %346, %347 : vector<8x32xf32>
    %349 = tpu.concatenate %345, %348 in 0 : vector<8x32xf32>, vector<8x32xf32> -> vector<16x32xf32>
    %cst_160 = arith.constant dense<0.000000e+00> : vector<11x32xf32>
    %350 = tpu.matmul %3, %349, %cst_160 {dimension_numbers = #tpu.dot_dimension_numbers<[1], [0], [0], [1], [0, 0, 1, 1], [], []>} : vector<11x16xf32>, vector<16x32xf32>, vector<11x32xf32> -> vector<11x32xf32>
    %c0_161 = arith.constant 0 : index
    %c0_162 = arith.constant 0 : index
    %c0_163 = arith.constant 0 : index
    %351 = vector.load %arg11[%c0_161, %c0_162, %c0_163] : memref<2x1x32xf32, #tpu.memory_space<vmem>>, vector<1x1x32xf32>
    %352 = vector.shape_cast %351 : vector<1x1x32xf32> to vector<1x32xf32>
    %353 = vector.broadcast %352 : vector<1x32xf32> to vector<11x32xf32>
    %354 = arith.addf %350, %353 : vector<11x32xf32>
    %355 = arith.addf %354, %335 : vector<11x32xf32>
    %c1_164 = arith.constant 1 : index
    %c0_165 = arith.constant 0 : index
    %c0_166 = arith.constant 0 : index
    %356 = vector.load %arg3[%c1_164, %c0_165, %c0_166] : memref<2x32x96xf32, #tpu.memory_space<vmem>>, vector<1x32x96xf32>
    %357 = vector.shape_cast %356 : vector<1x32x96xf32> to vector<32x96xf32>
    %cst_167 = arith.constant dense<0.000000e+00> : vector<11x96xf32>
    %358 = tpu.matmul %355, %357, %cst_167 {dimension_numbers = #tpu.dot_dimension_numbers<[1], [0], [0], [1], [0, 0, 1, 1], [], []>} : vector<11x32xf32>, vector<32x96xf32>, vector<11x96xf32> -> vector<11x96xf32>
    %c1_168 = arith.constant 1 : index
    %c0_169 = arith.constant 0 : index
    %c0_170 = arith.constant 0 : index
    %359 = vector.load %arg4[%c1_168, %c0_169, %c0_170] : memref<2x1x96xf32, #tpu.memory_space<vmem>>, vector<1x1x96xf32>
    %360 = vector.shape_cast %359 : vector<1x1x96xf32> to vector<1x96xf32>
    %361 = vector.broadcast %360 : vector<1x96xf32> to vector<11x96xf32>
    %362 = arith.addf %358, %361 : vector<11x96xf32>
    %363 = vector.extract_strided_slice %362 {offsets = [0, 0], sizes = [11, 32], strides = [1, 1]} : vector<11x96xf32> to vector<11x32xf32>
    %364 = vector.extract_strided_slice %362 {offsets = [0, 32], sizes = [11, 32], strides = [1, 1]} : vector<11x96xf32> to vector<11x32xf32>
    %365 = vector.extract_strided_slice %362 {offsets = [0, 64], sizes = [11, 32], strides = [1, 1]} : vector<11x96xf32> to vector<11x32xf32>
    %366 = vector.extract_strided_slice %363 {offsets = [0, 0], sizes = [11, 8], strides = [1, 1]} : vector<11x32xf32> to vector<11x8xf32>
    %367 = vector.extract_strided_slice %364 {offsets = [0, 0], sizes = [11, 8], strides = [1, 1]} : vector<11x32xf32> to vector<11x8xf32>
    %368 = vector.extract_strided_slice %365 {offsets = [0, 0], sizes = [11, 8], strides = [1, 1]} : vector<11x32xf32> to vector<11x8xf32>
    %cst_171 = arith.constant dense<0.000000e+00> : vector<11x11xf32>
    %369 = tpu.matmul %366, %367, %cst_171 {dimension_numbers = #tpu.dot_dimension_numbers<[1], [1], [0], [0], [0, 0, 1, 0], [], []>} : vector<11x8xf32>, vector<11x8xf32>, vector<11x11xf32> -> vector<11x11xf32>
    %cst_172 = arith.constant 0.353553385 : f32
    %370 = vector.broadcast %cst_172 : f32 to vector<11x11xf32>
    %371 = arith.mulf %369, %370 : vector<11x11xf32>
    %cst_173 = arith.constant dense<0xFF800000> : vector<11xf32>
    %372 = vector.multi_reduction <maximumf>, %371, %cst_173 [1] : vector<11x11xf32> to vector<11xf32>
    %373 = vector.shape_cast %372 : vector<11xf32> to vector<11x1xf32>
    %374 = vector.broadcast %373 : vector<11x1xf32> to vector<11x11xf32>
    %375 = arith.subf %371, %374 : vector<11x11xf32>
    %376 = math.exp %375 : vector<11x11xf32>
    %cst_174 = arith.constant dense<0.000000e+00> : vector<11xf32>
    %377 = vector.multi_reduction <add>, %376, %cst_174 [1] : vector<11x11xf32> to vector<11xf32>
    %378 = vector.shape_cast %377 : vector<11xf32> to vector<11x1xf32>
    %379 = tpu.reciprocal %378 {approx = true} : vector<11x1xf32> -> vector<11x1xf32>
    %380 = vector.broadcast %379 : vector<11x1xf32> to vector<11x11xf32>
    %381 = arith.mulf %376, %380 : vector<11x11xf32>
    %cst_175 = arith.constant dense<0.000000e+00> : vector<11x8xf32>
    %382 = tpu.matmul %381, %368, %cst_175 {dimension_numbers = #tpu.dot_dimension_numbers<[1], [0], [0], [1], [0, 0, 1, 1], [], []>} : vector<11x11xf32>, vector<11x8xf32>, vector<11x8xf32> -> vector<11x8xf32>
    %383 = vector.extract_strided_slice %363 {offsets = [0, 8], sizes = [11, 8], strides = [1, 1]} : vector<11x32xf32> to vector<11x8xf32>
    %384 = vector.extract_strided_slice %364 {offsets = [0, 8], sizes = [11, 8], strides = [1, 1]} : vector<11x32xf32> to vector<11x8xf32>
    %385 = vector.extract_strided_slice %365 {offsets = [0, 8], sizes = [11, 8], strides = [1, 1]} : vector<11x32xf32> to vector<11x8xf32>
    %cst_176 = arith.constant dense<0.000000e+00> : vector<11x11xf32>
    %386 = tpu.matmul %383, %384, %cst_176 {dimension_numbers = #tpu.dot_dimension_numbers<[1], [1], [0], [0], [0, 0, 1, 0], [], []>} : vector<11x8xf32>, vector<11x8xf32>, vector<11x11xf32> -> vector<11x11xf32>
    %cst_177 = arith.constant 0.353553385 : f32
    %387 = vector.broadcast %cst_177 : f32 to vector<11x11xf32>
    %388 = arith.mulf %386, %387 : vector<11x11xf32>
    %cst_178 = arith.constant dense<0xFF800000> : vector<11xf32>
    %389 = vector.multi_reduction <maximumf>, %388, %cst_178 [1] : vector<11x11xf32> to vector<11xf32>
    %390 = vector.shape_cast %389 : vector<11xf32> to vector<11x1xf32>
    %391 = vector.broadcast %390 : vector<11x1xf32> to vector<11x11xf32>
    %392 = arith.subf %388, %391 : vector<11x11xf32>
    %393 = math.exp %392 : vector<11x11xf32>
    %cst_179 = arith.constant dense<0.000000e+00> : vector<11xf32>
    %394 = vector.multi_reduction <add>, %393, %cst_179 [1] : vector<11x11xf32> to vector<11xf32>
    %395 = vector.shape_cast %394 : vector<11xf32> to vector<11x1xf32>
    %396 = tpu.reciprocal %395 {approx = true} : vector<11x1xf32> -> vector<11x1xf32>
    %397 = vector.broadcast %396 : vector<11x1xf32> to vector<11x11xf32>
    %398 = arith.mulf %393, %397 : vector<11x11xf32>
    %cst_180 = arith.constant dense<0.000000e+00> : vector<11x8xf32>
    %399 = tpu.matmul %398, %385, %cst_180 {dimension_numbers = #tpu.dot_dimension_numbers<[1], [0], [0], [1], [0, 0, 1, 1], [], []>} : vector<11x11xf32>, vector<11x8xf32>, vector<11x8xf32> -> vector<11x8xf32>
    %400 = vector.extract_strided_slice %363 {offsets = [0, 16], sizes = [11, 8], strides = [1, 1]} : vector<11x32xf32> to vector<11x8xf32>
    %401 = vector.extract_strided_slice %364 {offsets = [0, 16], sizes = [11, 8], strides = [1, 1]} : vector<11x32xf32> to vector<11x8xf32>
    %402 = vector.extract_strided_slice %365 {offsets = [0, 16], sizes = [11, 8], strides = [1, 1]} : vector<11x32xf32> to vector<11x8xf32>
    %cst_181 = arith.constant dense<0.000000e+00> : vector<11x11xf32>
    %403 = tpu.matmul %400, %401, %cst_181 {dimension_numbers = #tpu.dot_dimension_numbers<[1], [1], [0], [0], [0, 0, 1, 0], [], []>} : vector<11x8xf32>, vector<11x8xf32>, vector<11x11xf32> -> vector<11x11xf32>
    %cst_182 = arith.constant 0.353553385 : f32
    %404 = vector.broadcast %cst_182 : f32 to vector<11x11xf32>
    %405 = arith.mulf %403, %404 : vector<11x11xf32>
    %cst_183 = arith.constant dense<0xFF800000> : vector<11xf32>
    %406 = vector.multi_reduction <maximumf>, %405, %cst_183 [1] : vector<11x11xf32> to vector<11xf32>
    %407 = vector.shape_cast %406 : vector<11xf32> to vector<11x1xf32>
    %408 = vector.broadcast %407 : vector<11x1xf32> to vector<11x11xf32>
    %409 = arith.subf %405, %408 : vector<11x11xf32>
    %410 = math.exp %409 : vector<11x11xf32>
    %cst_184 = arith.constant dense<0.000000e+00> : vector<11xf32>
    %411 = vector.multi_reduction <add>, %410, %cst_184 [1] : vector<11x11xf32> to vector<11xf32>
    %412 = vector.shape_cast %411 : vector<11xf32> to vector<11x1xf32>
    %413 = tpu.reciprocal %412 {approx = true} : vector<11x1xf32> -> vector<11x1xf32>
    %414 = vector.broadcast %413 : vector<11x1xf32> to vector<11x11xf32>
    %415 = arith.mulf %410, %414 : vector<11x11xf32>
    %cst_185 = arith.constant dense<0.000000e+00> : vector<11x8xf32>
    %416 = tpu.matmul %415, %402, %cst_185 {dimension_numbers = #tpu.dot_dimension_numbers<[1], [0], [0], [1], [0, 0, 1, 1], [], []>} : vector<11x11xf32>, vector<11x8xf32>, vector<11x8xf32> -> vector<11x8xf32>
    %417 = vector.extract_strided_slice %363 {offsets = [0, 24], sizes = [11, 8], strides = [1, 1]} : vector<11x32xf32> to vector<11x8xf32>
    %418 = vector.extract_strided_slice %364 {offsets = [0, 24], sizes = [11, 8], strides = [1, 1]} : vector<11x32xf32> to vector<11x8xf32>
    %419 = vector.extract_strided_slice %365 {offsets = [0, 24], sizes = [11, 8], strides = [1, 1]} : vector<11x32xf32> to vector<11x8xf32>
    %cst_186 = arith.constant dense<0.000000e+00> : vector<11x11xf32>
    %420 = tpu.matmul %417, %418, %cst_186 {dimension_numbers = #tpu.dot_dimension_numbers<[1], [1], [0], [0], [0, 0, 1, 0], [], []>} : vector<11x8xf32>, vector<11x8xf32>, vector<11x11xf32> -> vector<11x11xf32>
    %cst_187 = arith.constant 0.353553385 : f32
    %421 = vector.broadcast %cst_187 : f32 to vector<11x11xf32>
    %422 = arith.mulf %420, %421 : vector<11x11xf32>
    %cst_188 = arith.constant dense<0xFF800000> : vector<11xf32>
    %423 = vector.multi_reduction <maximumf>, %422, %cst_188 [1] : vector<11x11xf32> to vector<11xf32>
    %424 = vector.shape_cast %423 : vector<11xf32> to vector<11x1xf32>
    %425 = vector.broadcast %424 : vector<11x1xf32> to vector<11x11xf32>
    %426 = arith.subf %422, %425 : vector<11x11xf32>
    %427 = math.exp %426 : vector<11x11xf32>
    %cst_189 = arith.constant dense<0.000000e+00> : vector<11xf32>
    %428 = vector.multi_reduction <add>, %427, %cst_189 [1] : vector<11x11xf32> to vector<11xf32>
    %429 = vector.shape_cast %428 : vector<11xf32> to vector<11x1xf32>
    %430 = tpu.reciprocal %429 {approx = true} : vector<11x1xf32> -> vector<11x1xf32>
    %431 = vector.broadcast %430 : vector<11x1xf32> to vector<11x11xf32>
    %432 = arith.mulf %427, %431 : vector<11x11xf32>
    %cst_190 = arith.constant dense<0.000000e+00> : vector<11x8xf32>
    %433 = tpu.matmul %432, %419, %cst_190 {dimension_numbers = #tpu.dot_dimension_numbers<[1], [0], [0], [1], [0, 0, 1, 1], [], []>} : vector<11x11xf32>, vector<11x8xf32>, vector<11x8xf32> -> vector<11x8xf32>
    %434 = tpu.concatenate %382, %399, %416, %433 in 1 : vector<11x8xf32>, vector<11x8xf32>, vector<11x8xf32>, vector<11x8xf32> -> vector<11x32xf32>
    %c1_191 = arith.constant 1 : index
    %c0_192 = arith.constant 0 : index
    %c0_193 = arith.constant 0 : index
    %435 = vector.load %arg5[%c1_191, %c0_192, %c0_193] : memref<2x32x32xf32, #tpu.memory_space<vmem>>, vector<1x32x32xf32>
    %436 = vector.shape_cast %435 : vector<1x32x32xf32> to vector<32x32xf32>
    %cst_194 = arith.constant dense<0.000000e+00> : vector<11x32xf32>
    %437 = tpu.matmul %434, %436, %cst_194 {dimension_numbers = #tpu.dot_dimension_numbers<[1], [0], [0], [1], [0, 0, 1, 1], [], []>} : vector<11x32xf32>, vector<32x32xf32>, vector<11x32xf32> -> vector<11x32xf32>
    %c1_195 = arith.constant 1 : index
    %c0_196 = arith.constant 0 : index
    %c0_197 = arith.constant 0 : index
    %438 = vector.load %arg6[%c1_195, %c0_196, %c0_197] : memref<2x1x32xf32, #tpu.memory_space<vmem>>, vector<1x1x32xf32>
    %439 = vector.shape_cast %438 : vector<1x1x32xf32> to vector<1x32xf32>
    %440 = vector.broadcast %439 : vector<1x32xf32> to vector<11x32xf32>
    %441 = arith.addf %437, %440 : vector<11x32xf32>
    %cst_198 = arith.constant dense<0.000000e+00> : vector<16x32xf32>
    %442 = tpu.matmul %2, %441, %cst_198 {dimension_numbers = #tpu.dot_dimension_numbers<[1], [0], [0], [1], [0, 0, 1, 1], [], []>} : vector<16x11xf32>, vector<11x32xf32>, vector<16x32xf32> -> vector<16x32xf32>
    %443 = vector.extract_strided_slice %442 {offsets = [0, 0], sizes = [8, 32], strides = [1, 1]} : vector<16x32xf32> to vector<8x32xf32>
    %444 = vector.extract_strided_slice %442 {offsets = [8, 0], sizes = [8, 32], strides = [1, 1]} : vector<16x32xf32> to vector<8x32xf32>
    %c1_199 = arith.constant 1 : index
    %c0_200 = arith.constant 0 : index
    %c0_201 = arith.constant 0 : index
    %445 = vector.load %arg9[%c1_199, %c0_200, %c0_201] : memref<2x8x32xf32, #tpu.memory_space<vmem>>, vector<1x8x32xf32>
    %446 = vector.shape_cast %445 : vector<1x8x32xf32> to vector<8x32xf32>
    %c1_202 = arith.constant 1 : index
    %c0_203 = arith.constant 0 : index
    %c0_204 = arith.constant 0 : index
    %447 = vector.load %arg10[%c1_202, %c0_203, %c0_204] : memref<2x8x32xf32, #tpu.memory_space<vmem>>, vector<1x8x32xf32>
    %448 = vector.shape_cast %447 : vector<1x8x32xf32> to vector<8x32xf32>
    %449 = arith.mulf %443, %446 : vector<8x32xf32>
    %450 = arith.mulf %444, %448 : vector<8x32xf32>
    %451 = arith.subf %449, %450 : vector<8x32xf32>
    %452 = arith.mulf %443, %448 : vector<8x32xf32>
    %453 = arith.mulf %444, %446 : vector<8x32xf32>
    %454 = arith.addf %452, %453 : vector<8x32xf32>
    %455 = tpu.concatenate %451, %454 in 0 : vector<8x32xf32>, vector<8x32xf32> -> vector<16x32xf32>
    %cst_205 = arith.constant dense<0.000000e+00> : vector<11x32xf32>
    %456 = tpu.matmul %3, %455, %cst_205 {dimension_numbers = #tpu.dot_dimension_numbers<[1], [0], [0], [1], [0, 0, 1, 1], [], []>} : vector<11x16xf32>, vector<16x32xf32>, vector<11x32xf32> -> vector<11x32xf32>
    %c1_206 = arith.constant 1 : index
    %c0_207 = arith.constant 0 : index
    %c0_208 = arith.constant 0 : index
    %457 = vector.load %arg11[%c1_206, %c0_207, %c0_208] : memref<2x1x32xf32, #tpu.memory_space<vmem>>, vector<1x1x32xf32>
    %458 = vector.shape_cast %457 : vector<1x1x32xf32> to vector<1x32xf32>
    %459 = vector.broadcast %458 : vector<1x32xf32> to vector<11x32xf32>
    %460 = arith.addf %456, %459 : vector<11x32xf32>
    %461 = arith.addf %460, %441 : vector<11x32xf32>
    %462 = vector.extract_strided_slice %461 {offsets = [0, 0], sizes = [1, 32], strides = [1, 1]} : vector<11x32xf32> to vector<1x32xf32>
    %cst_209 = arith.constant dense<0.000000e+00> : vector<1xf32>
    %463 = vector.multi_reduction <add>, %462, %cst_209 [1] : vector<1x32xf32> to vector<1xf32>
    %464 = vector.shape_cast %463 : vector<1xf32> to vector<1x1xf32>
    %cst_210 = arith.constant 3.200000e+01 : f32
    %465 = vector.broadcast %cst_210 : f32 to vector<1x1xf32>
    %466 = arith.divf %464, %465 : vector<1x1xf32>
    %467 = vector.broadcast %466 : vector<1x1xf32> to vector<1x32xf32>
    %468 = arith.subf %462, %467 : vector<1x32xf32>
    %469 = arith.mulf %468, %468 : vector<1x32xf32>
    %cst_211 = arith.constant dense<0.000000e+00> : vector<1xf32>
    %470 = vector.multi_reduction <add>, %469, %cst_211 [1] : vector<1x32xf32> to vector<1xf32>
    %471 = vector.shape_cast %470 : vector<1xf32> to vector<1x1xf32>
    %cst_212 = arith.constant 3.200000e+01 : f32
    %472 = vector.broadcast %cst_212 : f32 to vector<1x1xf32>
    %473 = arith.divf %471, %472 : vector<1x1xf32>
    %cst_213 = arith.constant 9.99999996E-13 : f32
    %474 = vector.broadcast %cst_213 : f32 to vector<1x1xf32>
    %475 = arith.addf %473, %474 : vector<1x1xf32>
    %476 = math.rsqrt %475 : vector<1x1xf32>
    %477 = vector.broadcast %476 : vector<1x1xf32> to vector<1x32xf32>
    %478 = arith.mulf %468, %477 : vector<1x32xf32>
    %479 = arith.mulf %478, %4 : vector<1x32xf32>
    %480 = arith.addf %479, %5 : vector<1x32xf32>
    %cst_214 = arith.constant dense<0.000000e+00> : vector<1x5xf32>
    %481 = tpu.matmul %480, %6, %cst_214 {dimension_numbers = #tpu.dot_dimension_numbers<[1], [0], [0], [1], [0, 0, 1, 1], [], []>} : vector<1x32xf32>, vector<32x5xf32>, vector<1x5xf32> -> vector<1x5xf32>
    %482 = arith.addf %481, %7 : vector<1x5xf32>
    %c1_215 = arith.constant 1 : index
    %c0_216 = arith.constant 0 : index
    %483 = vector.load %arg16[%c1_215, %c0_216] : memref<2x5xf32, #tpu.memory_space<vmem>>, vector<1x5xf32>
    tpu.vector_store %arg16[%c1_215, %c0_216], %482 {strides = array<i32>} : memref<2x5xf32, #tpu.memory_space<vmem>>, vector<1x5xf32>,
    return
  }
}

</mosaic_0001>

<llo_original>
// kernel: ast_lora_freq_forward.1
$region0: #{ast_lora_freq_forward.1}
  #allocation0 [shape = 'u32[]', space=smem, size = 0x4, offset = 0x4, fixed_abs, tag = 'smem constant byte address 0x4 - core index']
  #allocation1 [shape = 'u32[144,128]{1,0:T(1,128)}', space=vmem, size = 0x12000, scoped, tag = 'internal scratch']
  %s0 = inlined_call_operand.vmem [shape: f32[2,11,64], index: 0, kind: input, shape index: {}]
  %s1 = inlined_call_operand.vmem [shape: f32[11,32], index: 1, kind: input, shape index: {}]
  %s2 = inlined_call_operand.vmem [shape: f32[64,32], index: 2, kind: input, shape index: {}]
  %s3 = inlined_call_operand.vmem [shape: f32[2,32,96], index: 3, kind: input, shape index: {}]
  %s4 = inlined_call_operand.vmem [shape: f32[2,1,96], index: 4, kind: input, shape index: {}]
  %s5 = inlined_call_operand.vmem [shape: f32[2,32,32], index: 5, kind: input, shape index: {}]
  %s6 = inlined_call_operand.vmem [shape: f32[2,1,32], index: 6, kind: input, shape index: {}]
  %s7 = inlined_call_operand.vmem [shape: f32[16,11], index: 7, kind: input, shape index: {}]
  %s8 = inlined_call_operand.vmem [shape: f32[11,16], index: 8, kind: input, shape index: {}]
  %s9 = inlined_call_operand.vmem [shape: f32[2,8,32], index: 9, kind: input, shape index: {}]
  %s10 = inlined_call_operand.vmem [shape: f32[2,8,32], index: 10, kind: input, shape index: {}]
  %s11 = inlined_call_operand.vmem [shape: f32[2,1,32], index: 11, kind: input, shape index: {}]
  %s12 = inlined_call_operand.vmem [shape: f32[1,32], index: 12, kind: input, shape index: {}]
  %s13 = inlined_call_operand.vmem [shape: f32[1,32], index: 13, kind: input, shape index: {}]
  %s14 = inlined_call_operand.vmem [shape: f32[32,5], index: 14, kind: input, shape index: {}]
  %s15 = inlined_call_operand.vmem [shape: f32[1,5], index: 15, kind: input, shape index: {}]
  %s16 = inlined_call_operand.hbm [shape: f32[2,5], index: 16, kind: output, shape index: {}]
  %s17 = sld [smem:[#allocation0]]
  $region74: #{ast_lora_freq_forward.1} parent=0
    _
  %s19 = ssub.s32 1, %s17
  %s20 = scalar_select 0, %s19, %s17
  $region1: #{ast_lora_freq_forward.1} parent=0
    #allocation2 [shape = 'u8[1024]{0}', space=vmem, size = 0x400, scoped, tag = 'output window, operand 0, single buffered']
    #allocation3 [shape = 's32[1]{0}', space=sflag, size = 0x4, scoped, tag = 'scoped memory for ast_lora_freq_forward.1']
    %21 = vsyncpa [#allocation3], 0
    // Predicated region
    $region2: #{ast_lora_freq_forward.1} parent=1 // pred_check
      _
    $region3: #{ast_lora_freq_forward.1} parent=1 // pred_check_branch
      %23 = sbr.rel (0) target = $region5
    $region4: #{ast_lora_freq_forward.1} parent=1 // pred_region
      _
    $region5: #{ast_lora_freq_forward.1} parent=1 // pred_fallthru
      _
    // Predicated region
    $region6: #{ast_lora_freq_forward.1} parent=1 // pred_check
      _
    $region7: #{ast_lora_freq_forward.1} parent=1 // pred_check_branch
      %25 = sbr.rel (0) target = $region9
    $region8: #{ast_lora_freq_forward.1} parent=1 // pred_region
      _
    $region9: #{ast_lora_freq_forward.1} parent=1 // pred_fallthru
      _
    // Predicated region
    $region10: #{ast_lora_freq_forward.1} parent=1 // pred_check
      _
    $region11: #{ast_lora_freq_forward.1} parent=1 // pred_check_branch
      %27 = sbr.rel (0) target = $region13
    $region12: #{ast_lora_freq_forward.1} parent=1 // pred_region
      _
    $region13: #{ast_lora_freq_forward.1} parent=1 // pred_fallthru
      _
    // Predicated region
    $region14: #{ast_lora_freq_forward.1} parent=1 // pred_check
      _
    $region15: #{ast_lora_freq_forward.1} parent=1 // pred_check_branch
      %29 = sbr.rel (0) target = $region17
    $region16: #{ast_lora_freq_forward.1} parent=1 // pred_region
      _
    $region17: #{ast_lora_freq_forward.1} parent=1 // pred_fallthru
      _
    // Predicated region
    $region18: #{ast_lora_freq_forward.1} parent=1 // pred_check
      _
    $region19: #{ast_lora_freq_forward.1} parent=1 // pred_check_branch
      %31 = sbr.rel (0) target = $region21
    $region20: #{ast_lora_freq_forward.1} parent=1 // pred_region
      _
    $region21: #{ast_lora_freq_forward.1} parent=1 // pred_fallthru
      _
    // Predicated region
    $region22: #{ast_lora_freq_forward.1} parent=1 // pred_check
      _
    $region23: #{ast_lora_freq_forward.1} parent=1 // pred_check_branch
      %33 = sbr.rel (0) target = $region25
    $region24: #{ast_lora_freq_forward.1} parent=1 // pred_region
      _
    $region25: #{ast_lora_freq_forward.1} parent=1 // pred_fallthru
      _
    // Predicated region
    $region26: #{ast_lora_freq_forward.1} parent=1 // pred_check
      _
    $region27: #{ast_lora_freq_forward.1} parent=1 // pred_check_branch
      %35 = sbr.rel (0) target = $region29
    $region28: #{ast_lora_freq_forward.1} parent=1 // pred_region
      _
    $region29: #{ast_lora_freq_forward.1} parent=1 // pred_fallthru
      _
    // Predicated region
    $region30: #{ast_lora_freq_forward.1} parent=1 // pred_check
      _
    $region31: #{ast_lora_freq_forward.1} parent=1 // pred_check_branch
      %37 = sbr.rel (0) target = $region33
    $region32: #{ast_lora_freq_forward.1} parent=1 // pred_region
      _
    $region33: #{ast_lora_freq_forward.1} parent=1 // pred_fallthru
      _
    // Predicated region
    $region34: #{ast_lora_freq_forward.1} parent=1 // pred_check
      _
    $region35: #{ast_lora_freq_forward.1} parent=1 // pred_check_branch
      %39 = sbr.rel (0) target = $region37
    $region36: #{ast_lora_freq_forward.1} parent=1 // pred_region
      _
    $region37: #{ast_lora_freq_forward.1} parent=1 // pred_fallthru
      _
    // Predicated region
    $region38: #{ast_lora_freq_forward.1} parent=1 // pred_check
      _
    $region39: #{ast_lora_freq_forward.1} parent=1 // pred_check_branch
      %41 = sbr.rel (0) target = $region41
    $region40: #{ast_lora_freq_forward.1} parent=1 // pred_region
      _
    $region41: #{ast_lora_freq_forward.1} parent=1 // pred_fallthru
      _
    // Predicated region
    $region42: #{ast_lora_freq_forward.1} parent=1 // pred_check
      _
    $region43: #{ast_lora_freq_forward.1} parent=1 // pred_check_branch
      %43 = sbr.rel (0) target = $region45
    $region44: #{ast_lora_freq_forward.1} parent=1 // pred_region
      _
    $region45: #{ast_lora_freq_forward.1} parent=1 // pred_fallthru
      _
    // Predicated region
    $region46: #{ast_lora_freq_forward.1} parent=1 // pred_check
      _
    $region47: #{ast_lora_freq_forward.1} parent=1 // pred_check_branch
      %45 = sbr.rel (0) target = $region49
    $region48: #{ast_lora_freq_forward.1} parent=1 // pred_region
      _
    $region49: #{ast_lora_freq_forward.1} parent=1 // pred_fallthru
      _
    // Predicated region
    $region50: #{ast_lora_freq_forward.1} parent=1 // pred_check
      _
    $region51: #{ast_lora_freq_forward.1} parent=1 // pred_check_branch
      %47 = sbr.rel (0) target = $region53
    $region52: #{ast_lora_freq_forward.1} parent=1 // pred_region
      _
    $region53: #{ast_lora_freq_forward.1} parent=1 // pred_fallthru
      _
    // Predicated region
    $region54: #{ast_lora_freq_forward.1} parent=1 // pred_check
      _
    $region55: #{ast_lora_freq_forward.1} parent=1 // pred_check_branch
      %49 = sbr.rel (0) target = $region57
    $region56: #{ast_lora_freq_forward.1} parent=1 // pred_region
      _
    $region57: #{ast_lora_freq_forward.1} parent=1 // pred_fallthru
      _
    // Predicated region
    $region58: #{ast_lora_freq_forward.1} parent=1 // pred_check
      _
    $region59: #{ast_lora_freq_forward.1} parent=1 // pred_check_branch
      %51 = sbr.rel (0) target = $region61
    $region60: #{ast_lora_freq_forward.1} parent=1 // pred_region
      _
    $region61: #{ast_lora_freq_forward.1} parent=1 // pred_fallthru
      _
    // Predicated region
    $region62: #{ast_lora_freq_forward.1} parent=1 // pred_check
      _
    $region63: #{ast_lora_freq_forward.1} parent=1 // pred_check_branch
      %53 = sbr.rel (0) target = $region65
    $region64: #{ast_lora_freq_forward.1} parent=1 // pred_region
      _
    $region65: #{ast_lora_freq_forward.1} parent=1 // pred_fallthru
      _
    %v54 = vld [vmem:[%s2] sm:$0xff]
    %v55 = vld [vmem:[%s2 + $0x8] sm:$0xff]
    %v56 = vld [vmem:[%s2 + $0x10] sm:$0xff]
    %v57 = vld [vmem:[%s2 + $0x18] sm:$0xff]
    %v58 = vld [vmem:[%s2 + $0x20] sm:$0xff]
    %v59 = vld [vmem:[%s2 + $0x28] sm:$0xff]
    %v60 = vld [vmem:[%s2 + $0x30] sm:$0xff]
    %v61 = vld [vmem:[%s2 + $0x38] sm:$0xff]
    %v62 = vld [vmem:[%s1] sm:$0xff]
    %v63 = vld [vmem:[%s1 + $0x8] sm:$0x7]
    %v64 = vld [vmem:[%s7] sm:$0xff]
    %v65 = vld [vmem:[%s7 + $0x8] sm:$0xff]
    %v66 = vld [vmem:[%s8] sm:$0xff]
    %v67 = vld [vmem:[%s8 + $0x8] sm:$0x7]
    %v68 = vld [vmem:[%s12] sm:$0x1]
    %v69 = vld [vmem:[%s13] sm:$0x1]
    %v70 = vld [vmem:[%s14] sm:$0xff]
    %v71 = vld [vmem:[%s14 + $0x8] sm:$0xff]
    %v72 = vld [vmem:[%s14 + $0x10] sm:$0xff]
    %v73 = vld [vmem:[%s14 + $0x18] sm:$0xff]
    %v74 = vld [vmem:[%s15] sm:$0x1]
    %v75 = vld [vmem:[%s0] sm:$0xff]
    %v76 = vld [vmem:[%s0 + $0x8] sm:$0x7]
    %vm77 = vcmask 523264
    %v79 = vsel %vm77, %v75, 0
    %v82 = vsel %vm77, %v76, 0
    %84 = vmatprep.subr.mxu0 0.0
    %85 = vmatpush1.msra.mxu0 %v54
    %86 = vmatprep.subr.mxu0 0.0
    %87 = vmatpush1.msra.mxu0 %v55
    %88 = vmatprep.subr.mxu0 0.0
    %89 = vmatpush1.msra.mxu0 %v56
    %90 = vmatprep.subr.mxu0 0.0
    %91 = vmatpush1.msra.mxu0 %v57
    %92 = vmatprep.subr.mxu0 0.0
    %93 = vmatpush1.msra.mxu0 %v58
    %94 = vmatprep.subr.mxu0 0.0
    %95 = vmatpush1.msra.mxu0 %v59
    %96 = vmatprep.subr.mxu0 0.0
    %97 = vmatpush1.msra.mxu0 %v60
    %98 = vmatprep.subr.mxu0 0.0
    %99 = vmatpush1.msra.mxu0 %v61
    %100 = vmatprep.subr.mxu0 0.0
    %101 = vmatpush1.msra.mxu0 0.0
    %102 = vmatprep.subr.mxu0 0.0
    %103 = vmatpush1.msra.mxu0 0.0
    %104 = vmatprep.subr.mxu0 0.0
    %105 = vmatpush1.msra.mxu0 0.0
    %106 = vmatprep.subr.mxu0 0.0
    %107 = vmatpush1.msra.mxu0 0.0
    %108 = vmatprep.subr.mxu0 0.0
    %109 = vmatpush1.msra.mxu0 0.0
    %110 = vmatprep.subr.mxu0 0.0
    %111 = vmatpush1.msra.mxu0 0.0
    %112 = vmatprep.subr.mxu0 0.0
    %113 = vmatpush1.msra.mxu0 0.0
    %114 = vmatprep.subr.mxu0 0.0
    %115 = vmatpush1.msra.mxu0 0.0
    %116 = vmatprep.subr.mxu0 0.0
    %117 = vmatpush1.msra.mxu0 0.0
    %118 = vmatprep.subr.mxu0 0.0
    %119 = vmatpush1.msra.mxu0 0.0
    %120 = vmatprep.subr.mxu0 0.0
    %121 = vmatpush1.msra.mxu0 0.0
    %122 = vmatprep.subr.mxu0 0.0
    %123 = vmatpush1.msra.mxu0 0.0
    %124 = vmatprep.subr.mxu0 0.0
    %125 = vmatpush1.msra.mxu0 0.0
    %126 = vmatprep.subr.mxu0 0.0
    %127 = vmatpush1.msra.mxu0 0.0
    %128 = vmatprep.subr.mxu0 0.0
    %129 = vmatpush1.msra.mxu0 0.0
    %130 = vmatprep.subr.mxu0 0.0
    %131 = vmatpush1.msra.mxu0 0.0
    %132 = vmatprep.subr.mxu0 0.0
    %133 = vmatpush1.msra.mxu0 0.0
    %134 = vmatprep.subr.mxu0 0.0
    %135 = vmatpush1.msra.mxu0 0.0
    %136 = vmatprep.subr.mxu0 0.0
    %137 = vmatpush1.msra.mxu0 0.0
    %138 = vmatprep.subr.mxu0 0.0
    %139 = vmatpush1.msra.mxu0 0.0
    %140 = vmatprep.subr.mxu0 0.0
    %141 = vmatpush1.msra.mxu0 0.0
    %142 = vmatprep.subr.mxu0 0.0
    %143 = vmatpush1.msra.mxu0 0.0
    %144 = vmatprep.subr.mxu0 0.0
    %145 = vmatpush1.msra.mxu0 0.0
    %146 = vmatprep.subr.mxu0 0.0
    %147 = vmatpush1.msra.mxu0 0.0
    %148 = vmatprep.mubr.f32.mxu0 0.0
    %149 = vmatmul.mubr.f32.gmra.mrb[0].mxu0 %v79
    %v150 = vpop.f32.mrb[0].mxu0
    %v151 = vadd.f32 %v62, %v150
    %v152 = vpop.f32.mrb[0].mxu0
    %153 = vmatprep.mubr.f32.mxu0 0.0
    %154 = vmatmul.mubr.f32.gmra.mrb[0].mxu0 %v82
    %v155 = vpop.f32.mrb[0].mxu0
    %v156 = vadd.f32 %v63, %v155
    %v157 = vpop.f32.mrb[0].mxu0
    %158 = vdwg.mxu0
    %v159 = vld [vmem:[%s3] sm:$0xff]
    %v160 = vld [vmem:[%s3 + $0x8] sm:$0xff]
    %v161 = vld [vmem:[%s3 + $0x10] sm:$0xff]
    %v162 = vld [vmem:[%s3 + $0x18] sm:$0xff]
    %v163 = vld [vmem:[%s4] sm:$0x1]
    %v165 = vlaneseq
    %v166 = vshrl.u32 %v165, 7
    %v167 = vsub.s32 0, %v166
    %v168 = vrot.slane %v163, %v167
    %vm170 = vcmask 261120
    %v172 = vsel %vm170, %v151, 0
    %v175 = vsel %vm170, %v156, 0
    %177 = vmatprep.subr.mxu0 0.0
    %178 = vmatpush1.msra.mxu0 %v159
    %179 = vmatprep.subr.mxu0 0.0
    %180 = vmatpush1.msra.mxu0 %v160
    %181 = vmatprep.subr.mxu0 0.0
    %182 = vmatpush1.msra.mxu0 %v161
    %183 = vmatprep.subr.mxu0 0.0
    %184 = vmatpush1.msra.mxu0 %v162
    %185 = vmatprep.subr.mxu0 0.0
    %186 = vmatpush1.msra.mxu0 0.0
    %187 = vmatprep.subr.mxu0 0.0
    %188 = vmatpush1.msra.mxu0 0.0
    %189 = vmatprep.subr.mxu0 0.0
    %190 = vmatpush1.msra.mxu0 0.0
    %191 = vmatprep.subr.mxu0 0.0
    %192 = vmatpush1.msra.mxu0 0.0
    %193 = vmatprep.subr.mxu0 0.0
    %194 = vmatpush1.msra.mxu0 0.0
    %195 = vmatprep.subr.mxu0 0.0
    %196 = vmatpush1.msra.mxu0 0.0
    %197 = vmatprep.subr.mxu0 0.0
    %198 = vmatpush1.msra.mxu0 0.0
    %199 = vmatprep.subr.mxu0 0.0
    %200 = vmatpush1.msra.mxu0 0.0
    %201 = vmatprep.subr.mxu0 0.0
    %202 = vmatpush1.msra.mxu0 0.0
    %203 = vmatprep.subr.mxu0 0.0
    %204 = vmatpush1.msra.mxu0 0.0
    %205 = vmatprep.subr.mxu0 0.0
    %206 = vmatpush1.msra.mxu0 0.0
    %207 = vmatprep.subr.mxu0 0.0
    %208 = vmatpush1.msra.mxu0 0.0
    %209 = vmatprep.subr.mxu0 0.0
    %210 = vmatpush1.msra.mxu0 0.0
    %211 = vmatprep.subr.mxu0 0.0
    %212 = vmatpush1.msra.mxu0 0.0
    %213 = vmatprep.subr.mxu0 0.0
    %214 = vmatpush1.msra.mxu0 0.0
    %215 = vmatprep.subr.mxu0 0.0
    %216 = vmatpush1.msra.mxu0 0.0
    %217 = vmatprep.subr.mxu0 0.0
    %218 = vmatpush1.msra.mxu0 0.0
    %219 = vmatprep.subr.mxu0 0.0
    %220 = vmatpush1.msra.mxu0 0.0
    %221 = vmatprep.subr.mxu0 0.0
    %222 = vmatpush1.msra.mxu0 0.0
    %223 = vmatprep.subr.mxu0 0.0
    %224 = vmatpush1.msra.mxu0 0.0
    %225 = vmatprep.subr.mxu0 0.0
    %226 = vmatpush1.msra.mxu0 0.0
    %227 = vmatprep.subr.mxu0 0.0
    %228 = vmatpush1.msra.mxu0 0.0
    %229 = vmatprep.subr.mxu0 0.0
    %230 = vmatpush1.msra.mxu0 0.0
    %231 = vmatprep.subr.mxu0 0.0
    %232 = vmatpush1.msra.mxu0 0.0
    %233 = vmatprep.subr.mxu0 0.0
    %234 = vmatpush1.msra.mxu0 0.0
    %235 = vmatprep.subr.mxu0 0.0
    %236 = vmatpush1.msra.mxu0 0.0
    %237 = vmatprep.subr.mxu0 0.0
    %238 = vmatpush1.msra.mxu0 0.0
    %239 = vmatprep.subr.mxu0 0.0
    %240 = vmatpush1.msra.mxu0 0.0
    %241 = vmatprep.mubr.f32.mxu0 0.0
    %242 = vmatmul.mubr.f32.gmra.mrb[0].mxu0 %v172
    %v243 = vpop.f32.mrb[0].mxu0
    %v244 = vadd.f32 %v168, %v243
    %v245 = vpop.f32.mrb[0].mxu0
    %246 = vmatprep.mubr.f32.mxu0 0.0
    %247 = vmatmul.mubr.f32.gmra.mrb[0].mxu0 %v175
    %v248 = vpop.f32.mrb[0].mxu0
    %v249 = vadd.f32 %v168, %v248
    %v250 = vpop.f32.mrb[0].mxu0
    %251 = vdwg.mxu0
    %254 = vrot.lane.b32.xlu0 %v244, 96
    %v255 = vpop.permute.xlu0 %254
    %256 = vrot.lane.b32.xlu0 %v249, 96
    %v257 = vpop.permute.xlu0 %256
    %vm258 = vcmask 64512
    %v259 = vsel %vm258, %v244, 0
    %v261 = vsel %vm258, %v249, 0
    %v263 = vsel %vm258, %v255, 0
    %v265 = vsel %vm258, %v257, 0
    %267 = vmatprep.subr.mxu0 0.0
    %268 = vmatpush1.xpose.msra.mxu0 %v263
    %269 = vmatprep.subr.mxu0 0.0
    %270 = vmatpush1.xpose.msra.mxu0 %v265
    %271 = vmatprep.subr.mxu0 0.0
    %272 = vmatpush1.xpose.msra.mxu0 0.0
    %273 = vmatprep.subr.mxu0 0.0
    %274 = vmatpush1.xpose.msra.mxu0 0.0
    %275 = vmatprep.subr.mxu0 0.0
    %276 = vmatpush1.xpose.msra.mxu0 0.0
    %277 = vmatprep.subr.mxu0 0.0
    %278 = vmatpush1.xpose.msra.mxu0 0.0
    %279 = vmatprep.subr.mxu0 0.0
    %280 = vmatpush1.xpose.msra.mxu0 0.0
    %281 = vmatprep.subr.mxu0 0.0
    %282 = vmatpush1.xpose.msra.mxu0 0.0
    %283 = vmatprep.subr.mxu0 0.0
    %284 = vmatpush1.xpose.msra.mxu0 0.0
    %285 = vmatprep.subr.mxu0 0.0
    %286 = vmatpush1.xpose.msra.mxu0 0.0
    %287 = vmatprep.subr.mxu0 0.0
    %288 = vmatpush1.xpose.msra.mxu0 0.0
    %289 = vmatprep.subr.mxu0 0.0
    %290 = vmatpush1.xpose.msra.mxu0 0.0
    %291 = vmatprep.subr.mxu0 0.0
    %292 = vmatpush1.xpose.msra.mxu0 0.0
    %293 = vmatprep.subr.mxu0 0.0
    %294 = vmatpush1.xpose.msra.mxu0 0.0
    %295 = vmatprep.subr.mxu0 0.0
    %296 = vmatpush1.xpose.msra.mxu0 0.0
    %297 = vmatprep.subr.mxu0 0.0
    %298 = vmatpush1.xpose.msra.mxu0 0.0
    %299 = vmatprep.subr.mxu0 0.0
    %300 = vmatpush1.xpose.msra.mxu0 0.0
    %301 = vmatprep.subr.mxu0 0.0
    %302 = vmatpush1.xpose.msra.mxu0 0.0
    %303 = vmatprep.subr.mxu0 0.0
    %304 = vmatpush1.xpose.msra.mxu0 0.0
    %305 = vmatprep.subr.mxu0 0.0
    %306 = vmatpush1.xpose.msra.mxu0 0.0
    %307 = vmatprep.subr.mxu0 0.0
    %308 = vmatpush1.xpose.msra.mxu0 0.0
    %309 = vmatprep.subr.mxu0 0.0
    %310 = vmatpush1.xpose.msra.mxu0 0.0
    %311 = vmatprep.subr.mxu0 0.0
    %312 = vmatpush1.xpose.msra.mxu0 0.0
    %313 = vmatprep.subr.mxu0 0.0
    %314 = vmatpush1.xpose.msra.mxu0 0.0
    %315 = vmatprep.subr.mxu0 0.0
    %316 = vmatpush1.xpose.msra.mxu0 0.0
    %317 = vmatprep.subr.mxu0 0.0
    %318 = vmatpush1.xpose.msra.mxu0 0.0
    %319 = vmatprep.subr.mxu0 0.0
    %320 = vmatpush1.xpose.msra.mxu0 0.0
    %321 = vmatprep.subr.mxu0 0.0
    %322 = vmatpush1.xpose.msra.mxu0 0.0
    %323 = vmatprep.subr.mxu0 0.0
    %324 = vmatpush1.xpose.msra.mxu0 0.0
    %325 = vmatprep.subr.mxu0 0.0
    %326 = vmatpush1.xpose.msra.mxu0 0.0
    %327 = vmatprep.subr.mxu0 0.0
    %328 = vmatpush1.xpose.msra.mxu0 0.0
    %329 = vmatprep.subr.mxu0 0.0
    %330 = vmatpush1.xpose.msra.mxu0 0.0
    %331 = vmatprep.mubr.f32.mxu0 0.0
    %332 = vmatmul.mubr.f32.gmra.mrb[0].mxu0 %v259
    %v333 = vpop.f32.mrb[0].mxu0
    %v334 = vadd.f32 0.0, %v333
    %v335 = vpop.f32.mrb[0].mxu0
    %336 = vmatprep.mubr.f32.mxu0 0.0
    %337 = vmatmul.mubr.f32.gmra.mrb[0].mxu0 %v261
    %v338 = vpop.f32.mrb[0].mxu0
    %v339 = vadd.f32 0.0, %v338
    %v340 = vpop.f32.mrb[0].mxu0
    %341 = vdwg.mxu0
    %v342 = vmul.f32 %v334, 0.35355338
    %v343 = vmul.f32 %v339, 0.35355338
    %vm344 = vcmask 89088
    %v345 = vsel %vm344, %v342, -inf
    %346 = vmax.xlane.f32.xlu0 %v345
    %v347 = vpop.xlane.xlu0 %346
    %vm348 = vcmask 83968
    %v349 = vsel %vm348, %v343, -inf
    %350 = vmax.xlane.f32.xlu0 %v349
    %v351 = vpop.xlane.xlu0 %350
    %v352 = vsub.f32 %v342, %v347
    %v353 = vsub.f32 %v343, %v351
    %v354 = vmul.f32 %v352, 1.442695
    %v355 = vpow.pop %v354
    %v356 = vmul.f32 %v353, 1.442695
    %v357 = vpow.pop %v356
    %v358 = vsel %vm344, %v355, 0.0
    %359 = vadd.xlane.f32.xlu0 %v358
    %v360 = vpop.xlane.xlu0 %359
    %v361 = vsel %vm348, %v357, 0.0
    %362 = vadd.xlane.f32.xlu0 %v361
    %v363 = vpop.xlane.xlu0 %362
    %v364 = vrcp.pop %v360
    %v365 = vrcp.pop %v363
    %v366 = vmul.f32 %v355, %v364
    %v367 = vmul.f32 %v357, %v365
    %368 = vrot.lane.b32.xlu0 %v244, 64
    %v369 = vpop.permute.xlu0 %368
    %370 = vrot.lane.b32.xlu0 %v249, 64
    %v371 = vpop.permute.xlu0 %370
    %v374 = vsel %vm344, %v366, 0
    %v377 = vsel %vm344, %v367, 0
    %vm379 = vcmask 1042432
    %v380 = vsel %vm379, %v371, 0
    %382 = vmatprep.subr.mxu0 0.0
    %383 = vmatpush1.msra.mxu0 %v369
    %384 = vmatprep.subr.mxu0 0.0
    %385 = vmatpush1.msra.mxu0 %v380
    %386 = vmatprep.subr.mxu0 0.0
    %387 = vmatpush1.msra.mxu0 0.0
    %388 = vmatprep.subr.mxu0 0.0
    %389 = vmatpush1.msra.mxu0 0.0
    %390 = vmatprep.subr.mxu0 0.0
    %391 = vmatpush1.msra.mxu0 0.0
    %392 = vmatprep.subr.mxu0 0.0
    %393 = vmatpush1.msra.mxu0 0.0
    %394 = vmatprep.subr.mxu0 0.0
    %395 = vmatpush1.msra.mxu0 0.0
    %396 = vmatprep.subr.mxu0 0.0
    %397 = vmatpush1.msra.mxu0 0.0
    %398 = vmatprep.subr.mxu0 0.0
    %399 = vmatpush1.msra.mxu0 0.0
    %400 = vmatprep.subr.mxu0 0.0
    %401 = vmatpush1.msra.mxu0 0.0
    %402 = vmatprep.subr.mxu0 0.0
    %403 = vmatpush1.msra.mxu0 0.0
    %404 = vmatprep.subr.mxu0 0.0
    %405 = vmatpush1.msra.mxu0 0.0
    %406 = vmatprep.subr.mxu0 0.0
    %407 = vmatpush1.msra.mxu0 0.0
    %408 = vmatprep.subr.mxu0 0.0
    %409 = vmatpush1.msra.mxu0 0.0
    %410 = vmatprep.subr.mxu0 0.0
    %411 = vmatpush1.msra.mxu0 0.0
    %412 = vmatprep.subr.mxu0 0.0
    %413 = vmatpush1.msra.mxu0 0.0
    %414 = vmatprep.subr.mxu0 0.0
    %415 = vmatpush1.msra.mxu0 0.0
    %416 = vmatprep.subr.mxu0 0.0
    %417 = vmatpush1.msra.mxu0 0.0
    %418 = vmatprep.subr.mxu0 0.0
    %419 = vmatpush1.msra.mxu0 0.0
    %420 = vmatprep.subr.mxu0 0.0
    %421 = vmatpush1.msra.mxu0 0.0
    %422 = vmatprep.subr.mxu0 0.0
    %423 = vmatpush1.msra.mxu0 0.0
    %424 = vmatprep.subr.mxu0 0.0
    %425 = vmatpush1.msra.mxu0 0.0
    %426 = vmatprep.subr.mxu0 0.0
    %427 = vmatpush1.msra.mxu0 0.0
    %428 = vmatprep.subr.mxu0 0.0
    %429 = vmatpush1.msra.mxu0 0.0
    %430 = vmatprep.subr.mxu0 0.0
    %431 = vmatpush1.msra.mxu0 0.0
    %432 = vmatprep.subr.mxu0 0.0
    %433 = vmatpush1.msra.mxu0 0.0
    %434 = vmatprep.subr.mxu0 0.0
    %435 = vmatpush1.msra.mxu0 0.0
    %436 = vmatprep.subr.mxu0 0.0
    %437 = vmatpush1.msra.mxu0 0.0
    %438 = vmatprep.subr.mxu0 0.0
    %439 = vmatpush1.msra.mxu0 0.0
    %440 = vmatprep.subr.mxu0 0.0
    %441 = vmatpush1.msra.mxu0 0.0
    %442 = vmatprep.subr.mxu0 0.0
    %443 = vmatpush1.msra.mxu0 0.0
    %444 = vmatprep.subr.mxu0 0.0
    %445 = vmatpush1.msra.mxu0 0.0
    %446 = vmatprep.mubr.f32.mxu0 0.0
    %447 = vmatmul.mubr.f32.gmra.mrb[0].mxu0 %v374
    %v448 = vpop.f32.mrb[0].mxu0
    %v449 = vadd.f32 0.0, %v448
    %v450 = vpop.f32.mrb[0].mxu0
    %451 = vmatprep.mubr.f32.mxu0 0.0
    %452 = vmatmul.mubr.f32.gmra.mrb[0].mxu0 %v377
    %v453 = vpop.f32.mrb[0].mxu0
    %v454 = vadd.f32 0.0, %v453
    %v455 = vpop.f32.mrb[0].mxu0
    %456 = vdwg.mxu0
    %457 = vrot.lane.b32.xlu0 %v244, 120
    %v458 = vpop.permute.xlu0 %457
    %459 = vrot.lane.b32.xlu0 %v249, 120
    %v460 = vpop.permute.xlu0 %459
    %461 = vrot.lane.b32.xlu0 %v244, 88
    %v462 = vpop.permute.xlu0 %461
    %463 = vrot.lane.b32.xlu0 %v249, 88
    %v464 = vpop.permute.xlu0 %463
    %v465 = vsel %vm258, %v458, 0
    %v467 = vsel %vm258, %v460, 0
    %v469 = vsel %vm258, %v462, 0
    %v471 = vsel %vm258, %v464, 0
    %473 = vmatprep.subr.mxu0 0.0
    %474 = vmatpush1.xpose.msra.mxu0 %v469
    %475 = vmatprep.subr.mxu0 0.0
    %476 = vmatpush1.xpose.msra.mxu0 %v471
    %477 = vmatprep.subr.mxu0 0.0
    %478 = vmatpush1.xpose.msra.mxu0 0.0
    %479 = vmatprep.subr.mxu0 0.0
    %480 = vmatpush1.xpose.msra.mxu0 0.0
    %481 = vmatprep.subr.mxu0 0.0
    %482 = vmatpush1.xpose.msra.mxu0 0.0
    %483 = vmatprep.subr.mxu0 0.0
    %484 = vmatpush1.xpose.msra.mxu0 0.0
    %485 = vmatprep.subr.mxu0 0.0
    %486 = vmatpush1.xpose.msra.mxu0 0.0
    %487 = vmatprep.subr.mxu0 0.0
    %488 = vmatpush1.xpose.msra.mxu0 0.0
    %489 = vmatprep.subr.mxu0 0.0
    %490 = vmatpush1.xpose.msra.mxu0 0.0
    %491 = vmatprep.subr.mxu0 0.0
    %492 = vmatpush1.xpose.msra.mxu0 0.0
    %493 = vmatprep.subr.mxu0 0.0
    %494 = vmatpush1.xpose.msra.mxu0 0.0
    %495 = vmatprep.subr.mxu0 0.0
    %496 = vmatpush1.xpose.msra.mxu0 0.0
    %497 = vmatprep.subr.mxu0 0.0
    %498 = vmatpush1.xpose.msra.mxu0 0.0
    %499 = vmatprep.subr.mxu0 0.0
    %500 = vmatpush1.xpose.msra.mxu0 0.0
    %501 = vmatprep.subr.mxu0 0.0
    %502 = vmatpush1.xpose.msra.mxu0 0.0
    %503 = vmatprep.subr.mxu0 0.0
    %504 = vmatpush1.xpose.msra.mxu0 0.0
    %505 = vmatprep.subr.mxu0 0.0
    %506 = vmatpush1.xpose.msra.mxu0 0.0
    %507 = vmatprep.subr.mxu0 0.0
    %508 = vmatpush1.xpose.msra.mxu0 0.0
    %509 = vmatprep.subr.mxu0 0.0
    %510 = vmatpush1.xpose.msra.mxu0 0.0
    %511 = vmatprep.subr.mxu0 0.0
    %512 = vmatpush1.xpose.msra.mxu0 0.0
    %513 = vmatprep.subr.mxu0 0.0
    %514 = vmatpush1.xpose.msra.mxu0 0.0
    %515 = vmatprep.subr.mxu0 0.0
    %516 = vmatpush1.xpose.msra.mxu0 0.0
    %517 = vmatprep.subr.mxu0 0.0
    %518 = vmatpush1.xpose.msra.mxu0 0.0
    %519 = vmatprep.subr.mxu0 0.0
    %520 = vmatpush1.xpose.msra.mxu0 0.0
    %521 = vmatprep.subr.mxu0 0.0
    %522 = vmatpush1.xpose.msra.mxu0 0.0
    %523 = vmatprep.subr.mxu0 0.0
    %524 = vmatpush1.xpose.msra.mxu0 0.0
    %525 = vmatprep.subr.mxu0 0.0
    %526 = vmatpush1.xpose.msra.mxu0 0.0
    %527 = vmatprep.subr.mxu0 0.0
    %528 = vmatpush1.xpose.msra.mxu0 0.0
    %529 = vmatprep.subr.mxu0 0.0
    %530 = vmatpush1.xpose.msra.mxu0 0.0
    %531 = vmatprep.subr.mxu0 0.0
    %532 = vmatpush1.xpose.msra.mxu0 0.0
    %533 = vmatprep.subr.mxu0 0.0
    %534 = vmatpush1.xpose.msra.mxu0 0.0
    %535 = vmatprep.subr.mxu0 0.0
    %536 = vmatpush1.xpose.msra.mxu0 0.0
    %537 = vmatprep.mubr.f32.mxu0 0.0
    %538 = vmatmul.mubr.f32.gmra.mrb[0].mxu0 %v465
    %v539 = vpop.f32.mrb[0].mxu0
    %v540 = vadd.f32 0.0, %v539
    %v541 = vpop.f32.mrb[0].mxu0
    %542 = vmatprep.mubr.f32.mxu0 0.0
    %543 = vmatmul.mubr.f32.gmra.mrb[0].mxu0 %v467
    %v544 = vpop.f32.mrb[0].mxu0
    %v545 = vadd.f32 0.0, %v544
    %v546 = vpop.f32.mrb[0].mxu0
    %547 = vdwg.mxu0
    %v548 = vmul.f32 %v540, 0.35355338
    %v549 = vmul.f32 %v545, 0.35355338
    %v550 = vsel %vm344, %v548, -inf
    %551 = vmax.xlane.f32.xlu0 %v550
    %v552 = vpop.xlane.xlu0 %551
    %v553 = vsel %vm348, %v549, -inf
    %554 = vmax.xlane.f32.xlu0 %v553
    %v555 = vpop.xlane.xlu0 %554
    %v556 = vsub.f32 %v548, %v552
    %v557 = vsub.f32 %v549, %v555
    %v558 = vmul.f32 %v556, 1.442695
    %v559 = vpow.pop %v558
    %v560 = vmul.f32 %v557, 1.442695
    %v561 = vpow.pop %v560
    %v562 = vsel %vm344, %v559, 0.0
    %563 = vadd.xlane.f32.xlu0 %v562
    %v564 = vpop.xlane.xlu0 %563
    %v565 = vsel %vm348, %v561, 0.0
    %566 = vadd.xlane.f32.xlu0 %v565
    %v567 = vpop.xlane.xlu0 %566
    %v568 = vrcp.pop %v564
    %v569 = vrcp.pop %v567
    %v570 = vmul.f32 %v559, %v568
    %v571 = vmul.f32 %v561, %v569
    %572 = vrot.lane.b32.xlu0 %v244, 56
    %v573 = vpop.permute.xlu0 %572
    %574 = vrot.lane.b32.xlu0 %v249, 56
    %v575 = vpop.permute.xlu0 %574
    %v578 = vsel %vm344, %v570, 0
    %v581 = vsel %vm344, %v571, 0
    %v583 = vsel %vm379, %v575, 0
    %585 = vmatprep.subr.mxu0 0.0
    %586 = vmatpush1.msra.mxu0 %v573
    %587 = vmatprep.subr.mxu0 0.0
    %588 = vmatpush1.msra.mxu0 %v583
    %589 = vmatprep.subr.mxu0 0.0
    %590 = vmatpush1.msra.mxu0 0.0
    %591 = vmatprep.subr.mxu0 0.0
    %592 = vmatpush1.msra.mxu0 0.0
    %593 = vmatprep.subr.mxu0 0.0
    %594 = vmatpush1.msra.mxu0 0.0
    %595 = vmatprep.subr.mxu0 0.0
    %596 = vmatpush1.msra.mxu0 0.0
    %597 = vmatprep.subr.mxu0 0.0
    %598 = vmatpush1.msra.mxu0 0.0
    %599 = vmatprep.subr.mxu0 0.0
    %600 = vmatpush1.msra.mxu0 0.0
    %601 = vmatprep.subr.mxu0 0.0
    %602 = vmatpush1.msra.mxu0 0.0
    %603 = vmatprep.subr.mxu0 0.0
    %604 = vmatpush1.msra.mxu0 0.0
    %605 = vmatprep.subr.mxu0 0.0
    %606 = vmatpush1.msra.mxu0 0.0
    %607 = vmatprep.subr.mxu0 0.0
    %608 = vmatpush1.msra.mxu0 0.0
    %609 = vmatprep.subr.mxu0 0.0
    %610 = vmatpush1.msra.mxu0 0.0
    %611 = vmatprep.subr.mxu0 0.0
    %612 = vmatpush1.msra.mxu0 0.0
    %613 = vmatprep.subr.mxu0 0.0
    %614 = vmatpush1.msra.mxu0 0.0
    %615 = vmatprep.subr.mxu0 0.0
    %616 = vmatpush1.msra.mxu0 0.0
    %617 = vmatprep.subr.mxu0 0.0
    %618 = vmatpush1.msra.mxu0 0.0
    %619 = vmatprep.subr.mxu0 0.0
    %620 = vmatpush1.msra.mxu0 0.0
    %621 = vmatprep.subr.mxu0 0.0
    %622 = vmatpush1.msra.mxu0 0.0
    %623 = vmatprep.subr.mxu0 0.0
    %624 = vmatpush1.msra.mxu0 0.0
    %625 = vmatprep.subr.mxu0 0.0
    %626 = vmatpush1.msra.mxu0 0.0
    %627 = vmatprep.subr.mxu0 0.0
    %628 = vmatpush1.msra.mxu0 0.0
    %629 = vmatprep.subr.mxu0 0.0
    %630 = vmatpush1.msra.mxu0 0.0
    %631 = vmatprep.subr.mxu0 0.0
    %632 = vmatpush1.msra.mxu0 0.0
    %633 = vmatprep.subr.mxu0 0.0
    %634 = vmatpush1.msra.mxu0 0.0
    %635 = vmatprep.subr.mxu0 0.0
    %636 = vmatpush1.msra.mxu0 0.0
    %637 = vmatprep.subr.mxu0 0.0
    %638 = vmatpush1.msra.mxu0 0.0
    %639 = vmatprep.subr.mxu0 0.0
    %640 = vmatpush1.msra.mxu0 0.0
    %641 = vmatprep.subr.mxu0 0.0
    %642 = vmatpush1.msra.mxu0 0.0
    %643 = vmatprep.subr.mxu0 0.0
    %644 = vmatpush1.msra.mxu0 0.0
    %645 = vmatprep.subr.mxu0 0.0
    %646 = vmatpush1.msra.mxu0 0.0
    %647 = vmatprep.subr.mxu0 0.0
    %648 = vmatpush1.msra.mxu0 0.0
    %649 = vmatprep.mubr.f32.mxu0 0.0
    %650 = vmatmul.mubr.f32.gmra.mrb[0].mxu0 %v578
    %v651 = vpop.f32.mrb[0].mxu0
    %v652 = vadd.f32 0.0, %v651
    %v653 = vpop.f32.mrb[0].mxu0
    %654 = vmatprep.mubr.f32.mxu0 0.0
    %655 = vmatmul.mubr.f32.gmra.mrb[0].mxu0 %v581
    %v656 = vpop.f32.mrb[0].mxu0
    %v657 = vadd.f32 0.0, %v656
    %v658 = vpop.f32.mrb[0].mxu0
    %659 = vdwg.mxu0
    %660 = vrot.lane.b32.xlu0 %v244, 112
    %v661 = vpop.permute.xlu0 %660
    %662 = vrot.lane.b32.xlu0 %v249, 112
    %v663 = vpop.permute.xlu0 %662
    %664 = vrot.lane.b32.xlu0 %v244, 80
    %v665 = vpop.permute.xlu0 %664
    %666 = vrot.lane.b32.xlu0 %v249, 80
    %v667 = vpop.permute.xlu0 %666
    %v668 = vsel %vm258, %v661, 0
    %v670 = vsel %vm258, %v663, 0
    %v672 = vsel %vm258, %v665, 0
    %v674 = vsel %vm258, %v667, 0
    %676 = vmatprep.subr.mxu0 0.0
    %677 = vmatpush1.xpose.msra.mxu0 %v672
    %678 = vmatprep.subr.mxu0 0.0
    %679 = vmatpush1.xpose.msra.mxu0 %v674
    %680 = vmatprep.subr.mxu0 0.0
    %681 = vmatpush1.xpose.msra.mxu0 0.0
    %682 = vmatprep.subr.mxu0 0.0
    %683 = vmatpush1.xpose.msra.mxu0 0.0
    %684 = vmatprep.subr.mxu0 0.0
    %685 = vmatpush1.xpose.msra.mxu0 0.0
    %686 = vmatprep.subr.mxu0 0.0
    %687 = vmatpush1.xpose.msra.mxu0 0.0
    %688 = vmatprep.subr.mxu0 0.0
    %689 = vmatpush1.xpose.msra.mxu0 0.0
    %690 = vmatprep.subr.mxu0 0.0
    %691 = vmatpush1.xpose.msra.mxu0 0.0
    %692 = vmatprep.subr.mxu0 0.0
    %693 = vmatpush1.xpose.msra.mxu0 0.0
    %694 = vmatprep.subr.mxu0 0.0
    %695 = vmatpush1.xpose.msra.mxu0 0.0
    %696 = vmatprep.subr.mxu0 0.0
    %697 = vmatpush1.xpose.msra.mxu0 0.0
    %698 = vmatprep.subr.mxu0 0.0
    %699 = vmatpush1.xpose.msra.mxu0 0.0
    %700 = vmatprep.subr.mxu0 0.0
    %701 = vmatpush1.xpose.msra.mxu0 0.0
    %702 = vmatprep.subr.mxu0 0.0
    %703 = vmatpush1.xpose.msra.mxu0 0.0
    %704 = vmatprep.subr.mxu0 0.0
    %705 = vmatpush1.xpose.msra.mxu0 0.0
    %706 = vmatprep.subr.mxu0 0.0
    %707 = vmatpush1.xpose.msra.mxu0 0.0
    %708 = vmatprep.subr.mxu0 0.0
    %709 = vmatpush1.xpose.msra.mxu0 0.0
    %710 = vmatprep.subr.mxu0 0.0
    %711 = vmatpush1.xpose.msra.mxu0 0.0
    %712 = vmatprep.subr.mxu0 0.0
    %713 = vmatpush1.xpose.msra.mxu0 0.0
    %714 = vmatprep.subr.mxu0 0.0
    %715 = vmatpush1.xpose.msra.mxu0 0.0
    %716 = vmatprep.subr.mxu0 0.0
    %717 = vmatpush1.xpose.msra.mxu0 0.0
    %718 = vmatprep.subr.mxu0 0.0
    %719 = vmatpush1.xpose.msra.mxu0 0.0
    %720 = vmatprep.subr.mxu0 0.0
    %721 = vmatpush1.xpose.msra.mxu0 0.0
    %722 = vmatprep.subr.mxu0 0.0
    %723 = vmatpush1.xpose.msra.mxu0 0.0
    %724 = vmatprep.subr.mxu0 0.0
    %725 = vmatpush1.xpose.msra.mxu0 0.0
    %726 = vmatprep.subr.mxu0 0.0
    %727 = vmatpush1.xpose.msra.mxu0 0.0
    %728 = vmatprep.subr.mxu0 0.0
    %729 = vmatpush1.xpose.msra.mxu0 0.0
    %730 = vmatprep.subr.mxu0 0.0
    %731 = vmatpush1.xpose.msra.mxu0 0.0
    %732 = vmatprep.subr.mxu0 0.0
    %733 = vmatpush1.xpose.msra.mxu0 0.0
    %734 = vmatprep.subr.mxu0 0.0
    %735 = vmatpush1.xpose.msra.mxu0 0.0
    %736 = vmatprep.subr.mxu0 0.0
    %737 = vmatpush1.xpose.msra.mxu0 0.0
    %738 = vmatprep.subr.mxu0 0.0
    %739 = vmatpush1.xpose.msra.mxu0 0.0
    %740 = vmatprep.mubr.f32.mxu0 0.0
    %741 = vmatmul.mubr.f32.gmra.mrb[0].mxu0 %v668
    %v742 = vpop.f32.mrb[0].mxu0
    %v743 = vadd.f32 0.0, %v742
    %v744 = vpop.f32.mrb[0].mxu0
    %745 = vmatprep.mubr.f32.mxu0 0.0
    %746 = vmatmul.mubr.f32.gmra.mrb[0].mxu0 %v670
    %v747 = vpop.f32.mrb[0].mxu0
    %v748 = vadd.f32 0.0, %v747
    %v749 = vpop.f32.mrb[0].mxu0
    %750 = vdwg.mxu0
    %v751 = vmul.f32 %v743, 0.35355338
    %v752 = vmul.f32 %v748, 0.35355338
    %v753 = vsel %vm344, %v751, -inf
    %754 = vmax.xlane.f32.xlu0 %v753
    %v755 = vpop.xlane.xlu0 %754
    %v756 = vsel %vm348, %v752, -inf
    %757 = vmax.xlane.f32.xlu0 %v756
    %v758 = vpop.xlane.xlu0 %757
    %v759 = vsub.f32 %v751, %v755
    %v760 = vsub.f32 %v752, %v758
    %v761 = vmul.f32 %v759, 1.442695
    %v762 = vpow.pop %v761
    %v763 = vmul.f32 %v760, 1.442695
    %v764 = vpow.pop %v763
    %v765 = vsel %vm344, %v762, 0.0
    %766 = vadd.xlane.f32.xlu0 %v765
    %v767 = vpop.xlane.xlu0 %766
    %v768 = vsel %vm348, %v764, 0.0
    %769 = vadd.xlane.f32.xlu0 %v768
    %v770 = vpop.xlane.xlu0 %769
    %v771 = vrcp.pop %v767
    %v772 = vrcp.pop %v770
    %v773 = vmul.f32 %v762, %v771
    %v774 = vmul.f32 %v764, %v772
    %775 = vrot.lane.b32.xlu0 %v244, 48
    %v776 = vpop.permute.xlu0 %775
    %777 = vrot.lane.b32.xlu0 %v249, 48
    %v778 = vpop.permute.xlu0 %777
    %v781 = vsel %vm344, %v773, 0
    %v784 = vsel %vm344, %v774, 0
    %v786 = vsel %vm379, %v778, 0
    %788 = vmatprep.subr.mxu0 0.0
    %789 = vmatpush1.msra.mxu0 %v776
    %790 = vmatprep.subr.mxu0 0.0
    %791 = vmatpush1.msra.mxu0 %v786
    %792 = vmatprep.subr.mxu0 0.0
    %793 = vmatpush1.msra.mxu0 0.0
    %794 = vmatprep.subr.mxu0 0.0
    %795 = vmatpush1.msra.mxu0 0.0
    %796 = vmatprep.subr.mxu0 0.0
    %797 = vmatpush1.msra.mxu0 0.0
    %798 = vmatprep.subr.mxu0 0.0
    %799 = vmatpush1.msra.mxu0 0.0
    %800 = vmatprep.subr.mxu0 0.0
    %801 = vmatpush1.msra.mxu0 0.0
    %802 = vmatprep.subr.mxu0 0.0
    %803 = vmatpush1.msra.mxu0 0.0
    %804 = vmatprep.subr.mxu0 0.0
    %805 = vmatpush1.msra.mxu0 0.0
    %806 = vmatprep.subr.mxu0 0.0
    %807 = vmatpush1.msra.mxu0 0.0
    %808 = vmatprep.subr.mxu0 0.0
    %809 = vmatpush1.msra.mxu0 0.0
    %810 = vmatprep.subr.mxu0 0.0
    %811 = vmatpush1.msra.mxu0 0.0
    %812 = vmatprep.subr.mxu0 0.0
    %813 = vmatpush1.msra.mxu0 0.0
    %814 = vmatprep.subr.mxu0 0.0
    %815 = vmatpush1.msra.mxu0 0.0
    %816 = vmatprep.subr.mxu0 0.0
    %817 = vmatpush1.msra.mxu0 0.0
    %818 = vmatprep.subr.mxu0 0.0
    %819 = vmatpush1.msra.mxu0 0.0
    %820 = vmatprep.subr.mxu0 0.0
    %821 = vmatpush1.msra.mxu0 0.0
    %822 = vmatprep.subr.mxu0 0.0
    %823 = vmatpush1.msra.mxu0 0.0
    %824 = vmatprep.subr.mxu0 0.0
    %825 = vmatpush1.msra.mxu0 0.0
    %826 = vmatprep.subr.mxu0 0.0
    %827 = vmatpush1.msra.mxu0 0.0
    %828 = vmatprep.subr.mxu0 0.0
    %829 = vmatpush1.msra.mxu0 0.0
    %830 = vmatprep.subr.mxu0 0.0
    %831 = vmatpush1.msra.mxu0 0.0
    %832 = vmatprep.subr.mxu0 0.0
    %833 = vmatpush1.msra.mxu0 0.0
    %834 = vmatprep.subr.mxu0 0.0
    %835 = vmatpush1.msra.mxu0 0.0
    %836 = vmatprep.subr.mxu0 0.0
    %837 = vmatpush1.msra.mxu0 0.0
    %838 = vmatprep.subr.mxu0 0.0
    %839 = vmatpush1.msra.mxu0 0.0
    %840 = vmatprep.subr.mxu0 0.0
    %841 = vmatpush1.msra.mxu0 0.0
    %842 = vmatprep.subr.mxu0 0.0
    %843 = vmatpush1.msra.mxu0 0.0
    %844 = vmatprep.subr.mxu0 0.0
    %845 = vmatpush1.msra.mxu0 0.0
    %846 = vmatprep.subr.mxu0 0.0
    %847 = vmatpush1.msra.mxu0 0.0
    %848 = vmatprep.subr.mxu0 0.0
    %849 = vmatpush1.msra.mxu0 0.0
    %850 = vmatprep.subr.mxu0 0.0
    %851 = vmatpush1.msra.mxu0 0.0
    %852 = vmatprep.mubr.f32.mxu0 0.0
    %853 = vmatmul.mubr.f32.gmra.mrb[0].mxu0 %v781
    %v854 = vpop.f32.mrb[0].mxu0
    %v855 = vadd.f32 0.0, %v854
    %v856 = vpop.f32.mrb[0].mxu0
    %857 = vmatprep.mubr.f32.mxu0 0.0
    %858 = vmatmul.mubr.f32.gmra.mrb[0].mxu0 %v784
    %v859 = vpop.f32.mrb[0].mxu0
    %v860 = vadd.f32 0.0, %v859
    %v861 = vpop.f32.mrb[0].mxu0
    %862 = vdwg.mxu0
    %863 = vrot.lane.b32.xlu0 %v244, 104
    %v864 = vpop.permute.xlu0 %863
    %865 = vrot.lane.b32.xlu0 %v249, 104
    %v866 = vpop.permute.xlu0 %865
    %867 = vrot.lane.b32.xlu0 %v244, 72
    %v868 = vpop.permute.xlu0 %867
    %869 = vrot.lane.b32.xlu0 %v249, 72
    %v870 = vpop.permute.xlu0 %869
    %v871 = vsel %vm258, %v864, 0
    %v873 = vsel %vm258, %v866, 0
    %v875 = vsel %vm258, %v868, 0
    %v877 = vsel %vm258, %v870, 0
    %879 = vmatprep.subr.mxu0 0.0
    %880 = vmatpush1.xpose.msra.mxu0 %v875
    %881 = vmatprep.subr.mxu0 0.0
    %882 = vmatpush1.xpose.msra.mxu0 %v877
    %883 = vmatprep.subr.mxu0 0.0
    %884 = vmatpush1.xpose.msra.mxu0 0.0
    %885 = vmatprep.subr.mxu0 0.0
    %886 = vmatpush1.xpose.msra.mxu0 0.0
    %887 = vmatprep.subr.mxu0 0.0
    %888 = vmatpush1.xpose.msra.mxu0 0.0
    %889 = vmatprep.subr.mxu0 0.0
    %890 = vmatpush1.xpose.msra.mxu0 0.0
    %891 = vmatprep.subr.mxu0 0.0
    %892 = vmatpush1.xpose.msra.mxu0 0.0
    %893 = vmatprep.subr.mxu0 0.0
    %894 = vmatpush1.xpose.msra.mxu0 0.0
    %895 = vmatprep.subr.mxu0 0.0
    %896 = vmatpush1.xpose.msra.mxu0 0.0
    %897 = vmatprep.subr.mxu0 0.0
    %898 = vmatpush1.xpose.msra.mxu0 0.0
    %899 = vmatprep.subr.mxu0 0.0
    %900 = vmatpush1.xpose.msra.mxu0 0.0
    %901 = vmatprep.subr.mxu0 0.0
    %902 = vmatpush1.xpose.msra.mxu0 0.0
    %903 = vmatprep.subr.mxu0 0.0
    %904 = vmatpush1.xpose.msra.mxu0 0.0
    %905 = vmatprep.subr.mxu0 0.0
    %906 = vmatpush1.xpose.msra.mxu0 0.0
    %907 = vmatprep.subr.mxu0 0.0
    %908 = vmatpush1.xpose.msra.mxu0 0.0
    %909 = vmatprep.subr.mxu0 0.0
    %910 = vmatpush1.xpose.msra.mxu0 0.0
    %911 = vmatprep.subr.mxu0 0.0
    %912 = vmatpush1.xpose.msra.mxu0 0.0
    %913 = vmatprep.subr.mxu0 0.0
    %914 = vmatpush1.xpose.msra.mxu0 0.0
    %915 = vmatprep.subr.mxu0 0.0
    %916 = vmatpush1.xpose.msra.mxu0 0.0
    %917 = vmatprep.subr.mxu0 0.0
    %918 = vmatpush1.xpose.msra.mxu0 0.0
    %919 = vmatprep.subr.mxu0 0.0
    %920 = vmatpush1.xpose.msra.mxu0 0.0
    %921 = vmatprep.subr.mxu0 0.0
    %922 = vmatpush1.xpose.msra.mxu0 0.0
    %923 = vmatprep.subr.mxu0 0.0
    %924 = vmatpush1.xpose.msra.mxu0 0.0
    %925 = vmatprep.subr.mxu0 0.0
    %926 = vmatpush1.xpose.msra.mxu0 0.0
    %927 = vmatprep.subr.mxu0 0.0
    %928 = vmatpush1.xpose.msra.mxu0 0.0
    %929 = vmatprep.subr.mxu0 0.0
    %930 = vmatpush1.xpose.msra.mxu0 0.0
    %931 = vmatprep.subr.mxu0 0.0
    %932 = vmatpush1.xpose.msra.mxu0 0.0
    %933 = vmatprep.subr.mxu0 0.0
    %934 = vmatpush1.xpose.msra.mxu0 0.0
    %935 = vmatprep.subr.mxu0 0.0
    %936 = vmatpush1.xpose.msra.mxu0 0.0
    %937 = vmatprep.subr.mxu0 0.0
    %938 = vmatpush1.xpose.msra.mxu0 0.0
    %939 = vmatprep.subr.mxu0 0.0
    %940 = vmatpush1.xpose.msra.mxu0 0.0
    %941 = vmatprep.subr.mxu0 0.0
    %942 = vmatpush1.xpose.msra.mxu0 0.0
    %943 = vmatprep.mubr.f32.mxu0 0.0
    %944 = vmatmul.mubr.f32.gmra.mrb[0].mxu0 %v871
    %v945 = vpop.f32.mrb[0].mxu0
    %v946 = vadd.f32 0.0, %v945
    %v947 = vpop.f32.mrb[0].mxu0
    %948 = vmatprep.mubr.f32.mxu0 0.0
    %949 = vmatmul.mubr.f32.gmra.mrb[0].mxu0 %v873
    %v950 = vpop.f32.mrb[0].mxu0
    %v951 = vadd.f32 0.0, %v950
    %v952 = vpop.f32.mrb[0].mxu0
    %953 = vdwg.mxu0
    %v954 = vmul.f32 %v946, 0.35355338
    %v955 = vmul.f32 %v951, 0.35355338
    %v956 = vsel %vm344, %v954, -inf
    %957 = vmax.xlane.f32.xlu0 %v956
    %v958 = vpop.xlane.xlu0 %957
    %v959 = vsel %vm348, %v955, -inf
    %960 = vmax.xlane.f32.xlu0 %v959
    %v961 = vpop.xlane.xlu0 %960
    %v962 = vsub.f32 %v954, %v958
    %v963 = vsub.f32 %v955, %v961
    %v964 = vmul.f32 %v962, 1.442695
    %v965 = vpow.pop %v964
    %v966 = vmul.f32 %v963, 1.442695
    %v967 = vpow.pop %v966
    %v968 = vsel %vm344, %v965, 0.0
    %969 = vadd.xlane.f32.xlu0 %v968
    %v970 = vpop.xlane.xlu0 %969
    %v971 = vsel %vm348, %v967, 0.0
    %972 = vadd.xlane.f32.xlu0 %v971
    %v973 = vpop.xlane.xlu0 %972
    %v974 = vrcp.pop %v970
    %v975 = vrcp.pop %v973
    %v976 = vmul.f32 %v965, %v974
    %v977 = vmul.f32 %v967, %v975
    %978 = vrot.lane.b32.xlu0 %v244, 40
    %v979 = vpop.permute.xlu0 %978
    %980 = vrot.lane.b32.xlu0 %v249, 40
    %v981 = vpop.permute.xlu0 %980
    %v984 = vsel %vm344, %v976, 0
    %v987 = vsel %vm344, %v977, 0
    %v989 = vsel %vm379, %v981, 0
    %991 = vmatprep.subr.mxu0 0.0
    %992 = vmatpush1.msra.mxu0 %v979
    %993 = vmatprep.subr.mxu0 0.0
    %994 = vmatpush1.msra.mxu0 %v989
    %995 = vmatprep.subr.mxu0 0.0
    %996 = vmatpush1.msra.mxu0 0.0
    %997 = vmatprep.subr.mxu0 0.0
    %998 = vmatpush1.msra.mxu0 0.0
    %999 = vmatprep.subr.mxu0 0.0
    %1000 = vmatpush1.msra.mxu0 0.0
    %1001 = vmatprep.subr.mxu0 0.0
    %1002 = vmatpush1.msra.mxu0 0.0
    %1003 = vmatprep.subr.mxu0 0.0
    %1004 = vmatpush1.msra.mxu0 0.0
    %1005 = vmatprep.subr.mxu0 0.0
    %1006 = vmatpush1.msra.mxu0 0.0
    %1007 = vmatprep.subr.mxu0 0.0
    %1008 = vmatpush1.msra.mxu0 0.0
    %1009 = vmatprep.subr.mxu0 0.0
    %1010 = vmatpush1.msra.mxu0 0.0
    %1011 = vmatprep.subr.mxu0 0.0
    %1012 = vmatpush1.msra.mxu0 0.0
    %1013 = vmatprep.subr.mxu0 0.0
    %1014 = vmatpush1.msra.mxu0 0.0
    %1015 = vmatprep.subr.mxu0 0.0
    %1016 = vmatpush1.msra.mxu0 0.0
    %1017 = vmatprep.subr.mxu0 0.0
    %1018 = vmatpush1.msra.mxu0 0.0
    %1019 = vmatprep.subr.mxu0 0.0
    %1020 = vmatpush1.msra.mxu0 0.0
    %1021 = vmatprep.subr.mxu0 0.0
    %1022 = vmatpush1.msra.mxu0 0.0
    %1023 = vmatprep.subr.mxu0 0.0
    %1024 = vmatpush1.msra.mxu0 0.0
    %1025 = vmatprep.subr.mxu0 0.0
    %1026 = vmatpush1.msra.mxu0 0.0
    %1027 = vmatprep.subr.mxu0 0.0
    %1028 = vmatpush1.msra.mxu0 0.0
    %1029 = vmatprep.subr.mxu0 0.0
    %1030 = vmatpush1.msra.mxu0 0.0
    %1031 = vmatprep.subr.mxu0 0.0
    %1032 = vmatpush1.msra.mxu0 0.0
    %1033 = vmatprep.subr.mxu0 0.0
    %1034 = vmatpush1.msra.mxu0 0.0
    %1035 = vmatprep.subr.mxu0 0.0
    %1036 = vmatpush1.msra.mxu0 0.0
    %1037 = vmatprep.subr.mxu0 0.0
    %1038 = vmatpush1.msra.mxu0 0.0
    %1039 = vmatprep.subr.mxu0 0.0
    %1040 = vmatpush1.msra.mxu0 0.0
    %1041 = vmatprep.subr.mxu0 0.0
    %1042 = vmatpush1.msra.mxu0 0.0
    %1043 = vmatprep.subr.mxu0 0.0
    %1044 = vmatpush1.msra.mxu0 0.0
    %1045 = vmatprep.subr.mxu0 0.0
    %1046 = vmatpush1.msra.mxu0 0.0
    %1047 = vmatprep.subr.mxu0 0.0
    %1048 = vmatpush1.msra.mxu0 0.0
    %1049 = vmatprep.subr.mxu0 0.0
    %1050 = vmatpush1.msra.mxu0 0.0
    %1051 = vmatprep.subr.mxu0 0.0
    %1052 = vmatpush1.msra.mxu0 0.0
    %1053 = vmatprep.subr.mxu0 0.0
    %1054 = vmatpush1.msra.mxu0 0.0
    %1055 = vmatprep.mubr.f32.mxu0 0.0
    %1056 = vmatmul.mubr.f32.gmra.mrb[0].mxu0 %v984
    %v1057 = vpop.f32.mrb[0].mxu0
    %v1058 = vadd.f32 0.0, %v1057
    %v1059 = vpop.f32.mrb[0].mxu0
    %1060 = vmatprep.mubr.f32.mxu0 0.0
    %1061 = vmatmul.mubr.f32.gmra.mrb[0].mxu0 %v987
    %v1062 = vpop.f32.mrb[0].mxu0
    %v1063 = vadd.f32 0.0, %v1062
    %v1064 = vpop.f32.mrb[0].mxu0
    %1065 = vdwg.mxu0
    %1068 = vrot.lane.b32.xlu0 %v652, 8
    %v1069 = vpop.permute.xlu0 %1068
    %1070 = vrot.lane.b32.xlu0 %v657, 8
    %v1071 = vpop.permute.xlu0 %1070
    %1076 = vrot.lane.b32.xlu0 %v855, 16
    %v1077 = vpop.permute.xlu0 %1076
    %1078 = vrot.lane.b32.xlu0 %v860, 16
    %v1079 = vpop.permute.xlu0 %1078
    %1084 = vrot.lane.b32.xlu0 %v1058, 24
    %v1085 = vpop.permute.xlu0 %1084
    %1086 = vrot.lane.b32.xlu0 %v1063, 24
    %v1087 = vpop.permute.xlu0 %1086
    %v1090 = vsel %vm258, %v449, %v1069
    %v1091 = vsel %vm258, %v454, %v1071
    %vm1092 = vcmask 130048
    %v1093 = vsel %vm1092, %v1090, %v1077
    %v1094 = vsel %vm1092, %v1091, %v1079
    %vm1095 = vcmask 195584
    %v1096 = vsel %vm1095, %v1093, %v1085
    %v1097 = vsel %vm1095, %v1094, %v1087
    %v1098 = vld [vmem:[%s5] sm:$0xff]
    %v1099 = vld [vmem:[%s5 + $0x8] sm:$0xff]
    %v1100 = vld [vmem:[%s5 + $0x10] sm:$0xff]
    %v1101 = vld [vmem:[%s5 + $0x18] sm:$0xff]
    %v1102 = vld [vmem:[%s6] sm:$0x1]
    %v1104 = vlaneseq
    %v1105 = vshrl.u32 %v1104, 7
    %v1106 = vsub.s32 0, %v1105
    %v1107 = vrot.slane %v1102, %v1106
    %v1110 = vsel %vm170, %v1096, 0
    %v1113 = vsel %vm170, %v1097, 0
    %1115 = vmatprep.subr.mxu0 0.0
    %1116 = vmatpush1.msra.mxu0 %v1098
    %1117 = vmatprep.subr.mxu0 0.0
    %1118 = vmatpush1.msra.mxu0 %v1099
    %1119 = vmatprep.subr.mxu0 0.0
    %1120 = vmatpush1.msra.mxu0 %v1100
    %1121 = vmatprep.subr.mxu0 0.0
    %1122 = vmatpush1.msra.mxu0 %v1101
    %1123 = vmatprep.subr.mxu0 0.0
    %1124 = vmatpush1.msra.mxu0 0.0
    %1125 = vmatprep.subr.mxu0 0.0
    %1126 = vmatpush1.msra.mxu0 0.0
    %1127 = vmatprep.subr.mxu0 0.0
    %1128 = vmatpush1.msra.mxu0 0.0
    %1129 = vmatprep.subr.mxu0 0.0
    %1130 = vmatpush1.msra.mxu0 0.0
    %1131 = vmatprep.subr.mxu0 0.0
    %1132 = vmatpush1.msra.mxu0 0.0
    %1133 = vmatprep.subr.mxu0 0.0
    %1134 = vmatpush1.msra.mxu0 0.0
    %1135 = vmatprep.subr.mxu0 0.0
    %1136 = vmatpush1.msra.mxu0 0.0
    %1137 = vmatprep.subr.mxu0 0.0
    %1138 = vmatpush1.msra.mxu0 0.0
    %1139 = vmatprep.subr.mxu0 0.0
    %1140 = vmatpush1.msra.mxu0 0.0
    %1141 = vmatprep.subr.mxu0 0.0
    %1142 = vmatpush1.msra.mxu0 0.0
    %1143 = vmatprep.subr.mxu0 0.0
    %1144 = vmatpush1.msra.mxu0 0.0
    %1145 = vmatprep.subr.mxu0 0.0
    %1146 = vmatpush1.msra.mxu0 0.0
    %1147 = vmatprep.subr.mxu0 0.0
    %1148 = vmatpush1.msra.mxu0 0.0
    %1149 = vmatprep.subr.mxu0 0.0
    %1150 = vmatpush1.msra.mxu0 0.0
    %1151 = vmatprep.subr.mxu0 0.0
    %1152 = vmatpush1.msra.mxu0 0.0
    %1153 = vmatprep.subr.mxu0 0.0
    %1154 = vmatpush1.msra.mxu0 0.0
    %1155 = vmatprep.subr.mxu0 0.0
    %1156 = vmatpush1.msra.mxu0 0.0
    %1157 = vmatprep.subr.mxu0 0.0
    %1158 = vmatpush1.msra.mxu0 0.0
    %1159 = vmatprep.subr.mxu0 0.0
    %1160 = vmatpush1.msra.mxu0 0.0
    %1161 = vmatprep.subr.mxu0 0.0
    %1162 = vmatpush1.msra.mxu0 0.0
    %1163 = vmatprep.subr.mxu0 0.0
    %1164 = vmatpush1.msra.mxu0 0.0
    %1165 = vmatprep.subr.mxu0 0.0
    %1166 = vmatpush1.msra.mxu0 0.0
    %1167 = vmatprep.subr.mxu0 0.0
    %1168 = vmatpush1.msra.mxu0 0.0
    %1169 = vmatprep.subr.mxu0 0.0
    %1170 = vmatpush1.msra.mxu0 0.0
    %1171 = vmatprep.subr.mxu0 0.0
    %1172 = vmatpush1.msra.mxu0 0.0
    %1173 = vmatprep.subr.mxu0 0.0
    %1174 = vmatpush1.msra.mxu0 0.0
    %1175 = vmatprep.subr.mxu0 0.0
    %1176 = vmatpush1.msra.mxu0 0.0
    %1177 = vmatprep.subr.mxu0 0.0
    %1178 = vmatpush1.msra.mxu0 0.0
    %1179 = vmatprep.mubr.f32.mxu0 0.0
    %1180 = vmatmul.mubr.f32.gmra.mrb[0].mxu0 %v1110
    %v1181 = vpop.f32.mrb[0].mxu0
    %v1182 = vadd.f32 %v1107, %v1181
    %v1183 = vpop.f32.mrb[0].mxu0
    %1184 = vmatprep.mubr.f32.mxu0 0.0
    %1185 = vmatmul.mubr.f32.gmra.mrb[0].mxu0 %v1113
    %v1186 = vpop.f32.mrb[0].mxu0
    %v1187 = vadd.f32 %v1107, %v1186
    %v1188 = vpop.f32.mrb[0].mxu0
    %1189 = vdwg.mxu0
    %v1191 = vsel %vm344, %v64, 0
    %v1194 = vsel %vm344, %v65, 0
    %v1197 = vsel %vm379, %v1187, 0
    %1199 = vmatprep.subr.mxu0 0.0
    %1200 = vmatpush1.msra.mxu0 %v1182
    %1201 = vmatprep.subr.mxu0 0.0
    %1202 = vmatpush1.msra.mxu0 %v1197
    %1203 = vmatprep.subr.mxu0 0.0
    %1204 = vmatpush1.msra.mxu0 0.0
    %1205 = vmatprep.subr.mxu0 0.0
    %1206 = vmatpush1.msra.mxu0 0.0
    %1207 = vmatprep.subr.mxu0 0.0
    %1208 = vmatpush1.msra.mxu0 0.0
    %1209 = vmatprep.subr.mxu0 0.0
    %1210 = vmatpush1.msra.mxu0 0.0
    %1211 = vmatprep.subr.mxu0 0.0
    %1212 = vmatpush1.msra.mxu0 0.0
    %1213 = vmatprep.subr.mxu0 0.0
    %1214 = vmatpush1.msra.mxu0 0.0
    %1215 = vmatprep.subr.mxu0 0.0
    %1216 = vmatpush1.msra.mxu0 0.0
    %1217 = vmatprep.subr.mxu0 0.0
    %1218 = vmatpush1.msra.mxu0 0.0
    %1219 = vmatprep.subr.mxu0 0.0
    %1220 = vmatpush1.msra.mxu0 0.0
    %1221 = vmatprep.subr.mxu0 0.0
    %1222 = vmatpush1.msra.mxu0 0.0
    %1223 = vmatprep.subr.mxu0 0.0
    %1224 = vmatpush1.msra.mxu0 0.0
    %1225 = vmatprep.subr.mxu0 0.0
    %1226 = vmatpush1.msra.mxu0 0.0
    %1227 = vmatprep.subr.mxu0 0.0
    %1228 = vmatpush1.msra.mxu0 0.0
    %1229 = vmatprep.subr.mxu0 0.0
    %1230 = vmatpush1.msra.mxu0 0.0
    %1231 = vmatprep.subr.mxu0 0.0
    %1232 = vmatpush1.msra.mxu0 0.0
    %1233 = vmatprep.subr.mxu0 0.0
    %1234 = vmatpush1.msra.mxu0 0.0
    %1235 = vmatprep.subr.mxu0 0.0
    %1236 = vmatpush1.msra.mxu0 0.0
    %1237 = vmatprep.subr.mxu0 0.0
    %1238 = vmatpush1.msra.mxu0 0.0
    %1239 = vmatprep.subr.mxu0 0.0
    %1240 = vmatpush1.msra.mxu0 0.0
    %1241 = vmatprep.subr.mxu0 0.0
    %1242 = vmatpush1.msra.mxu0 0.0
    %1243 = vmatprep.subr.mxu0 0.0
    %1244 = vmatpush1.msra.mxu0 0.0
    %1245 = vmatprep.subr.mxu0 0.0
    %1246 = vmatpush1.msra.mxu0 0.0
    %1247 = vmatprep.subr.mxu0 0.0
    %1248 = vmatpush1.msra.mxu0 0.0
    %1249 = vmatprep.subr.mxu0 0.0
    %1250 = vmatpush1.msra.mxu0 0.0
    %1251 = vmatprep.subr.mxu0 0.0
    %1252 = vmatpush1.msra.mxu0 0.0
    %1253 = vmatprep.subr.mxu0 0.0
    %1254 = vmatpush1.msra.mxu0 0.0
    %1255 = vmatprep.subr.mxu0 0.0
    %1256 = vmatpush1.msra.mxu0 0.0
    %1257 = vmatprep.subr.mxu0 0.0
    %1258 = vmatpush1.msra.mxu0 0.0
    %1259 = vmatprep.subr.mxu0 0.0
    %1260 = vmatpush1.msra.mxu0 0.0
    %1261 = vmatprep.subr.mxu0 0.0
    %1262 = vmatpush1.msra.mxu0 0.0
    %1263 = vmatprep.mubr.f32.mxu0 0.0
    %1264 = vmatmul.mubr.f32.gmra.mrb[0].mxu0 %v1191
    %v1265 = vpop.f32.mrb[0].mxu0
    %v1266 = vadd.f32 0.0, %v1265
    %v1267 = vpop.f32.mrb[0].mxu0
    %1268 = vmatprep.mubr.f32.mxu0 0.0
    %1269 = vmatmul.mubr.f32.gmra.mrb[0].mxu0 %v1194
    %v1270 = vpop.f32.mrb[0].mxu0
    %v1271 = vadd.f32 0.0, %v1270
    %v1272 = vpop.f32.mrb[0].mxu0
    %1273 = vdwg.mxu0
    %v1274 = vld [vmem:[%s9] sm:$0xff]
    %v1275 = vld [vmem:[%s10] sm:$0xff]
    %v1276 = vmul.f32 %v1266, %v1274
    %v1277 = vmul.f32 %v1271, %v1275
    %v1278 = vsub.f32 %v1276, %v1277
    %v1279 = vmul.f32 %v1266, %v1275
    %v1280 = vmul.f32 %v1271, %v1274
    %v1281 = vadd.f32 %v1279, %v1280
    %v1282 = vld [vmem:[%s11] sm:$0x1]
    %v1284 = vlaneseq
    %v1285 = vshrl.u32 %v1284, 7
    %v1286 = vsub.s32 0, %v1285
    %v1287 = vrot.slane %v1282, %v1286
    %v1290 = vsel %vm1092, %v66, 0
    %v1293 = vsel %vm1092, %v67, 0
    %1295 = vmatprep.subr.mxu0 0.0
    %1296 = vmatpush1.msra.mxu0 %v1278
    %1297 = vmatprep.subr.mxu0 0.0
    %1298 = vmatpush1.msra.mxu0 %v1281
    %1299 = vmatprep.subr.mxu0 0.0
    %1300 = vmatpush1.msra.mxu0 0.0
    %1301 = vmatprep.subr.mxu0 0.0
    %1302 = vmatpush1.msra.mxu0 0.0
    %1303 = vmatprep.subr.mxu0 0.0
    %1304 = vmatpush1.msra.mxu0 0.0
    %1305 = vmatprep.subr.mxu0 0.0
    %1306 = vmatpush1.msra.mxu0 0.0
    %1307 = vmatprep.subr.mxu0 0.0
    %1308 = vmatpush1.msra.mxu0 0.0
    %1309 = vmatprep.subr.mxu0 0.0
    %1310 = vmatpush1.msra.mxu0 0.0
    %1311 = vmatprep.subr.mxu0 0.0
    %1312 = vmatpush1.msra.mxu0 0.0
    %1313 = vmatprep.subr.mxu0 0.0
    %1314 = vmatpush1.msra.mxu0 0.0
    %1315 = vmatprep.subr.mxu0 0.0
    %1316 = vmatpush1.msra.mxu0 0.0
    %1317 = vmatprep.subr.mxu0 0.0
    %1318 = vmatpush1.msra.mxu0 0.0
    %1319 = vmatprep.subr.mxu0 0.0
    %1320 = vmatpush1.msra.mxu0 0.0
    %1321 = vmatprep.subr.mxu0 0.0
    %1322 = vmatpush1.msra.mxu0 0.0
    %1323 = vmatprep.subr.mxu0 0.0
    %1324 = vmatpush1.msra.mxu0 0.0
    %1325 = vmatprep.subr.mxu0 0.0
    %1326 = vmatpush1.msra.mxu0 0.0
    %1327 = vmatprep.subr.mxu0 0.0
    %1328 = vmatpush1.msra.mxu0 0.0
    %1329 = vmatprep.subr.mxu0 0.0
    %1330 = vmatpush1.msra.mxu0 0.0
    %1331 = vmatprep.subr.mxu0 0.0
    %1332 = vmatpush1.msra.mxu0 0.0
    %1333 = vmatprep.subr.mxu0 0.0
    %1334 = vmatpush1.msra.mxu0 0.0
    %1335 = vmatprep.subr.mxu0 0.0
    %1336 = vmatpush1.msra.mxu0 0.0
    %1337 = vmatprep.subr.mxu0 0.0
    %1338 = vmatpush1.msra.mxu0 0.0
    %1339 = vmatprep.subr.mxu0 0.0
    %1340 = vmatpush1.msra.mxu0 0.0
    %1341 = vmatprep.subr.mxu0 0.0
    %1342 = vmatpush1.msra.mxu0 0.0
    %1343 = vmatprep.subr.mxu0 0.0
    %1344 = vmatpush1.msra.mxu0 0.0
    %1345 = vmatprep.subr.mxu0 0.0
    %1346 = vmatpush1.msra.mxu0 0.0
    %1347 = vmatprep.subr.mxu0 0.0
    %1348 = vmatpush1.msra.mxu0 0.0
    %1349 = vmatprep.subr.mxu0 0.0
    %1350 = vmatpush1.msra.mxu0 0.0
    %1351 = vmatprep.subr.mxu0 0.0
    %1352 = vmatpush1.msra.mxu0 0.0
    %1353 = vmatprep.subr.mxu0 0.0
    %1354 = vmatpush1.msra.mxu0 0.0
    %1355 = vmatprep.subr.mxu0 0.0
    %1356 = vmatpush1.msra.mxu0 0.0
    %1357 = vmatprep.subr.mxu0 0.0
    %1358 = vmatpush1.msra.mxu0 0.0
    %1359 = vmatprep.mubr.f32.mxu0 0.0
    %1360 = vmatmul.mubr.f32.gmra.mrb[0].mxu0 %v1290
    %v1361 = vpop.f32.mrb[0].mxu0
    %v1362 = vadd.f32 %v1287, %v1361
    %v1363 = vpop.f32.mrb[0].mxu0
    %1364 = vmatprep.mubr.f32.mxu0 0.0
    %1365 = vmatmul.mubr.f32.gmra.mrb[0].mxu0 %v1293
    %v1366 = vpop.f32.mrb[0].mxu0
    %v1367 = vadd.f32 %v1287, %v1366
    %v1368 = vpop.f32.mrb[0].mxu0
    %1369 = vdwg.mxu0
    %v1370 = vadd.f32 %v1362, %v1182
    %v1371 = vadd.f32 %v1367, %v1187
    %s1372 = scalar_lea.vmem %s3, 32
    %v1373 = vld [vmem:[%s1372] sm:$0xff]
    %v1374 = vld [vmem:[%s1372 + $0x8] sm:$0xff]
    %v1375 = vld [vmem:[%s1372 + $0x10] sm:$0xff]
    %v1376 = vld [vmem:[%s1372 + $0x18] sm:$0xff]
    %s1377 = scalar_lea.vmem %s4, 1
    %v1378 = vld [vmem:[%s1377] sm:$0x1]
    %v1380 = vlaneseq
    %v1381 = vshrl.u32 %v1380, 7
    %v1382 = vsub.s32 0, %v1381
    %v1383 = vrot.slane %v1378, %v1382
    %v1386 = vsel %vm170, %v1370, 0
    %v1389 = vsel %vm170, %v1371, 0
    %1391 = vmatprep.subr.mxu0 0.0
    %1392 = vmatpush1.msra.mxu0 %v1373
    %1393 = vmatprep.subr.mxu0 0.0
    %1394 = vmatpush1.msra.mxu0 %v1374
    %1395 = vmatprep.subr.mxu0 0.0
    %1396 = vmatpush1.msra.mxu0 %v1375
    %1397 = vmatprep.subr.mxu0 0.0
    %1398 = vmatpush1.msra.mxu0 %v1376
    %1399 = vmatprep.subr.mxu0 0.0
    %1400 = vmatpush1.msra.mxu0 0.0
    %1401 = vmatprep.subr.mxu0 0.0
    %1402 = vmatpush1.msra.mxu0 0.0
    %1403 = vmatprep.subr.mxu0 0.0
    %1404 = vmatpush1.msra.mxu0 0.0
    %1405 = vmatprep.subr.mxu0 0.0
    %1406 = vmatpush1.msra.mxu0 0.0
    %1407 = vmatprep.subr.mxu0 0.0
    %1408 = vmatpush1.msra.mxu0 0.0
    %1409 = vmatprep.subr.mxu0 0.0
    %1410 = vmatpush1.msra.mxu0 0.0
    %1411 = vmatprep.subr.mxu0 0.0
    %1412 = vmatpush1.msra.mxu0 0.0
    %1413 = vmatprep.subr.mxu0 0.0
    %1414 = vmatpush1.msra.mxu0 0.0
    %1415 = vmatprep.subr.mxu0 0.0
    %1416 = vmatpush1.msra.mxu0 0.0
    %1417 = vmatprep.subr.mxu0 0.0
    %1418 = vmatpush1.msra.mxu0 0.0
    %1419 = vmatprep.subr.mxu0 0.0
    %1420 = vmatpush1.msra.mxu0 0.0
    %1421 = vmatprep.subr.mxu0 0.0
    %1422 = vmatpush1.msra.mxu0 0.0
    %1423 = vmatprep.subr.mxu0 0.0
    %1424 = vmatpush1.msra.mxu0 0.0
    %1425 = vmatprep.subr.mxu0 0.0
    %1426 = vmatpush1.msra.mxu0 0.0
    %1427 = vmatprep.subr.mxu0 0.0
    %1428 = vmatpush1.msra.mxu0 0.0
    %1429 = vmatprep.subr.mxu0 0.0
    %1430 = vmatpush1.msra.mxu0 0.0
    %1431 = vmatprep.subr.mxu0 0.0
    %1432 = vmatpush1.msra.mxu0 0.0
    %1433 = vmatprep.subr.mxu0 0.0
    %1434 = vmatpush1.msra.mxu0 0.0
    %1435 = vmatprep.subr.mxu0 0.0
    %1436 = vmatpush1.msra.mxu0 0.0
    %1437 = vmatprep.subr.mxu0 0.0
    %1438 = vmatpush1.msra.mxu0 0.0
    %1439 = vmatprep.subr.mxu0 0.0
    %1440 = vmatpush1.msra.mxu0 0.0
    %1441 = vmatprep.subr.mxu0 0.0
    %1442 = vmatpush1.msra.mxu0 0.0
    %1443 = vmatprep.subr.mxu0 0.0
    %1444 = vmatpush1.msra.mxu0 0.0
    %1445 = vmatprep.subr.mxu0 0.0
    %1446 = vmatpush1.msra.mxu0 0.0
    %1447 = vmatprep.subr.mxu0 0.0
    %1448 = vmatpush1.msra.mxu0 0.0
    %1449 = vmatprep.subr.mxu0 0.0
    %1450 = vmatpush1.msra.mxu0 0.0
    %1451 = vmatprep.subr.mxu0 0.0
    %1452 = vmatpush1.msra.mxu0 0.0
    %1453 = vmatprep.subr.mxu0 0.0
    %1454 = vmatpush1.msra.mxu0 0.0
    %1455 = vmatprep.mubr.f32.mxu0 0.0
    %1456 = vmatmul.mubr.f32.gmra.mrb[0].mxu0 %v1386
    %v1457 = vpop.f32.mrb[0].mxu0
    %v1458 = vadd.f32 %v1383, %v1457
    %v1459 = vpop.f32.mrb[0].mxu0
    %1460 = vmatprep.mubr.f32.mxu0 0.0
    %1461 = vmatmul.mubr.f32.gmra.mrb[0].mxu0 %v1389
    %v1462 = vpop.f32.mrb[0].mxu0
    %v1463 = vadd.f32 %v1383, %v1462
    %v1464 = vpop.f32.mrb[0].mxu0
    %1465 = vdwg.mxu0
    %1468 = vrot.lane.b32.xlu0 %v1458, 96
    %v1469 = vpop.permute.xlu0 %1468
    %1470 = vrot.lane.b32.xlu0 %v1463, 96
    %v1471 = vpop.permute.xlu0 %1470
    %v1472 = vsel %vm258, %v1458, 0
    %v1474 = vsel %vm258, %v1463, 0
    %v1476 = vsel %vm258, %v1469, 0
    %v1478 = vsel %vm258, %v1471, 0
    %1480 = vmatprep.subr.mxu0 0.0
    %1481 = vmatpush1.xpose.msra.mxu0 %v1476
    %1482 = vmatprep.subr.mxu0 0.0
    %1483 = vmatpush1.xpose.msra.mxu0 %v1478
    %1484 = vmatprep.subr.mxu0 0.0
    %1485 = vmatpush1.xpose.msra.mxu0 0.0
    %1486 = vmatprep.subr.mxu0 0.0
    %1487 = vmatpush1.xpose.msra.mxu0 0.0
    %1488 = vmatprep.subr.mxu0 0.0
    %1489 = vmatpush1.xpose.msra.mxu0 0.0
    %1490 = vmatprep.subr.mxu0 0.0
    %1491 = vmatpush1.xpose.msra.mxu0 0.0
    %1492 = vmatprep.subr.mxu0 0.0
    %1493 = vmatpush1.xpose.msra.mxu0 0.0
    %1494 = vmatprep.subr.mxu0 0.0
    %1495 = vmatpush1.xpose.msra.mxu0 0.0
    %1496 = vmatprep.subr.mxu0 0.0
    %1497 = vmatpush1.xpose.msra.mxu0 0.0
    %1498 = vmatprep.subr.mxu0 0.0
    %1499 = vmatpush1.xpose.msra.mxu0 0.0
    %1500 = vmatprep.subr.mxu0 0.0
    %1501 = vmatpush1.xpose.msra.mxu0 0.0
    %1502 = vmatprep.subr.mxu0 0.0
    %1503 = vmatpush1.xpose.msra.mxu0 0.0
    %1504 = vmatprep.subr.mxu0 0.0
    %1505 = vmatpush1.xpose.msra.mxu0 0.0
    %1506 = vmatprep.subr.mxu0 0.0
    %1507 = vmatpush1.xpose.msra.mxu0 0.0
    %1508 = vmatprep.subr.mxu0 0.0
    %1509 = vmatpush1.xpose.msra.mxu0 0.0
    %1510 = vmatprep.subr.mxu0 0.0
    %1511 = vmatpush1.xpose.msra.mxu0 0.0
    %1512 = vmatprep.subr.mxu0 0.0
    %1513 = vmatpush1.xpose.msra.mxu0 0.0
    %1514 = vmatprep.subr.mxu0 0.0
    %1515 = vmatpush1.xpose.msra.mxu0 0.0
    %1516 = vmatprep.subr.mxu0 0.0
    %1517 = vmatpush1.xpose.msra.mxu0 0.0
    %1518 = vmatprep.subr.mxu0 0.0
    %1519 = vmatpush1.xpose.msra.mxu0 0.0
    %1520 = vmatprep.subr.mxu0 0.0
    %1521 = vmatpush1.xpose.msra.mxu0 0.0
    %1522 = vmatprep.subr.mxu0 0.0
    %1523 = vmatpush1.xpose.msra.mxu0 0.0
    %1524 = vmatprep.subr.mxu0 0.0
    %1525 = vmatpush1.xpose.msra.mxu0 0.0
    %1526 = vmatprep.subr.mxu0 0.0
    %1527 = vmatpush1.xpose.msra.mxu0 0.0
    %1528 = vmatprep.subr.mxu0 0.0
    %1529 = vmatpush1.xpose.msra.mxu0 0.0
    %1530 = vmatprep.subr.mxu0 0.0
    %1531 = vmatpush1.xpose.msra.mxu0 0.0
    %1532 = vmatprep.subr.mxu0 0.0
    %1533 = vmatpush1.xpose.msra.mxu0 0.0
    %1534 = vmatprep.subr.mxu0 0.0
    %1535 = vmatpush1.xpose.msra.mxu0 0.0
    %1536 = vmatprep.subr.mxu0 0.0
    %1537 = vmatpush1.xpose.msra.mxu0 0.0
    %1538 = vmatprep.subr.mxu0 0.0
    %1539 = vmatpush1.xpose.msra.mxu0 0.0
    %1540 = vmatprep.subr.mxu0 0.0
    %1541 = vmatpush1.xpose.msra.mxu0 0.0
    %1542 = vmatprep.subr.mxu0 0.0
    %1543 = vmatpush1.xpose.msra.mxu0 0.0
    %1544 = vmatprep.mubr.f32.mxu0 0.0
    %1545 = vmatmul.mubr.f32.gmra.mrb[0].mxu0 %v1472
    %v1546 = vpop.f32.mrb[0].mxu0
    %v1547 = vadd.f32 0.0, %v1546
    %v1548 = vpop.f32.mrb[0].mxu0
    %1549 = vmatprep.mubr.f32.mxu0 0.0
    %1550 = vmatmul.mubr.f32.gmra.mrb[0].mxu0 %v1474
    %v1551 = vpop.f32.mrb[0].mxu0
    %v1552 = vadd.f32 0.0, %v1551
    %v1553 = vpop.f32.mrb[0].mxu0
    %1554 = vdwg.mxu0
    %v1555 = vmul.f32 %v1547, 0.35355338
    %v1556 = vmul.f32 %v1552, 0.35355338
    %v1557 = vsel %vm344, %v1555, -inf
    %1558 = vmax.xlane.f32.xlu0 %v1557
    %v1559 = vpop.xlane.xlu0 %1558
    %v1560 = vsel %vm348, %v1556, -inf
    %1561 = vmax.xlane.f32.xlu0 %v1560
    %v1562 = vpop.xlane.xlu0 %1561
    %v1563 = vsub.f32 %v1555, %v1559
    %v1564 = vsub.f32 %v1556, %v1562
    %v1565 = vmul.f32 %v1563, 1.442695
    %v1566 = vpow.pop %v1565
    %v1567 = vmul.f32 %v1564, 1.442695
    %v1568 = vpow.pop %v1567
    %v1569 = vsel %vm344, %v1566, 0.0
    %1570 = vadd.xlane.f32.xlu0 %v1569
    %v1571 = vpop.xlane.xlu0 %1570
    %v1572 = vsel %vm348, %v1568, 0.0
    %1573 = vadd.xlane.f32.xlu0 %v1572
    %v1574 = vpop.xlane.xlu0 %1573
    %v1575 = vrcp.pop %v1571
    %v1576 = vrcp.pop %v1574
    %v1577 = vmul.f32 %v1566, %v1575
    %v1578 = vmul.f32 %v1568, %v1576
    %1579 = vrot.lane.b32.xlu0 %v1458, 64
    %v1580 = vpop.permute.xlu0 %1579
    %1581 = vrot.lane.b32.xlu0 %v1463, 64
    %v1582 = vpop.permute.xlu0 %1581
    %v1585 = vsel %vm344, %v1577, 0
    %v1588 = vsel %vm344, %v1578, 0
    %v1590 = vsel %vm379, %v1582, 0
    %1592 = vmatprep.subr.mxu0 0.0
    %1593 = vmatpush1.msra.mxu0 %v1580
    %1594 = vmatprep.subr.mxu0 0.0
    %1595 = vmatpush1.msra.mxu0 %v1590
    %1596 = vmatprep.subr.mxu0 0.0
    %1597 = vmatpush1.msra.mxu0 0.0
    %1598 = vmatprep.subr.mxu0 0.0
    %1599 = vmatpush1.msra.mxu0 0.0
    %1600 = vmatprep.subr.mxu0 0.0
    %1601 = vmatpush1.msra.mxu0 0.0
    %1602 = vmatprep.subr.mxu0 0.0
    %1603 = vmatpush1.msra.mxu0 0.0
    %1604 = vmatprep.subr.mxu0 0.0
    %1605 = vmatpush1.msra.mxu0 0.0
    %1606 = vmatprep.subr.mxu0 0.0
    %1607 = vmatpush1.msra.mxu0 0.0
    %1608 = vmatprep.subr.mxu0 0.0
    %1609 = vmatpush1.msra.mxu0 0.0
    %1610 = vmatprep.subr.mxu0 0.0
    %1611 = vmatpush1.msra.mxu0 0.0
    %1612 = vmatprep.subr.mxu0 0.0
    %1613 = vmatpush1.msra.mxu0 0.0
    %1614 = vmatprep.subr.mxu0 0.0
    %1615 = vmatpush1.msra.mxu0 0.0
    %1616 = vmatprep.subr.mxu0 0.0
    %1617 = vmatpush1.msra.mxu0 0.0
    %1618 = vmatprep.subr.mxu0 0.0
    %1619 = vmatpush1.msra.mxu0 0.0
    %1620 = vmatprep.subr.mxu0 0.0
    %1621 = vmatpush1.msra.mxu0 0.0
    %1622 = vmatprep.subr.mxu0 0.0
    %1623 = vmatpush1.msra.mxu0 0.0
    %1624 = vmatprep.subr.mxu0 0.0
    %1625 = vmatpush1.msra.mxu0 0.0
    %1626 = vmatprep.subr.mxu0 0.0
    %1627 = vmatpush1.msra.mxu0 0.0
    %1628 = vmatprep.subr.mxu0 0.0
    %1629 = vmatpush1.msra.mxu0 0.0
    %1630 = vmatprep.subr.mxu0 0.0
    %1631 = vmatpush1.msra.mxu0 0.0
    %1632 = vmatprep.subr.mxu0 0.0
    %1633 = vmatpush1.msra.mxu0 0.0
    %1634 = vmatprep.subr.mxu0 0.0
    %1635 = vmatpush1.msra.mxu0 0.0
    %1636 = vmatprep.subr.mxu0 0.0
    %1637 = vmatpush1.msra.mxu0 0.0
    %1638 = vmatprep.subr.mxu0 0.0
    %1639 = vmatpush1.msra.mxu0 0.0
    %1640 = vmatprep.subr.mxu0 0.0
    %1641 = vmatpush1.msra.mxu0 0.0
    %1642 = vmatprep.subr.mxu0 0.0
    %1643 = vmatpush1.msra.mxu0 0.0
    %1644 = vmatprep.subr.mxu0 0.0
    %1645 = vmatpush1.msra.mxu0 0.0
    %1646 = vmatprep.subr.mxu0 0.0
    %1647 = vmatpush1.msra.mxu0 0.0
    %1648 = vmatprep.subr.mxu0 0.0
    %1649 = vmatpush1.msra.mxu0 0.0
    %1650 = vmatprep.subr.mxu0 0.0
    %1651 = vmatpush1.msra.mxu0 0.0
    %1652 = vmatprep.subr.mxu0 0.0
    %1653 = vmatpush1.msra.mxu0 0.0
    %1654 = vmatprep.subr.mxu0 0.0
    %1655 = vmatpush1.msra.mxu0 0.0
    %1656 = vmatprep.mubr.f32.mxu0 0.0
    %1657 = vmatmul.mubr.f32.gmra.mrb[0].mxu0 %v1585
    %v1658 = vpop.f32.mrb[0].mxu0
    %v1659 = vadd.f32 0.0, %v1658
    %v1660 = vpop.f32.mrb[0].mxu0
    %1661 = vmatprep.mubr.f32.mxu0 0.0
    %1662 = vmatmul.mubr.f32.gmra.mrb[0].mxu0 %v1588
    %v1663 = vpop.f32.mrb[0].mxu0
    %v1664 = vadd.f32 0.0, %v1663
    %v1665 = vpop.f32.mrb[0].mxu0
    %1666 = vdwg.mxu0
    %1667 = vrot.lane.b32.xlu0 %v1458, 120
    %v1668 = vpop.permute.xlu0 %1667
    %1669 = vrot.lane.b32.xlu0 %v1463, 120
    %v1670 = vpop.permute.xlu0 %1669
    %1671 = vrot.lane.b32.xlu0 %v1458, 88
    %v1672 = vpop.permute.xlu0 %1671
    %1673 = vrot.lane.b32.xlu0 %v1463, 88
    %v1674 = vpop.permute.xlu0 %1673
    %v1675 = vsel %vm258, %v1668, 0
    %v1677 = vsel %vm258, %v1670, 0
    %v1679 = vsel %vm258, %v1672, 0
    %v1681 = vsel %vm258, %v1674, 0
    %1683 = vmatprep.subr.mxu0 0.0
    %1684 = vmatpush1.xpose.msra.mxu0 %v1679
    %1685 = vmatprep.subr.mxu0 0.0
    %1686 = vmatpush1.xpose.msra.mxu0 %v1681
    %1687 = vmatprep.subr.mxu0 0.0
    %1688 = vmatpush1.xpose.msra.mxu0 0.0
    %1689 = vmatprep.subr.mxu0 0.0
    %1690 = vmatpush1.xpose.msra.mxu0 0.0
    %1691 = vmatprep.subr.mxu0 0.0
    %1692 = vmatpush1.xpose.msra.mxu0 0.0
    %1693 = vmatprep.subr.mxu0 0.0
    %1694 = vmatpush1.xpose.msra.mxu0 0.0
    %1695 = vmatprep.subr.mxu0 0.0
    %1696 = vmatpush1.xpose.msra.mxu0 0.0
    %1697 = vmatprep.subr.mxu0 0.0
    %1698 = vmatpush1.xpose.msra.mxu0 0.0
    %1699 = vmatprep.subr.mxu0 0.0
    %1700 = vmatpush1.xpose.msra.mxu0 0.0
    %1701 = vmatprep.subr.mxu0 0.0
    %1702 = vmatpush1.xpose.msra.mxu0 0.0
    %1703 = vmatprep.subr.mxu0 0.0
    %1704 = vmatpush1.xpose.msra.mxu0 0.0
    %1705 = vmatprep.subr.mxu0 0.0
    %1706 = vmatpush1.xpose.msra.mxu0 0.0
    %1707 = vmatprep.subr.mxu0 0.0
    %1708 = vmatpush1.xpose.msra.mxu0 0.0
    %1709 = vmatprep.subr.mxu0 0.0
    %1710 = vmatpush1.xpose.msra.mxu0 0.0
    %1711 = vmatprep.subr.mxu0 0.0
    %1712 = vmatpush1.xpose.msra.mxu0 0.0
    %1713 = vmatprep.subr.mxu0 0.0
    %1714 = vmatpush1.xpose.msra.mxu0 0.0
    %1715 = vmatprep.subr.mxu0 0.0
    %1716 = vmatpush1.xpose.msra.mxu0 0.0
    %1717 = vmatprep.subr.mxu0 0.0
    %1718 = vmatpush1.xpose.msra.mxu0 0.0
    %1719 = vmatprep.subr.mxu0 0.0
    %1720 = vmatpush1.xpose.msra.mxu0 0.0
    %1721 = vmatprep.subr.mxu0 0.0
    %1722 = vmatpush1.xpose.msra.mxu0 0.0
    %1723 = vmatprep.subr.mxu0 0.0
    %1724 = vmatpush1.xpose.msra.mxu0 0.0
    %1725 = vmatprep.subr.mxu0 0.0
    %1726 = vmatpush1.xpose.msra.mxu0 0.0
    %1727 = vmatprep.subr.mxu0 0.0
    %1728 = vmatpush1.xpose.msra.mxu0 0.0
    %1729 = vmatprep.subr.mxu0 0.0
    %1730 = vmatpush1.xpose.msra.mxu0 0.0
    %1731 = vmatprep.subr.mxu0 0.0
    %1732 = vmatpush1.xpose.msra.mxu0 0.0
    %1733 = vmatprep.subr.mxu0 0.0
    %1734 = vmatpush1.xpose.msra.mxu0 0.0
    %1735 = vmatprep.subr.mxu0 0.0
    %1736 = vmatpush1.xpose.msra.mxu0 0.0
    %1737 = vmatprep.subr.mxu0 0.0
    %1738 = vmatpush1.xpose.msra.mxu0 0.0
    %1739 = vmatprep.subr.mxu0 0.0
    %1740 = vmatpush1.xpose.msra.mxu0 0.0
    %1741 = vmatprep.subr.mxu0 0.0
    %1742 = vmatpush1.xpose.msra.mxu0 0.0
    %1743 = vmatprep.subr.mxu0 0.0
    %1744 = vmatpush1.xpose.msra.mxu0 0.0
    %1745 = vmatprep.subr.mxu0 0.0
    %1746 = vmatpush1.xpose.msra.mxu0 0.0
    %1747 = vmatprep.mubr.f32.mxu0 0.0
    %1748 = vmatmul.mubr.f32.gmra.mrb[0].mxu0 %v1675
    %v1749 = vpop.f32.mrb[0].mxu0
    %v1750 = vadd.f32 0.0, %v1749
    %v1751 = vpop.f32.mrb[0].mxu0
    %1752 = vmatprep.mubr.f32.mxu0 0.0
    %1753 = vmatmul.mubr.f32.gmra.mrb[0].mxu0 %v1677
    %v1754 = vpop.f32.mrb[0].mxu0
    %v1755 = vadd.f32 0.0, %v1754
    %v1756 = vpop.f32.mrb[0].mxu0
    %1757 = vdwg.mxu0
    %v1758 = vmul.f32 %v1750, 0.35355338
    %v1759 = vmul.f32 %v1755, 0.35355338
    %v1760 = vsel %vm344, %v1758, -inf
    %1761 = vmax.xlane.f32.xlu0 %v1760
    %v1762 = vpop.xlane.xlu0 %1761
    %v1763 = vsel %vm348, %v1759, -inf
    %1764 = vmax.xlane.f32.xlu0 %v1763
    %v1765 = vpop.xlane.xlu0 %1764
    %v1766 = vsub.f32 %v1758, %v1762
    %v1767 = vsub.f32 %v1759, %v1765
    %v1768 = vmul.f32 %v1766, 1.442695
    %v1769 = vpow.pop %v1768
    %v1770 = vmul.f32 %v1767, 1.442695
    %v1771 = vpow.pop %v1770
    %v1772 = vsel %vm344, %v1769, 0.0
    %1773 = vadd.xlane.f32.xlu0 %v1772
    %v1774 = vpop.xlane.xlu0 %1773
    %v1775 = vsel %vm348, %v1771, 0.0
    %1776 = vadd.xlane.f32.xlu0 %v1775
    %v1777 = vpop.xlane.xlu0 %1776
    %v1778 = vrcp.pop %v1774
    %v1779 = vrcp.pop %v1777
    %v1780 = vmul.f32 %v1769, %v1778
    %v1781 = vmul.f32 %v1771, %v1779
    %1782 = vrot.lane.b32.xlu0 %v1458, 56
    %v1783 = vpop.permute.xlu0 %1782
    %1784 = vrot.lane.b32.xlu0 %v1463, 56
    %v1785 = vpop.permute.xlu0 %1784
    %v1788 = vsel %vm344, %v1780, 0
    %v1791 = vsel %vm344, %v1781, 0
    %v1793 = vsel %vm379, %v1785, 0
    %1795 = vmatprep.subr.mxu0 0.0
    %1796 = vmatpush1.msra.mxu0 %v1783
    %1797 = vmatprep.subr.mxu0 0.0
    %1798 = vmatpush1.msra.mxu0 %v1793
    %1799 = vmatprep.subr.mxu0 0.0
    %1800 = vmatpush1.msra.mxu0 0.0
    %1801 = vmatprep.subr.mxu0 0.0
    %1802 = vmatpush1.msra.mxu0 0.0
    %1803 = vmatprep.subr.mxu0 0.0
    %1804 = vmatpush1.msra.mxu0 0.0
    %1805 = vmatprep.subr.mxu0 0.0
    %1806 = vmatpush1.msra.mxu0 0.0
    %1807 = vmatprep.subr.mxu0 0.0
    %1808 = vmatpush1.msra.mxu0 0.0
    %1809 = vmatprep.subr.mxu0 0.0
    %1810 = vmatpush1.msra.mxu0 0.0
    %1811 = vmatprep.subr.mxu0 0.0
    %1812 = vmatpush1.msra.mxu0 0.0
    %1813 = vmatprep.subr.mxu0 0.0
    %1814 = vmatpush1.msra.mxu0 0.0
    %1815 = vmatprep.subr.mxu0 0.0
    %1816 = vmatpush1.msra.mxu0 0.0
    %1817 = vmatprep.subr.mxu0 0.0
    %1818 = vmatpush1.msra.mxu0 0.0
    %1819 = vmatprep.subr.mxu0 0.0
    %1820 = vmatpush1.msra.mxu0 0.0
    %1821 = vmatprep.subr.mxu0 0.0
    %1822 = vmatpush1.msra.mxu0 0.0
    %1823 = vmatprep.subr.mxu0 0.0
    %1824 = vmatpush1.msra.mxu0 0.0
    %1825 = vmatprep.subr.mxu0 0.0
    %1826 = vmatpush1.msra.mxu0 0.0
    %1827 = vmatprep.subr.mxu0 0.0
    %1828 = vmatpush1.msra.mxu0 0.0
    %1829 = vmatprep.subr.mxu0 0.0
    %1830 = vmatpush1.msra.mxu0 0.0
    %1831 = vmatprep.subr.mxu0 0.0
    %1832 = vmatpush1.msra.mxu0 0.0
    %1833 = vmatprep.subr.mxu0 0.0
    %1834 = vmatpush1.msra.mxu0 0.0
    %1835 = vmatprep.subr.mxu0 0.0
    %1836 = vmatpush1.msra.mxu0 0.0
    %1837 = vmatprep.subr.mxu0 0.0
    %1838 = vmatpush1.msra.mxu0 0.0
    %1839 = vmatprep.subr.mxu0 0.0
    %1840 = vmatpush1.msra.mxu0 0.0
    %1841 = vmatprep.subr.mxu0 0.0
    %1842 = vmatpush1.msra.mxu0 0.0
    %1843 = vmatprep.subr.mxu0 0.0
    %1844 = vmatpush1.msra.mxu0 0.0
    %1845 = vmatprep.subr.mxu0 0.0
    %1846 = vmatpush1.msra.mxu0 0.0
    %1847 = vmatprep.subr.mxu0 0.0
    %1848 = vmatpush1.msra.mxu0 0.0
    %1849 = vmatprep.subr.mxu0 0.0
    %1850 = vmatpush1.msra.mxu0 0.0
    %1851 = vmatprep.subr.mxu0 0.0
    %1852 = vmatpush1.msra.mxu0 0.0
    %1853 = vmatprep.subr.mxu0 0.0
    %1854 = vmatpush1.msra.mxu0 0.0
    %1855 = vmatprep.subr.mxu0 0.0
    %1856 = vmatpush1.msra.mxu0 0.0
    %1857 = vmatprep.subr.mxu0 0.0
    %1858 = vmatpush1.msra.mxu0 0.0
    %1859 = vmatprep.mubr.f32.mxu0 0.0
    %1860 = vmatmul.mubr.f32.gmra.mrb[0].mxu0 %v1788
    %v1861 = vpop.f32.mrb[0].mxu0
    %v1862 = vadd.f32 0.0, %v1861
    %v1863 = vpop.f32.mrb[0].mxu0
    %1864 = vmatprep.mubr.f32.mxu0 0.0
    %1865 = vmatmul.mubr.f32.gmra.mrb[0].mxu0 %v1791
    %v1866 = vpop.f32.mrb[0].mxu0
    %v1867 = vadd.f32 0.0, %v1866
    %v1868 = vpop.f32.mrb[0].mxu0
    %1869 = vdwg.mxu0
    %1870 = vrot.lane.b32.xlu0 %v1458, 112
    %v1871 = vpop.permute.xlu0 %1870
    %1872 = vrot.lane.b32.xlu0 %v1463, 112
    %v1873 = vpop.permute.xlu0 %1872
    %1874 = vrot.lane.b32.xlu0 %v1458, 80
    %v1875 = vpop.permute.xlu0 %1874
    %1876 = vrot.lane.b32.xlu0 %v1463, 80
    %v1877 = vpop.permute.xlu0 %1876
    %v1878 = vsel %vm258, %v1871, 0
    %v1880 = vsel %vm258, %v1873, 0
    %v1882 = vsel %vm258, %v1875, 0
    %v1884 = vsel %vm258, %v1877, 0
    %1886 = vmatprep.subr.mxu0 0.0
    %1887 = vmatpush1.xpose.msra.mxu0 %v1882
    %1888 = vmatprep.subr.mxu0 0.0
    %1889 = vmatpush1.xpose.msra.mxu0 %v1884
    %1890 = vmatprep.subr.mxu0 0.0
    %1891 = vmatpush1.xpose.msra.mxu0 0.0
    %1892 = vmatprep.subr.mxu0 0.0
    %1893 = vmatpush1.xpose.msra.mxu0 0.0
    %1894 = vmatprep.subr.mxu0 0.0
    %1895 = vmatpush1.xpose.msra.mxu0 0.0
    %1896 = vmatprep.subr.mxu0 0.0
    %1897 = vmatpush1.xpose.msra.mxu0 0.0
    %1898 = vmatprep.subr.mxu0 0.0
    %1899 = vmatpush1.xpose.msra.mxu0 0.0
    %1900 = vmatprep.subr.mxu0 0.0
    %1901 = vmatpush1.xpose.msra.mxu0 0.0
    %1902 = vmatprep.subr.mxu0 0.0
    %1903 = vmatpush1.xpose.msra.mxu0 0.0
    %1904 = vmatprep.subr.mxu0 0.0
    %1905 = vmatpush1.xpose.msra.mxu0 0.0
    %1906 = vmatprep.subr.mxu0 0.0
    %1907 = vmatpush1.xpose.msra.mxu0 0.0
    %1908 = vmatprep.subr.mxu0 0.0
    %1909 = vmatpush1.xpose.msra.mxu0 0.0
    %1910 = vmatprep.subr.mxu0 0.0
    %1911 = vmatpush1.xpose.msra.mxu0 0.0
    %1912 = vmatprep.subr.mxu0 0.0
    %1913 = vmatpush1.xpose.msra.mxu0 0.0
    %1914 = vmatprep.subr.mxu0 0.0
    %1915 = vmatpush1.xpose.msra.mxu0 0.0
    %1916 = vmatprep.subr.mxu0 0.0
    %1917 = vmatpush1.xpose.msra.mxu0 0.0
    %1918 = vmatprep.subr.mxu0 0.0
    %1919 = vmatpush1.xpose.msra.mxu0 0.0
    %1920 = vmatprep.subr.mxu0 0.0
    %1921 = vmatpush1.xpose.msra.mxu0 0.0
    %1922 = vmatprep.subr.mxu0 0.0
    %1923 = vmatpush1.xpose.msra.mxu0 0.0
    %1924 = vmatprep.subr.mxu0 0.0
    %1925 = vmatpush1.xpose.msra.mxu0 0.0
    %1926 = vmatprep.subr.mxu0 0.0
    %1927 = vmatpush1.xpose.msra.mxu0 0.0
    %1928 = vmatprep.subr.mxu0 0.0
    %1929 = vmatpush1.xpose.msra.mxu0 0.0
    %1930 = vmatprep.subr.mxu0 0.0
    %1931 = vmatpush1.xpose.msra.mxu0 0.0
    %1932 = vmatprep.subr.mxu0 0.0
    %1933 = vmatpush1.xpose.msra.mxu0 0.0
    %1934 = vmatprep.subr.mxu0 0.0
    %1935 = vmatpush1.xpose.msra.mxu0 0.0
    %1936 = vmatprep.subr.mxu0 0.0
    %1937 = vmatpush1.xpose.msra.mxu0 0.0
    %1938 = vmatprep.subr.mxu0 0.0
    %1939 = vmatpush1.xpose.msra.mxu0 0.0
    %1940 = vmatprep.subr.mxu0 0.0
    %1941 = vmatpush1.xpose.msra.mxu0 0.0
    %1942 = vmatprep.subr.mxu0 0.0
    %1943 = vmatpush1.xpose.msra.mxu0 0.0
    %1944 = vmatprep.subr.mxu0 0.0
    %1945 = vmatpush1.xpose.msra.mxu0 0.0
    %1946 = vmatprep.subr.mxu0 0.0
    %1947 = vmatpush1.xpose.msra.mxu0 0.0
    %1948 = vmatprep.subr.mxu0 0.0
    %1949 = vmatpush1.xpose.msra.mxu0 0.0
    %1950 = vmatprep.mubr.f32.mxu0 0.0
    %1951 = vmatmul.mubr.f32.gmra.mrb[0].mxu0 %v1878
    %v1952 = vpop.f32.mrb[0].mxu0
    %v1953 = vadd.f32 0.0, %v1952
    %v1954 = vpop.f32.mrb[0].mxu0
    %1955 = vmatprep.mubr.f32.mxu0 0.0
    %1956 = vmatmul.mubr.f32.gmra.mrb[0].mxu0 %v1880
    %v1957 = vpop.f32.mrb[0].mxu0
    %v1958 = vadd.f32 0.0, %v1957
    %v1959 = vpop.f32.mrb[0].mxu0
    %1960 = vdwg.mxu0
    %v1961 = vmul.f32 %v1953, 0.35355338
    %v1962 = vmul.f32 %v1958, 0.35355338
    %v1963 = vsel %vm344, %v1961, -inf
    %1964 = vmax.xlane.f32.xlu0 %v1963
    %v1965 = vpop.xlane.xlu0 %1964
    %v1966 = vsel %vm348, %v1962, -inf
    %1967 = vmax.xlane.f32.xlu0 %v1966
    %v1968 = vpop.xlane.xlu0 %1967
    %v1969 = vsub.f32 %v1961, %v1965
    %v1970 = vsub.f32 %v1962, %v1968
    %v1971 = vmul.f32 %v1969, 1.442695
    %v1972 = vpow.pop %v1971
    %v1973 = vmul.f32 %v1970, 1.442695
    %v1974 = vpow.pop %v1973
    %v1975 = vsel %vm344, %v1972, 0.0
    %1976 = vadd.xlane.f32.xlu0 %v1975
    %v1977 = vpop.xlane.xlu0 %1976
    %v1978 = vsel %vm348, %v1974, 0.0
    %1979 = vadd.xlane.f32.xlu0 %v1978
    %v1980 = vpop.xlane.xlu0 %1979
    %v1981 = vrcp.pop %v1977
    %v1982 = vrcp.pop %v1980
    %v1983 = vmul.f32 %v1972, %v1981
    %v1984 = vmul.f32 %v1974, %v1982
    %1985 = vrot.lane.b32.xlu0 %v1458, 48
    %v1986 = vpop.permute.xlu0 %1985
    %1987 = vrot.lane.b32.xlu0 %v1463, 48
    %v1988 = vpop.permute.xlu0 %1987
    %v1991 = vsel %vm344, %v1983, 0
    %v1994 = vsel %vm344, %v1984, 0
    %v1996 = vsel %vm379, %v1988, 0
    %1998 = vmatprep.subr.mxu0 0.0
    %1999 = vmatpush1.msra.mxu0 %v1986
    %2000 = vmatprep.subr.mxu0 0.0
    %2001 = vmatpush1.msra.mxu0 %v1996
    %2002 = vmatprep.subr.mxu0 0.0
    %2003 = vmatpush1.msra.mxu0 0.0
    %2004 = vmatprep.subr.mxu0 0.0
    %2005 = vmatpush1.msra.mxu0 0.0
    %2006 = vmatprep.subr.mxu0 0.0
    %2007 = vmatpush1.msra.mxu0 0.0
    %2008 = vmatprep.subr.mxu0 0.0
    %2009 = vmatpush1.msra.mxu0 0.0
    %2010 = vmatprep.subr.mxu0 0.0
    %2011 = vmatpush1.msra.mxu0 0.0
    %2012 = vmatprep.subr.mxu0 0.0
    %2013 = vmatpush1.msra.mxu0 0.0
    %2014 = vmatprep.subr.mxu0 0.0
    %2015 = vmatpush1.msra.mxu0 0.0
    %2016 = vmatprep.subr.mxu0 0.0
    %2017 = vmatpush1.msra.mxu0 0.0
    %2018 = vmatprep.subr.mxu0 0.0
    %2019 = vmatpush1.msra.mxu0 0.0
    %2020 = vmatprep.subr.mxu0 0.0
    %2021 = vmatpush1.msra.mxu0 0.0
    %2022 = vmatprep.subr.mxu0 0.0
    %2023 = vmatpush1.msra.mxu0 0.0
    %2024 = vmatprep.subr.mxu0 0.0
    %2025 = vmatpush1.msra.mxu0 0.0
    %2026 = vmatprep.subr.mxu0 0.0
    %2027 = vmatpush1.msra.mxu0 0.0
    %2028 = vmatprep.subr.mxu0 0.0
    %2029 = vmatpush1.msra.mxu0 0.0
    %2030 = vmatprep.subr.mxu0 0.0
    %2031 = vmatpush1.msra.mxu0 0.0
    %2032 = vmatprep.subr.mxu0 0.0
    %2033 = vmatpush1.msra.mxu0 0.0
    %2034 = vmatprep.subr.mxu0 0.0
    %2035 = vmatpush1.msra.mxu0 0.0
    %2036 = vmatprep.subr.mxu0 0.0
    %2037 = vmatpush1.msra.mxu0 0.0
    %2038 = vmatprep.subr.mxu0 0.0
    %2039 = vmatpush1.msra.mxu0 0.0
    %2040 = vmatprep.subr.mxu0 0.0
    %2041 = vmatpush1.msra.mxu0 0.0
    %2042 = vmatprep.subr.mxu0 0.0
    %2043 = vmatpush1.msra.mxu0 0.0
    %2044 = vmatprep.subr.mxu0 0.0
    %2045 = vmatpush1.msra.mxu0 0.0
    %2046 = vmatprep.subr.mxu0 0.0
    %2047 = vmatpush1.msra.mxu0 0.0
    %2048 = vmatprep.subr.mxu0 0.0
    %2049 = vmatpush1.msra.mxu0 0.0
    %2050 = vmatprep.subr.mxu0 0.0
    %2051 = vmatpush1.msra.mxu0 0.0
    %2052 = vmatprep.subr.mxu0 0.0
    %2053 = vmatpush1.msra.mxu0 0.0
    %2054 = vmatprep.subr.mxu0 0.0
    %2055 = vmatpush1.msra.mxu0 0.0
    %2056 = vmatprep.subr.mxu0 0.0
    %2057 = vmatpush1.msra.mxu0 0.0
    %2058 = vmatprep.subr.mxu0 0.0
    %2059 = vmatpush1.msra.mxu0 0.0
    %2060 = vmatprep.subr.mxu0 0.0
    %2061 = vmatpush1.msra.mxu0 0.0
    %2062 = vmatprep.mubr.f32.mxu0 0.0
    %2063 = vmatmul.mubr.f32.gmra.mrb[0].mxu0 %v1991
    %v2064 = vpop.f32.mrb[0].mxu0
    %v2065 = vadd.f32 0.0, %v2064
    %v2066 = vpop.f32.mrb[0].mxu0
    %2067 = vmatprep.mubr.f32.mxu0 0.0
    %2068 = vmatmul.mubr.f32.gmra.mrb[0].mxu0 %v1994
    %v2069 = vpop.f32.mrb[0].mxu0
    %v2070 = vadd.f32 0.0, %v2069
    %v2071 = vpop.f32.mrb[0].mxu0
    %2072 = vdwg.mxu0
    %2073 = vrot.lane.b32.xlu0 %v1458, 104
    %v2074 = vpop.permute.xlu0 %2073
    %2075 = vrot.lane.b32.xlu0 %v1463, 104
    %v2076 = vpop.permute.xlu0 %2075
    %2077 = vrot.lane.b32.xlu0 %v1458, 72
    %v2078 = vpop.permute.xlu0 %2077
    %2079 = vrot.lane.b32.xlu0 %v1463, 72
    %v2080 = vpop.permute.xlu0 %2079
    %v2081 = vsel %vm258, %v2074, 0
    %v2083 = vsel %vm258, %v2076, 0
    %v2085 = vsel %vm258, %v2078, 0
    %v2087 = vsel %vm258, %v2080, 0
    %2089 = vmatprep.subr.mxu0 0.0
    %2090 = vmatpush1.xpose.msra.mxu0 %v2085
    %2091 = vmatprep.subr.mxu0 0.0
    %2092 = vmatpush1.xpose.msra.mxu0 %v2087
    %2093 = vmatprep.subr.mxu0 0.0
    %2094 = vmatpush1.xpose.msra.mxu0 0.0
    %2095 = vmatprep.subr.mxu0 0.0
    %2096 = vmatpush1.xpose.msra.mxu0 0.0
    %2097 = vmatprep.subr.mxu0 0.0
    %2098 = vmatpush1.xpose.msra.mxu0 0.0
    %2099 = vmatprep.subr.mxu0 0.0
    %2100 = vmatpush1.xpose.msra.mxu0 0.0
    %2101 = vmatprep.subr.mxu0 0.0
    %2102 = vmatpush1.xpose.msra.mxu0 0.0
    %2103 = vmatprep.subr.mxu0 0.0
    %2104 = vmatpush1.xpose.msra.mxu0 0.0
    %2105 = vmatprep.subr.mxu0 0.0
    %2106 = vmatpush1.xpose.msra.mxu0 0.0
    %2107 = vmatprep.subr.mxu0 0.0
    %2108 = vmatpush1.xpose.msra.mxu0 0.0
    %2109 = vmatprep.subr.mxu0 0.0
    %2110 = vmatpush1.xpose.msra.mxu0 0.0
    %2111 = vmatprep.subr.mxu0 0.0
    %2112 = vmatpush1.xpose.msra.mxu0 0.0
    %2113 = vmatprep.subr.mxu0 0.0
    %2114 = vmatpush1.xpose.msra.mxu0 0.0
    %2115 = vmatprep.subr.mxu0 0.0
    %2116 = vmatpush1.xpose.msra.mxu0 0.0
    %2117 = vmatprep.subr.mxu0 0.0
    %2118 = vmatpush1.xpose.msra.mxu0 0.0
    %2119 = vmatprep.subr.mxu0 0.0
    %2120 = vmatpush1.xpose.msra.mxu0 0.0
    %2121 = vmatprep.subr.mxu0 0.0
    %2122 = vmatpush1.xpose.msra.mxu0 0.0
    %2123 = vmatprep.subr.mxu0 0.0
    %2124 = vmatpush1.xpose.msra.mxu0 0.0
    %2125 = vmatprep.subr.mxu0 0.0
    %2126 = vmatpush1.xpose.msra.mxu0 0.0
    %2127 = vmatprep.subr.mxu0 0.0
    %2128 = vmatpush1.xpose.msra.mxu0 0.0
    %2129 = vmatprep.subr.mxu0 0.0
    %2130 = vmatpush1.xpose.msra.mxu0 0.0
    %2131 = vmatprep.subr.mxu0 0.0
    %2132 = vmatpush1.xpose.msra.mxu0 0.0
    %2133 = vmatprep.subr.mxu0 0.0
    %2134 = vmatpush1.xpose.msra.mxu0 0.0
    %2135 = vmatprep.subr.mxu0 0.0
    %2136 = vmatpush1.xpose.msra.mxu0 0.0
    %2137 = vmatprep.subr.mxu0 0.0
    %2138 = vmatpush1.xpose.msra.mxu0 0.0
    %2139 = vmatprep.subr.mxu0 0.0
    %2140 = vmatpush1.xpose.msra.mxu0 0.0
    %2141 = vmatprep.subr.mxu0 0.0
    %2142 = vmatpush1.xpose.msra.mxu0 0.0
    %2143 = vmatprep.subr.mxu0 0.0
    %2144 = vmatpush1.xpose.msra.mxu0 0.0
    %2145 = vmatprep.subr.mxu0 0.0
    %2146 = vmatpush1.xpose.msra.mxu0 0.0
    %2147 = vmatprep.subr.mxu0 0.0
    %2148 = vmatpush1.xpose.msra.mxu0 0.0
    %2149 = vmatprep.subr.mxu0 0.0
    %2150 = vmatpush1.xpose.msra.mxu0 0.0
    %2151 = vmatprep.subr.mxu0 0.0
    %2152 = vmatpush1.xpose.msra.mxu0 0.0
    %2153 = vmatprep.mubr.f32.mxu0 0.0
    %2154 = vmatmul.mubr.f32.gmra.mrb[0].mxu0 %v2081
    %v2155 = vpop.f32.mrb[0].mxu0
    %v2156 = vadd.f32 0.0, %v2155
    %v2157 = vpop.f32.mrb[0].mxu0
    %2158 = vmatprep.mubr.f32.mxu0 0.0
    %2159 = vmatmul.mubr.f32.gmra.mrb[0].mxu0 %v2083
    %v2160 = vpop.f32.mrb[0].mxu0
    %v2161 = vadd.f32 0.0, %v2160
    %v2162 = vpop.f32.mrb[0].mxu0
    %2163 = vdwg.mxu0
    %v2164 = vmul.f32 %v2156, 0.35355338
    %v2165 = vmul.f32 %v2161, 0.35355338
    %v2166 = vsel %vm344, %v2164, -inf
    %2167 = vmax.xlane.f32.xlu0 %v2166
    %v2168 = vpop.xlane.xlu0 %2167
    %v2169 = vsel %vm348, %v2165, -inf
    %2170 = vmax.xlane.f32.xlu0 %v2169
    %v2171 = vpop.xlane.xlu0 %2170
    %v2172 = vsub.f32 %v2164, %v2168
    %v2173 = vsub.f32 %v2165, %v2171
    %v2174 = vmul.f32 %v2172, 1.442695
    %v2175 = vpow.pop %v2174
    %v2176 = vmul.f32 %v2173, 1.442695
    %v2177 = vpow.pop %v2176
    %v2178 = vsel %vm344, %v2175, 0.0
    %2179 = vadd.xlane.f32.xlu0 %v2178
    %v2180 = vpop.xlane.xlu0 %2179
    %v2181 = vsel %vm348, %v2177, 0.0
    %2182 = vadd.xlane.f32.xlu0 %v2181
    %v2183 = vpop.xlane.xlu0 %2182
    %v2184 = vrcp.pop %v2180
    %v2185 = vrcp.pop %v2183
    %v2186 = vmul.f32 %v2175, %v2184
    %v2187 = vmul.f32 %v2177, %v2185
    %2188 = vrot.lane.b32.xlu0 %v1458, 40
    %v2189 = vpop.permute.xlu0 %2188
    %2190 = vrot.lane.b32.xlu0 %v1463, 40
    %v2191 = vpop.permute.xlu0 %2190
    %v2194 = vsel %vm344, %v2186, 0
    %v2197 = vsel %vm344, %v2187, 0
    %v2199 = vsel %vm379, %v2191, 0
    %2201 = vmatprep.subr.mxu0 0.0
    %2202 = vmatpush1.msra.mxu0 %v2189
    %2203 = vmatprep.subr.mxu0 0.0
    %2204 = vmatpush1.msra.mxu0 %v2199
    %2205 = vmatprep.subr.mxu0 0.0
    %2206 = vmatpush1.msra.mxu0 0.0
    %2207 = vmatprep.subr.mxu0 0.0
    %2208 = vmatpush1.msra.mxu0 0.0
    %2209 = vmatprep.subr.mxu0 0.0
    %2210 = vmatpush1.msra.mxu0 0.0
    %2211 = vmatprep.subr.mxu0 0.0
    %2212 = vmatpush1.msra.mxu0 0.0
    %2213 = vmatprep.subr.mxu0 0.0
    %2214 = vmatpush1.msra.mxu0 0.0
    %2215 = vmatprep.subr.mxu0 0.0
    %2216 = vmatpush1.msra.mxu0 0.0
    %2217 = vmatprep.subr.mxu0 0.0
    %2218 = vmatpush1.msra.mxu0 0.0
    %2219 = vmatprep.subr.mxu0 0.0
    %2220 = vmatpush1.msra.mxu0 0.0
    %2221 = vmatprep.subr.mxu0 0.0
    %2222 = vmatpush1.msra.mxu0 0.0
    %2223 = vmatprep.subr.mxu0 0.0
    %2224 = vmatpush1.msra.mxu0 0.0
    %2225 = vmatprep.subr.mxu0 0.0
    %2226 = vmatpush1.msra.mxu0 0.0
    %2227 = vmatprep.subr.mxu0 0.0
    %2228 = vmatpush1.msra.mxu0 0.0
    %2229 = vmatprep.subr.mxu0 0.0
    %2230 = vmatpush1.msra.mxu0 0.0
    %2231 = vmatprep.subr.mxu0 0.0
    %2232 = vmatpush1.msra.mxu0 0.0
    %2233 = vmatprep.subr.mxu0 0.0
    %2234 = vmatpush1.msra.mxu0 0.0
    %2235 = vmatprep.subr.mxu0 0.0
    %2236 = vmatpush1.msra.mxu0 0.0
    %2237 = vmatprep.subr.mxu0 0.0
    %2238 = vmatpush1.msra.mxu0 0.0
    %2239 = vmatprep.subr.mxu0 0.0
    %2240 = vmatpush1.msra.mxu0 0.0
    %2241 = vmatprep.subr.mxu0 0.0
    %2242 = vmatpush1.msra.mxu0 0.0
    %2243 = vmatprep.subr.mxu0 0.0
    %2244 = vmatpush1.msra.mxu0 0.0
    %2245 = vmatprep.subr.mxu0 0.0
    %2246 = vmatpush1.msra.mxu0 0.0
    %2247 = vmatprep.subr.mxu0 0.0
    %2248 = vmatpush1.msra.mxu0 0.0
    %2249 = vmatprep.subr.mxu0 0.0
    %2250 = vmatpush1.msra.mxu0 0.0
    %2251 = vmatprep.subr.mxu0 0.0
    %2252 = vmatpush1.msra.mxu0 0.0
    %2253 = vmatprep.subr.mxu0 0.0
    %2254 = vmatpush1.msra.mxu0 0.0
    %2255 = vmatprep.subr.mxu0 0.0
    %2256 = vmatpush1.msra.mxu0 0.0
    %2257 = vmatprep.subr.mxu0 0.0
    %2258 = vmatpush1.msra.mxu0 0.0
    %2259 = vmatprep.subr.mxu0 0.0
    %2260 = vmatpush1.msra.mxu0 0.0
    %2261 = vmatprep.subr.mxu0 0.0
    %2262 = vmatpush1.msra.mxu0 0.0
    %2263 = vmatprep.subr.mxu0 0.0
    %2264 = vmatpush1.msra.mxu0 0.0
    %2265 = vmatprep.mubr.f32.mxu0 0.0
    %2266 = vmatmul.mubr.f32.gmra.mrb[0].mxu0 %v2194
    %v2267 = vpop.f32.mrb[0].mxu0
    %v2268 = vadd.f32 0.0, %v2267
    %v2269 = vpop.f32.mrb[0].mxu0
    %2270 = vmatprep.mubr.f32.mxu0 0.0
    %2271 = vmatmul.mubr.f32.gmra.mrb[0].mxu0 %v2197
    %v2272 = vpop.f32.mrb[0].mxu0
    %v2273 = vadd.f32 0.0, %v2272
    %v2274 = vpop.f32.mrb[0].mxu0
    %2275 = vdwg.mxu0
    %2278 = vrot.lane.b32.xlu0 %v1862, 8
    %v2279 = vpop.permute.xlu0 %2278
    %2280 = vrot.lane.b32.xlu0 %v1867, 8
    %v2281 = vpop.permute.xlu0 %2280
    %2286 = vrot.lane.b32.xlu0 %v2065, 16
    %v2287 = vpop.permute.xlu0 %2286
    %2288 = vrot.lane.b32.xlu0 %v2070, 16
    %v2289 = vpop.permute.xlu0 %2288
    %2294 = vrot.lane.b32.xlu0 %v2268, 24
    %v2295 = vpop.permute.xlu0 %2294
    %2296 = vrot.lane.b32.xlu0 %v2273, 24
    %v2297 = vpop.permute.xlu0 %2296
    %v2300 = vsel %vm258, %v1659, %v2279
    %v2301 = vsel %vm258, %v1664, %v2281
    %v2302 = vsel %vm1092, %v2300, %v2287
    %v2303 = vsel %vm1092, %v2301, %v2289
    %v2304 = vsel %vm1095, %v2302, %v2295
    %v2305 = vsel %vm1095, %v2303, %v2297
    %s2306 = scalar_lea.vmem %s5, 32
    %v2307 = vld [vmem:[%s2306] sm:$0xff]
    %v2308 = vld [vmem:[%s2306 + $0x8] sm:$0xff]
    %v2309 = vld [vmem:[%s2306 + $0x10] sm:$0xff]
    %v2310 = vld [vmem:[%s2306 + $0x18] sm:$0xff]
    %s2311 = scalar_lea.vmem %s6, 1
    %v2312 = vld [vmem:[%s2311] sm:$0x1]
    %v2314 = vlaneseq
    %v2315 = vshrl.u32 %v2314, 7
    %v2316 = vsub.s32 0, %v2315
    %v2317 = vrot.slane %v2312, %v2316
    %v2320 = vsel %vm170, %v2304, 0
    %v2323 = vsel %vm170, %v2305, 0
    %2325 = vmatprep.subr.mxu0 0.0
    %2326 = vmatpush1.msra.mxu0 %v2307
    %2327 = vmatprep.subr.mxu0 0.0
    %2328 = vmatpush1.msra.mxu0 %v2308
    %2329 = vmatprep.subr.mxu0 0.0
    %2330 = vmatpush1.msra.mxu0 %v2309
    %2331 = vmatprep.subr.mxu0 0.0
    %2332 = vmatpush1.msra.mxu0 %v2310
    %2333 = vmatprep.subr.mxu0 0.0
    %2334 = vmatpush1.msra.mxu0 0.0
    %2335 = vmatprep.subr.mxu0 0.0
    %2336 = vmatpush1.msra.mxu0 0.0
    %2337 = vmatprep.subr.mxu0 0.0
    %2338 = vmatpush1.msra.mxu0 0.0
    %2339 = vmatprep.subr.mxu0 0.0
    %2340 = vmatpush1.msra.mxu0 0.0
    %2341 = vmatprep.subr.mxu0 0.0
    %2342 = vmatpush1.msra.mxu0 0.0
    %2343 = vmatprep.subr.mxu0 0.0
    %2344 = vmatpush1.msra.mxu0 0.0
    %2345 = vmatprep.subr.mxu0 0.0
    %2346 = vmatpush1.msra.mxu0 0.0
    %2347 = vmatprep.subr.mxu0 0.0
    %2348 = vmatpush1.msra.mxu0 0.0
    %2349 = vmatprep.subr.mxu0 0.0
    %2350 = vmatpush1.msra.mxu0 0.0
    %2351 = vmatprep.subr.mxu0 0.0
    %2352 = vmatpush1.msra.mxu0 0.0
    %2353 = vmatprep.subr.mxu0 0.0
    %2354 = vmatpush1.msra.mxu0 0.0
    %2355 = vmatprep.subr.mxu0 0.0
    %2356 = vmatpush1.msra.mxu0 0.0
    %2357 = vmatprep.subr.mxu0 0.0
    %2358 = vmatpush1.msra.mxu0 0.0
    %2359 = vmatprep.subr.mxu0 0.0
    %2360 = vmatpush1.msra.mxu0 0.0
    %2361 = vmatprep.subr.mxu0 0.0
    %2362 = vmatpush1.msra.mxu0 0.0
    %2363 = vmatprep.subr.mxu0 0.0
    %2364 = vmatpush1.msra.mxu0 0.0
    %2365 = vmatprep.subr.mxu0 0.0
    %2366 = vmatpush1.msra.mxu0 0.0
    %2367 = vmatprep.subr.mxu0 0.0
    %2368 = vmatpush1.msra.mxu0 0.0
    %2369 = vmatprep.subr.mxu0 0.0
    %2370 = vmatpush1.msra.mxu0 0.0
    %2371 = vmatprep.subr.mxu0 0.0
    %2372 = vmatpush1.msra.mxu0 0.0
    %2373 = vmatprep.subr.mxu0 0.0
    %2374 = vmatpush1.msra.mxu0 0.0
    %2375 = vmatprep.subr.mxu0 0.0
    %2376 = vmatpush1.msra.mxu0 0.0
    %2377 = vmatprep.subr.mxu0 0.0
    %2378 = vmatpush1.msra.mxu0 0.0
    %2379 = vmatprep.subr.mxu0 0.0
    %2380 = vmatpush1.msra.mxu0 0.0
    %2381 = vmatprep.subr.mxu0 0.0
    %2382 = vmatpush1.msra.mxu0 0.0
    %2383 = vmatprep.subr.mxu0 0.0
    %2384 = vmatpush1.msra.mxu0 0.0
    %2385 = vmatprep.subr.mxu0 0.0
    %2386 = vmatpush1.msra.mxu0 0.0
    %2387 = vmatprep.subr.mxu0 0.0
    %2388 = vmatpush1.msra.mxu0 0.0
    %2389 = vmatprep.mubr.f32.mxu0 0.0
    %2390 = vmatmul.mubr.f32.gmra.mrb[0].mxu0 %v2320
    %v2391 = vpop.f32.mrb[0].mxu0
    %v2392 = vadd.f32 %v2317, %v2391
    %v2393 = vpop.f32.mrb[0].mxu0
    %2394 = vmatprep.mubr.f32.mxu0 0.0
    %2395 = vmatmul.mubr.f32.gmra.mrb[0].mxu0 %v2323
    %v2396 = vpop.f32.mrb[0].mxu0
    %v2397 = vadd.f32 %v2317, %v2396
    %v2398 = vpop.f32.mrb[0].mxu0
    %2399 = vdwg.mxu0
    %v2401 = vsel %vm379, %v2397, 0
    %2403 = vmatprep.subr.mxu0 0.0
    %2404 = vmatpush1.msra.mxu0 %v2392
    %2405 = vmatprep.subr.mxu0 0.0
    %2406 = vmatpush1.msra.mxu0 %v2401
    %2407 = vmatprep.subr.mxu0 0.0
    %2408 = vmatpush1.msra.mxu0 0.0
    %2409 = vmatprep.subr.mxu0 0.0
    %2410 = vmatpush1.msra.mxu0 0.0
    %2411 = vmatprep.subr.mxu0 0.0
    %2412 = vmatpush1.msra.mxu0 0.0
    %2413 = vmatprep.subr.mxu0 0.0
    %2414 = vmatpush1.msra.mxu0 0.0
    %2415 = vmatprep.subr.mxu0 0.0
    %2416 = vmatpush1.msra.mxu0 0.0
    %2417 = vmatprep.subr.mxu0 0.0
    %2418 = vmatpush1.msra.mxu0 0.0
    %2419 = vmatprep.subr.mxu0 0.0
    %2420 = vmatpush1.msra.mxu0 0.0
    %2421 = vmatprep.subr.mxu0 0.0
    %2422 = vmatpush1.msra.mxu0 0.0
    %2423 = vmatprep.subr.mxu0 0.0
    %2424 = vmatpush1.msra.mxu0 0.0
    %2425 = vmatprep.subr.mxu0 0.0
    %2426 = vmatpush1.msra.mxu0 0.0
    %2427 = vmatprep.subr.mxu0 0.0
    %2428 = vmatpush1.msra.mxu0 0.0
    %2429 = vmatprep.subr.mxu0 0.0
    %2430 = vmatpush1.msra.mxu0 0.0
    %2431 = vmatprep.subr.mxu0 0.0
    %2432 = vmatpush1.msra.mxu0 0.0
    %2433 = vmatprep.subr.mxu0 0.0
    %2434 = vmatpush1.msra.mxu0 0.0
    %2435 = vmatprep.subr.mxu0 0.0
    %2436 = vmatpush1.msra.mxu0 0.0
    %2437 = vmatprep.subr.mxu0 0.0
    %2438 = vmatpush1.msra.mxu0 0.0
    %2439 = vmatprep.subr.mxu0 0.0
    %2440 = vmatpush1.msra.mxu0 0.0
    %2441 = vmatprep.subr.mxu0 0.0
    %2442 = vmatpush1.msra.mxu0 0.0
    %2443 = vmatprep.subr.mxu0 0.0
    %2444 = vmatpush1.msra.mxu0 0.0
    %2445 = vmatprep.subr.mxu0 0.0
    %2446 = vmatpush1.msra.mxu0 0.0
    %2447 = vmatprep.subr.mxu0 0.0
    %2448 = vmatpush1.msra.mxu0 0.0
    %2449 = vmatprep.subr.mxu0 0.0
    %2450 = vmatpush1.msra.mxu0 0.0
    %2451 = vmatprep.subr.mxu0 0.0
    %2452 = vmatpush1.msra.mxu0 0.0
    %2453 = vmatprep.subr.mxu0 0.0
    %2454 = vmatpush1.msra.mxu0 0.0
    %2455 = vmatprep.subr.mxu0 0.0
    %2456 = vmatpush1.msra.mxu0 0.0
    %2457 = vmatprep.subr.mxu0 0.0
    %2458 = vmatpush1.msra.mxu0 0.0
    %2459 = vmatprep.subr.mxu0 0.0
    %2460 = vmatpush1.msra.mxu0 0.0
    %2461 = vmatprep.subr.mxu0 0.0
    %2462 = vmatpush1.msra.mxu0 0.0
    %2463 = vmatprep.subr.mxu0 0.0
    %2464 = vmatpush1.msra.mxu0 0.0
    %2465 = vmatprep.subr.mxu0 0.0
    %2466 = vmatpush1.msra.mxu0 0.0
    %2467 = vmatprep.mubr.f32.mxu0 0.0
    %2468 = vmatmul.mubr.f32.gmra.mrb[0].mxu0 %v1191
    %v2469 = vpop.f32.mrb[0].mxu0
    %v2470 = vadd.f32 0.0, %v2469
    %v2471 = vpop.f32.mrb[0].mxu0
    %2472 = vmatprep.mubr.f32.mxu0 0.0
    %2473 = vmatmul.mubr.f32.gmra.mrb[0].mxu0 %v1194
    %v2474 = vpop.f32.mrb[0].mxu0
    %v2475 = vadd.f32 0.0, %v2474
    %v2476 = vpop.f32.mrb[0].mxu0
    %2477 = vdwg.mxu0
    %s2478 = scalar_lea.vmem %s9, 8
    %v2479 = vld [vmem:[%s2478] sm:$0xff]
    %s2480 = scalar_lea.vmem %s10, 8
    %v2481 = vld [vmem:[%s2480] sm:$0xff]
    %v2482 = vmul.f32 %v2470, %v2479
    %v2483 = vmul.f32 %v2475, %v2481
    %v2484 = vsub.f32 %v2482, %v2483
    %v2485 = vmul.f32 %v2470, %v2481
    %v2486 = vmul.f32 %v2475, %v2479
    %v2487 = vadd.f32 %v2485, %v2486
    %s2488 = scalar_lea.vmem %s11, 1
    %v2489 = vld [vmem:[%s2488] sm:$0x1]
    %v2491 = vlaneseq
    %v2492 = vshrl.u32 %v2491, 7
    %v2493 = vsub.s32 0, %v2492
    %v2494 = vrot.slane %v2489, %v2493
    %2496 = vmatprep.subr.mxu0 0.0
    %2497 = vmatpush1.msra.mxu0 %v2484
    %2498 = vmatprep.subr.mxu0 0.0
    %2499 = vmatpush1.msra.mxu0 %v2487
    %2500 = vmatprep.subr.mxu0 0.0
    %2501 = vmatpush1.msra.mxu0 0.0
    %2502 = vmatprep.subr.mxu0 0.0
    %2503 = vmatpush1.msra.mxu0 0.0
    %2504 = vmatprep.subr.mxu0 0.0
    %2505 = vmatpush1.msra.mxu0 0.0
    %2506 = vmatprep.subr.mxu0 0.0
    %2507 = vmatpush1.msra.mxu0 0.0
    %2508 = vmatprep.subr.mxu0 0.0
    %2509 = vmatpush1.msra.mxu0 0.0
    %2510 = vmatprep.subr.mxu0 0.0
    %2511 = vmatpush1.msra.mxu0 0.0
    %2512 = vmatprep.subr.mxu0 0.0
    %2513 = vmatpush1.msra.mxu0 0.0
    %2514 = vmatprep.subr.mxu0 0.0
    %2515 = vmatpush1.msra.mxu0 0.0
    %2516 = vmatprep.subr.mxu0 0.0
    %2517 = vmatpush1.msra.mxu0 0.0
    %2518 = vmatprep.subr.mxu0 0.0
    %2519 = vmatpush1.msra.mxu0 0.0
    %2520 = vmatprep.subr.mxu0 0.0
    %2521 = vmatpush1.msra.mxu0 0.0
    %2522 = vmatprep.subr.mxu0 0.0
    %2523 = vmatpush1.msra.mxu0 0.0
    %2524 = vmatprep.subr.mxu0 0.0
    %2525 = vmatpush1.msra.mxu0 0.0
    %2526 = vmatprep.subr.mxu0 0.0
    %2527 = vmatpush1.msra.mxu0 0.0
    %2528 = vmatprep.subr.mxu0 0.0
    %2529 = vmatpush1.msra.mxu0 0.0
    %2530 = vmatprep.subr.mxu0 0.0
    %2531 = vmatpush1.msra.mxu0 0.0
    %2532 = vmatprep.subr.mxu0 0.0
    %2533 = vmatpush1.msra.mxu0 0.0
    %2534 = vmatprep.subr.mxu0 0.0
    %2535 = vmatpush1.msra.mxu0 0.0
    %2536 = vmatprep.subr.mxu0 0.0
    %2537 = vmatpush1.msra.mxu0 0.0
    %2538 = vmatprep.subr.mxu0 0.0
    %2539 = vmatpush1.msra.mxu0 0.0
    %2540 = vmatprep.subr.mxu0 0.0
    %2541 = vmatpush1.msra.mxu0 0.0
    %2542 = vmatprep.subr.mxu0 0.0
    %2543 = vmatpush1.msra.mxu0 0.0
    %2544 = vmatprep.subr.mxu0 0.0
    %2545 = vmatpush1.msra.mxu0 0.0
    %2546 = vmatprep.subr.mxu0 0.0
    %2547 = vmatpush1.msra.mxu0 0.0
    %2548 = vmatprep.subr.mxu0 0.0
    %2549 = vmatpush1.msra.mxu0 0.0
    %2550 = vmatprep.subr.mxu0 0.0
    %2551 = vmatpush1.msra.mxu0 0.0
    %2552 = vmatprep.subr.mxu0 0.0
    %2553 = vmatpush1.msra.mxu0 0.0
    %2554 = vmatprep.subr.mxu0 0.0
    %2555 = vmatpush1.msra.mxu0 0.0
    %2556 = vmatprep.subr.mxu0 0.0
    %2557 = vmatpush1.msra.mxu0 0.0
    %2558 = vmatprep.subr.mxu0 0.0
    %2559 = vmatpush1.msra.mxu0 0.0
    %2560 = vmatprep.mubr.f32.mxu0 0.0
    %2561 = vmatmul.mubr.f32.gmra.mrb[0].mxu0 %v1290
    %v2562 = vpop.f32.mrb[0].mxu0
    %v2563 = vadd.f32 %v2494, %v2562
    %v2564 = vpop.f32.mrb[0].mxu0
    %2565 = vmatprep.mubr.f32.mxu0 0.0
    %2566 = vmatmul.mubr.f32.gmra.mrb[0].mxu0 %v1293
    %v2567 = vpop.f32.mrb[0].mxu0
    %v2568 = vpop.f32.mrb[0].mxu0
    %2569 = vdwg.mxu0
    %v2570 = vadd.f32 %v2563, %v2392
    %vm2571 = vcmask 253952
    %v2572 = vsel %vm2571, %v2570, 0.0
    %2573 = vadd.xlane.f32.xlu0 %v2572
    %v2574 = vpop.xlane.xlu0 %2573
    %v2575 = vrcp.pop 32.0
    %v2576 = vmul.f32 %v2574, %v2575
    %v2577 = vsub.f32 %v2570, %v2576
    %v2578 = vmul.f32 %v2577, %v2577
    %v2579 = vsel %vm2571, %v2578, 0.0
    %2580 = vadd.xlane.f32.xlu0 %v2579
    %v2581 = vpop.xlane.xlu0 %2580
    %v2582 = vmul.f32 %v2581, %v2575
    %v2583 = vadd.f32 %v2582, 1e-12
    %v2584 = vrsqrt.pop %v2583
    %v2585 = vmul.f32 %v2577, %v2584
    %v2586 = vmul.f32 %v2585, %v68
    %v2587 = vadd.f32 %v2586, %v69
    %v2589 = vsel %vm170, %v2587, 0
    %2591 = vmatprep.subr.mxu0 0.0
    %2592 = vmatpush1.msra.mxu0 %v70
    %2593 = vmatprep.subr.mxu0 0.0
    %2594 = vmatpush1.msra.mxu0 %v71
    %2595 = vmatprep.subr.mxu0 0.0
    %2596 = vmatpush1.msra.mxu0 %v72
    %2597 = vmatprep.subr.mxu0 0.0
    %2598 = vmatpush1.msra.mxu0 %v73
    %2599 = vmatprep.subr.mxu0 0.0
    %2600 = vmatpush1.msra.mxu0 0.0
    %2601 = vmatprep.subr.mxu0 0.0
    %2602 = vmatpush1.msra.mxu0 0.0
    %2603 = vmatprep.subr.mxu0 0.0
    %2604 = vmatpush1.msra.mxu0 0.0
    %2605 = vmatprep.subr.mxu0 0.0
    %2606 = vmatpush1.msra.mxu0 0.0
    %2607 = vmatprep.subr.mxu0 0.0
    %2608 = vmatpush1.msra.mxu0 0.0
    %2609 = vmatprep.subr.mxu0 0.0
    %2610 = vmatpush1.msra.mxu0 0.0
    %2611 = vmatprep.subr.mxu0 0.0
    %2612 = vmatpush1.msra.mxu0 0.0
    %2613 = vmatprep.subr.mxu0 0.0
    %2614 = vmatpush1.msra.mxu0 0.0
    %2615 = vmatprep.subr.mxu0 0.0
    %2616 = vmatpush1.msra.mxu0 0.0
    %2617 = vmatprep.subr.mxu0 0.0
    %2618 = vmatpush1.msra.mxu0 0.0
    %2619 = vmatprep.subr.mxu0 0.0
    %2620 = vmatpush1.msra.mxu0 0.0
    %2621 = vmatprep.subr.mxu0 0.0
    %2622 = vmatpush1.msra.mxu0 0.0
    %2623 = vmatprep.subr.mxu0 0.0
    %2624 = vmatpush1.msra.mxu0 0.0
    %2625 = vmatprep.subr.mxu0 0.0
    %2626 = vmatpush1.msra.mxu0 0.0
    %2627 = vmatprep.subr.mxu0 0.0
    %2628 = vmatpush1.msra.mxu0 0.0
    %2629 = vmatprep.subr.mxu0 0.0
    %2630 = vmatpush1.msra.mxu0 0.0
    %2631 = vmatprep.subr.mxu0 0.0
    %2632 = vmatpush1.msra.mxu0 0.0
    %2633 = vmatprep.subr.mxu0 0.0
    %2634 = vmatpush1.msra.mxu0 0.0
    %2635 = vmatprep.subr.mxu0 0.0
    %2636 = vmatpush1.msra.mxu0 0.0
    %2637 = vmatprep.subr.mxu0 0.0
    %2638 = vmatpush1.msra.mxu0 0.0
    %2639 = vmatprep.subr.mxu0 0.0
    %2640 = vmatpush1.msra.mxu0 0.0
    %2641 = vmatprep.subr.mxu0 0.0
    %2642 = vmatpush1.msra.mxu0 0.0
    %2643 = vmatprep.subr.mxu0 0.0
    %2644 = vmatpush1.msra.mxu0 0.0
    %2645 = vmatprep.subr.mxu0 0.0
    %2646 = vmatpush1.msra.mxu0 0.0
    %2647 = vmatprep.subr.mxu0 0.0
    %2648 = vmatpush1.msra.mxu0 0.0
    %2649 = vmatprep.subr.mxu0 0.0
    %2650 = vmatpush1.msra.mxu0 0.0
    %2651 = vmatprep.subr.mxu0 0.0
    %2652 = vmatpush1.msra.mxu0 0.0
    %2653 = vmatprep.subr.mxu0 0.0
    %2654 = vmatpush1.msra.mxu0 0.0
    %2655 = vmatprep.mubr.f32.mxu0 0.0
    %2656 = vmatmul.mubr.f32.gmra.mrb[0].mxu0 %v2589
    %v2657 = vpop.f32.mrb[0].mxu0
    %v2658 = vadd.f32 %v74, %v2657
    %v2659 = vpop.f32.mrb[0].mxu0
    %2660 = vdwg.mxu0
    %vm2661 = vcmask 32768
    %2662 = vst.msk [vmem:[#allocation2] sm:$0x1] %vm2661, %v2658
    %s2663 = scalar_lea.vmem %s0, 16
    %v2664 = vld [vmem:[%s2663] sm:$0xff]
    %v2665 = vld [vmem:[%s2663 + $0x8] sm:$0x7]
    %v2667 = vsel %vm77, %v2664, 0
    %v2670 = vsel %vm77, %v2665, 0
    %2672 = vmatprep.subr.mxu0 0.0
    %2673 = vmatpush1.msra.mxu0 %v54
    %2674 = vmatprep.subr.mxu0 0.0
    %2675 = vmatpush1.msra.mxu0 %v55
    %2676 = vmatprep.subr.mxu0 0.0
    %2677 = vmatpush1.msra.mxu0 %v56
    %2678 = vmatprep.subr.mxu0 0.0
    %2679 = vmatpush1.msra.mxu0 %v57
    %2680 = vmatprep.subr.mxu0 0.0
    %2681 = vmatpush1.msra.mxu0 %v58
    %2682 = vmatprep.subr.mxu0 0.0
    %2683 = vmatpush1.msra.mxu0 %v59
    %2684 = vmatprep.subr.mxu0 0.0
    %2685 = vmatpush1.msra.mxu0 %v60
    %2686 = vmatprep.subr.mxu0 0.0
    %2687 = vmatpush1.msra.mxu0 %v61
    %2688 = vmatprep.subr.mxu0 0.0
    %2689 = vmatpush1.msra.mxu0 0.0
    %2690 = vmatprep.subr.mxu0 0.0
    %2691 = vmatpush1.msra.mxu0 0.0
    %2692 = vmatprep.subr.mxu0 0.0
    %2693 = vmatpush1.msra.mxu0 0.0
    %2694 = vmatprep.subr.mxu0 0.0
    %2695 = vmatpush1.msra.mxu0 0.0
    %2696 = vmatprep.subr.mxu0 0.0
    %2697 = vmatpush1.msra.mxu0 0.0
    %2698 = vmatprep.subr.mxu0 0.0
    %2699 = vmatpush1.msra.mxu0 0.0
    %2700 = vmatprep.subr.mxu0 0.0
    %2701 = vmatpush1.msra.mxu0 0.0
    %2702 = vmatprep.subr.mxu0 0.0
    %2703 = vmatpush1.msra.mxu0 0.0
    %2704 = vmatprep.subr.mxu0 0.0
    %2705 = vmatpush1.msra.mxu0 0.0
    %2706 = vmatprep.subr.mxu0 0.0
    %2707 = vmatpush1.msra.mxu0 0.0
    %2708 = vmatprep.subr.mxu0 0.0
    %2709 = vmatpush1.msra.mxu0 0.0
    %2710 = vmatprep.subr.mxu0 0.0
    %2711 = vmatpush1.msra.mxu0 0.0
    %2712 = vmatprep.subr.mxu0 0.0
    %2713 = vmatpush1.msra.mxu0 0.0
    %2714 = vmatprep.subr.mxu0 0.0
    %2715 = vmatpush1.msra.mxu0 0.0
    %2716 = vmatprep.subr.mxu0 0.0
    %2717 = vmatpush1.msra.mxu0 0.0
    %2718 = vmatprep.subr.mxu0 0.0
    %2719 = vmatpush1.msra.mxu0 0.0
    %2720 = vmatprep.subr.mxu0 0.0
    %2721 = vmatpush1.msra.mxu0 0.0
    %2722 = vmatprep.subr.mxu0 0.0
    %2723 = vmatpush1.msra.mxu0 0.0
    %2724 = vmatprep.subr.mxu0 0.0
    %2725 = vmatpush1.msra.mxu0 0.0
    %2726 = vmatprep.subr.mxu0 0.0
    %2727 = vmatpush1.msra.mxu0 0.0
    %2728 = vmatprep.subr.mxu0 0.0
    %2729 = vmatpush1.msra.mxu0 0.0
    %2730 = vmatprep.subr.mxu0 0.0
    %2731 = vmatpush1.msra.mxu0 0.0
    %2732 = vmatprep.subr.mxu0 0.0
    %2733 = vmatpush1.msra.mxu0 0.0
    %2734 = vmatprep.subr.mxu0 0.0
    %2735 = vmatpush1.msra.mxu0 0.0
    %2736 = vmatprep.mubr.f32.mxu0 0.0
    %2737 = vmatmul.mubr.f32.gmra.mrb[0].mxu0 %v2667
    %v2738 = vpop.f32.mrb[0].mxu0
    %v2739 = vadd.f32 %v62, %v2738
    %v2740 = vpop.f32.mrb[0].mxu0
    %2741 = vmatprep.mubr.f32.mxu0 0.0
    %2742 = vmatmul.mubr.f32.gmra.mrb[0].mxu0 %v2670
    %v2743 = vpop.f32.mrb[0].mxu0
    %v2744 = vadd.f32 %v63, %v2743
    %v2745 = vpop.f32.mrb[0].mxu0
    %2746 = vdwg.mxu0
    %v2747 = vld [vmem:[%s3] sm:$0xff]
    %v2748 = vld [vmem:[%s3 + $0x8] sm:$0xff]
    %v2749 = vld [vmem:[%s3 + $0x10] sm:$0xff]
    %v2750 = vld [vmem:[%s3 + $0x18] sm:$0xff]
    %v2751 = vld [vmem:[%s4] sm:$0x1]
    %v2753 = vlaneseq
    %v2754 = vshrl.u32 %v2753, 7
    %v2755 = vsub.s32 0, %v2754
    %v2756 = vrot.slane %v2751, %v2755
    %v2759 = vsel %vm170, %v2739, 0
    %v2762 = vsel %vm170, %v2744, 0
    %2764 = vmatprep.subr.mxu0 0.0
    %2765 = vmatpush1.msra.mxu0 %v2747
    %2766 = vmatprep.subr.mxu0 0.0
    %2767 = vmatpush1.msra.mxu0 %v2748
    %2768 = vmatprep.subr.mxu0 0.0
    %2769 = vmatpush1.msra.mxu0 %v2749
    %2770 = vmatprep.subr.mxu0 0.0
    %2771 = vmatpush1.msra.mxu0 %v2750
    %2772 = vmatprep.subr.mxu0 0.0
    %2773 = vmatpush1.msra.mxu0 0.0
    %2774 = vmatprep.subr.mxu0 0.0
    %2775 = vmatpush1.msra.mxu0 0.0
    %2776 = vmatprep.subr.mxu0 0.0
    %2777 = vmatpush1.msra.mxu0 0.0
    %2778 = vmatprep.subr.mxu0 0.0
    %2779 = vmatpush1.msra.mxu0 0.0
    %2780 = vmatprep.subr.mxu0 0.0
    %2781 = vmatpush1.msra.mxu0 0.0
    %2782 = vmatprep.subr.mxu0 0.0
    %2783 = vmatpush1.msra.mxu0 0.0
    %2784 = vmatprep.subr.mxu0 0.0
    %2785 = vmatpush1.msra.mxu0 0.0
    %2786 = vmatprep.subr.mxu0 0.0
    %2787 = vmatpush1.msra.mxu0 0.0
    %2788 = vmatprep.subr.mxu0 0.0
    %2789 = vmatpush1.msra.mxu0 0.0
    %2790 = vmatprep.subr.mxu0 0.0
    %2791 = vmatpush1.msra.mxu0 0.0
    %2792 = vmatprep.subr.mxu0 0.0
    %2793 = vmatpush1.msra.mxu0 0.0
    %2794 = vmatprep.subr.mxu0 0.0
    %2795 = vmatpush1.msra.mxu0 0.0
    %2796 = vmatprep.subr.mxu0 0.0
    %2797 = vmatpush1.msra.mxu0 0.0
    %2798 = vmatprep.subr.mxu0 0.0
    %2799 = vmatpush1.msra.mxu0 0.0
    %2800 = vmatprep.subr.mxu0 0.0
    %2801 = vmatpush1.msra.mxu0 0.0
    %2802 = vmatprep.subr.mxu0 0.0
    %2803 = vmatpush1.msra.mxu0 0.0
    %2804 = vmatprep.subr.mxu0 0.0
    %2805 = vmatpush1.msra.mxu0 0.0
    %2806 = vmatprep.subr.mxu0 0.0
    %2807 = vmatpush1.msra.mxu0 0.0
    %2808 = vmatprep.subr.mxu0 0.0
    %2809 = vmatpush1.msra.mxu0 0.0
    %2810 = vmatprep.subr.mxu0 0.0
    %2811 = vmatpush1.msra.mxu0 0.0
    %2812 = vmatprep.subr.mxu0 0.0
    %2813 = vmatpush1.msra.mxu0 0.0
    %2814 = vmatprep.subr.mxu0 0.0
    %2815 = vmatpush1.msra.mxu0 0.0
    %2816 = vmatprep.subr.mxu0 0.0
    %2817 = vmatpush1.msra.mxu0 0.0
    %2818 = vmatprep.subr.mxu0 0.0
    %2819 = vmatpush1.msra.mxu0 0.0
    %2820 = vmatprep.subr.mxu0 0.0
    %2821 = vmatpush1.msra.mxu0 0.0
    %2822 = vmatprep.subr.mxu0 0.0
    %2823 = vmatpush1.msra.mxu0 0.0
    %2824 = vmatprep.subr.mxu0 0.0
    %2825 = vmatpush1.msra.mxu0 0.0
    %2826 = vmatprep.subr.mxu0 0.0
    %2827 = vmatpush1.msra.mxu0 0.0
    %2828 = vmatprep.mubr.f32.mxu0 0.0
    %2829 = vmatmul.mubr.f32.gmra.mrb[0].mxu0 %v2759
    %v2830 = vpop.f32.mrb[0].mxu0
    %v2831 = vadd.f32 %v2756, %v2830
    %v2832 = vpop.f32.mrb[0].mxu0
    %2833 = vmatprep.mubr.f32.mxu0 0.0
    %2834 = vmatmul.mubr.f32.gmra.mrb[0].mxu0 %v2762
    %v2835 = vpop.f32.mrb[0].mxu0
    %v2836 = vadd.f32 %v2756, %v2835
    %v2837 = vpop.f32.mrb[0].mxu0
    %2838 = vdwg.mxu0
    %2841 = vrot.lane.b32.xlu0 %v2831, 96
    %v2842 = vpop.permute.xlu0 %2841
    %2843 = vrot.lane.b32.xlu0 %v2836, 96
    %v2844 = vpop.permute.xlu0 %2843
    %v2845 = vsel %vm258, %v2831, 0
    %v2847 = vsel %vm258, %v2836, 0
    %v2849 = vsel %vm258, %v2842, 0
    %v2851 = vsel %vm258, %v2844, 0
    %2853 = vmatprep.subr.mxu0 0.0
    %2854 = vmatpush1.xpose.msra.mxu0 %v2849
    %2855 = vmatprep.subr.mxu0 0.0
    %2856 = vmatpush1.xpose.msra.mxu0 %v2851
    %2857 = vmatprep.subr.mxu0 0.0
    %2858 = vmatpush1.xpose.msra.mxu0 0.0
    %2859 = vmatprep.subr.mxu0 0.0
    %2860 = vmatpush1.xpose.msra.mxu0 0.0
    %2861 = vmatprep.subr.mxu0 0.0
    %2862 = vmatpush1.xpose.msra.mxu0 0.0
    %2863 = vmatprep.subr.mxu0 0.0
    %2864 = vmatpush1.xpose.msra.mxu0 0.0
    %2865 = vmatprep.subr.mxu0 0.0
    %2866 = vmatpush1.xpose.msra.mxu0 0.0
    %2867 = vmatprep.subr.mxu0 0.0
    %2868 = vmatpush1.xpose.msra.mxu0 0.0
    %2869 = vmatprep.subr.mxu0 0.0
    %2870 = vmatpush1.xpose.msra.mxu0 0.0
    %2871 = vmatprep.subr.mxu0 0.0
    %2872 = vmatpush1.xpose.msra.mxu0 0.0
    %2873 = vmatprep.subr.mxu0 0.0
    %2874 = vmatpush1.xpose.msra.mxu0 0.0
    %2875 = vmatprep.subr.mxu0 0.0
    %2876 = vmatpush1.xpose.msra.mxu0 0.0
    %2877 = vmatprep.subr.mxu0 0.0
    %2878 = vmatpush1.xpose.msra.mxu0 0.0
    %2879 = vmatprep.subr.mxu0 0.0
    %2880 = vmatpush1.xpose.msra.mxu0 0.0
    %2881 = vmatprep.subr.mxu0 0.0
    %2882 = vmatpush1.xpose.msra.mxu0 0.0
    %2883 = vmatprep.subr.mxu0 0.0
    %2884 = vmatpush1.xpose.msra.mxu0 0.0
    %2885 = vmatprep.subr.mxu0 0.0
    %2886 = vmatpush1.xpose.msra.mxu0 0.0
    %2887 = vmatprep.subr.mxu0 0.0
    %2888 = vmatpush1.xpose.msra.mxu0 0.0
    %2889 = vmatprep.subr.mxu0 0.0
    %2890 = vmatpush1.xpose.msra.mxu0 0.0
    %2891 = vmatprep.subr.mxu0 0.0
    %2892 = vmatpush1.xpose.msra.mxu0 0.0
    %2893 = vmatprep.subr.mxu0 0.0
    %2894 = vmatpush1.xpose.msra.mxu0 0.0
    %2895 = vmatprep.subr.mxu0 0.0
    %2896 = vmatpush1.xpose.msra.mxu0 0.0
    %2897 = vmatprep.subr.mxu0 0.0
    %2898 = vmatpush1.xpose.msra.mxu0 0.0
    %2899 = vmatprep.subr.mxu0 0.0
    %2900 = vmatpush1.xpose.msra.mxu0 0.0
    %2901 = vmatprep.subr.mxu0 0.0
    %2902 = vmatpush1.xpose.msra.mxu0 0.0
    %2903 = vmatprep.subr.mxu0 0.0
    %2904 = vmatpush1.xpose.msra.mxu0 0.0
    %2905 = vmatprep.subr.mxu0 0.0
    %2906 = vmatpush1.xpose.msra.mxu0 0.0
    %2907 = vmatprep.subr.mxu0 0.0
    %2908 = vmatpush1.xpose.msra.mxu0 0.0
    %2909 = vmatprep.subr.mxu0 0.0
    %2910 = vmatpush1.xpose.msra.mxu0 0.0
    %2911 = vmatprep.subr.mxu0 0.0
    %2912 = vmatpush1.xpose.msra.mxu0 0.0
    %2913 = vmatprep.subr.mxu0 0.0
    %2914 = vmatpush1.xpose.msra.mxu0 0.0
    %2915 = vmatprep.subr.mxu0 0.0
    %2916 = vmatpush1.xpose.msra.mxu0 0.0
    %2917 = vmatprep.mubr.f32.mxu0 0.0
    %2918 = vmatmul.mubr.f32.gmra.mrb[0].mxu0 %v2845
    %v2919 = vpop.f32.mrb[0].mxu0
    %v2920 = vadd.f32 0.0, %v2919
    %v2921 = vpop.f32.mrb[0].mxu0
    %2922 = vmatprep.mubr.f32.mxu0 0.0
    %2923 = vmatmul.mubr.f32.gmra.mrb[0].mxu0 %v2847
    %v2924 = vpop.f32.mrb[0].mxu0
    %v2925 = vadd.f32 0.0, %v2924
    %v2926 = vpop.f32.mrb[0].mxu0
    %2927 = vdwg.mxu0
    %v2928 = vmul.f32 %v2920, 0.35355338
    %v2929 = vmul.f32 %v2925, 0.35355338
    %v2930 = vsel %vm344, %v2928, -inf
    %2931 = vmax.xlane.f32.xlu0 %v2930
    %v2932 = vpop.xlane.xlu0 %2931
    %v2933 = vsel %vm348, %v2929, -inf
    %2934 = vmax.xlane.f32.xlu0 %v2933
    %v2935 = vpop.xlane.xlu0 %2934
    %v2936 = vsub.f32 %v2928, %v2932
    %v2937 = vsub.f32 %v2929, %v2935
    %v2938 = vmul.f32 %v2936, 1.442695
    %v2939 = vpow.pop %v2938
    %v2940 = vmul.f32 %v2937, 1.442695
    %v2941 = vpow.pop %v2940
    %v2942 = vsel %vm344, %v2939, 0.0
    %2943 = vadd.xlane.f32.xlu0 %v2942
    %v2944 = vpop.xlane.xlu0 %2943
    %v2945 = vsel %vm348, %v2941, 0.0
    %2946 = vadd.xlane.f32.xlu0 %v2945
    %v2947 = vpop.xlane.xlu0 %2946
    %v2948 = vrcp.pop %v2944
    %v2949 = vrcp.pop %v2947
    %v2950 = vmul.f32 %v2939, %v2948
    %v2951 = vmul.f32 %v2941, %v2949
    %2952 = vrot.lane.b32.xlu0 %v2831, 64
    %v2953 = vpop.permute.xlu0 %2952
    %2954 = vrot.lane.b32.xlu0 %v2836, 64
    %v2955 = vpop.permute.xlu0 %2954
    %v2958 = vsel %vm344, %v2950, 0
    %v2961 = vsel %vm344, %v2951, 0
    %v2963 = vsel %vm379, %v2955, 0
    %2965 = vmatprep.subr.mxu0 0.0
    %2966 = vmatpush1.msra.mxu0 %v2953
    %2967 = vmatprep.subr.mxu0 0.0
    %2968 = vmatpush1.msra.mxu0 %v2963
    %2969 = vmatprep.subr.mxu0 0.0
    %2970 = vmatpush1.msra.mxu0 0.0
    %2971 = vmatprep.subr.mxu0 0.0
    %2972 = vmatpush1.msra.mxu0 0.0
    %2973 = vmatprep.subr.mxu0 0.0
    %2974 = vmatpush1.msra.mxu0 0.0
    %2975 = vmatprep.subr.mxu0 0.0
    %2976 = vmatpush1.msra.mxu0 0.0
    %2977 = vmatprep.subr.mxu0 0.0
    %2978 = vmatpush1.msra.mxu0 0.0
    %2979 = vmatprep.subr.mxu0 0.0
    %2980 = vmatpush1.msra.mxu0 0.0
    %2981 = vmatprep.subr.mxu0 0.0
    %2982 = vmatpush1.msra.mxu0 0.0
    %2983 = vmatprep.subr.mxu0 0.0
    %2984 = vmatpush1.msra.mxu0 0.0
    %2985 = vmatprep.subr.mxu0 0.0
    %2986 = vmatpush1.msra.mxu0 0.0
    %2987 = vmatprep.subr.mxu0 0.0
    %2988 = vmatpush1.msra.mxu0 0.0
    %2989 = vmatprep.subr.mxu0 0.0
    %2990 = vmatpush1.msra.mxu0 0.0
    %2991 = vmatprep.subr.mxu0 0.0
    %2992 = vmatpush1.msra.mxu0 0.0
    %2993 = vmatprep.subr.mxu0 0.0
    %2994 = vmatpush1.msra.mxu0 0.0
    %2995 = vmatprep.subr.mxu0 0.0
    %2996 = vmatpush1.msra.mxu0 0.0
    %2997 = vmatprep.subr.mxu0 0.0
    %2998 = vmatpush1.msra.mxu0 0.0
    %2999 = vmatprep.subr.mxu0 0.0
    %3000 = vmatpush1.msra.mxu0 0.0
    %3001 = vmatprep.subr.mxu0 0.0
    %3002 = vmatpush1.msra.mxu0 0.0
    %3003 = vmatprep.subr.mxu0 0.0
    %3004 = vmatpush1.msra.mxu0 0.0
    %3005 = vmatprep.subr.mxu0 0.0
    %3006 = vmatpush1.msra.mxu0 0.0
    %3007 = vmatprep.subr.mxu0 0.0
    %3008 = vmatpush1.msra.mxu0 0.0
    %3009 = vmatprep.subr.mxu0 0.0
    %3010 = vmatpush1.msra.mxu0 0.0
    %3011 = vmatprep.subr.mxu0 0.0
    %3012 = vmatpush1.msra.mxu0 0.0
    %3013 = vmatprep.subr.mxu0 0.0
    %3014 = vmatpush1.msra.mxu0 0.0
    %3015 = vmatprep.subr.mxu0 0.0
    %3016 = vmatpush1.msra.mxu0 0.0
    %3017 = vmatprep.subr.mxu0 0.0
    %3018 = vmatpush1.msra.mxu0 0.0
    %3019 = vmatprep.subr.mxu0 0.0
    %3020 = vmatpush1.msra.mxu0 0.0
    %3021 = vmatprep.subr.mxu0 0.0
    %3022 = vmatpush1.msra.mxu0 0.0
    %3023 = vmatprep.subr.mxu0 0.0
    %3024 = vmatpush1.msra.mxu0 0.0
    %3025 = vmatprep.subr.mxu0 0.0
    %3026 = vmatpush1.msra.mxu0 0.0
    %3027 = vmatprep.subr.mxu0 0.0
    %3028 = vmatpush1.msra.mxu0 0.0
    %3029 = vmatprep.mubr.f32.mxu0 0.0
    %3030 = vmatmul.mubr.f32.gmra.mrb[0].mxu0 %v2958
    %v3031 = vpop.f32.mrb[0].mxu0
    %v3032 = vadd.f32 0.0, %v3031
    %v3033 = vpop.f32.mrb[0].mxu0
    %3034 = vmatprep.mubr.f32.mxu0 0.0
    %3035 = vmatmul.mubr.f32.gmra.mrb[0].mxu0 %v2961
    %v3036 = vpop.f32.mrb[0].mxu0
    %v3037 = vadd.f32 0.0, %v3036
    %v3038 = vpop.f32.mrb[0].mxu0
    %3039 = vdwg.mxu0
    %3040 = vrot.lane.b32.xlu0 %v2831, 120
    %v3041 = vpop.permute.xlu0 %3040
    %3042 = vrot.lane.b32.xlu0 %v2836, 120
    %v3043 = vpop.permute.xlu0 %3042
    %3044 = vrot.lane.b32.xlu0 %v2831, 88
    %v3045 = vpop.permute.xlu0 %3044
    %3046 = vrot.lane.b32.xlu0 %v2836, 88
    %v3047 = vpop.permute.xlu0 %3046
    %v3048 = vsel %vm258, %v3041, 0
    %v3050 = vsel %vm258, %v3043, 0
    %v3052 = vsel %vm258, %v3045, 0
    %v3054 = vsel %vm258, %v3047, 0
    %3056 = vmatprep.subr.mxu0 0.0
    %3057 = vmatpush1.xpose.msra.mxu0 %v3052
    %3058 = vmatprep.subr.mxu0 0.0
    %3059 = vmatpush1.xpose.msra.mxu0 %v3054
    %3060 = vmatprep.subr.mxu0 0.0
    %3061 = vmatpush1.xpose.msra.mxu0 0.0
    %3062 = vmatprep.subr.mxu0 0.0
    %3063 = vmatpush1.xpose.msra.mxu0 0.0
    %3064 = vmatprep.subr.mxu0 0.0
    %3065 = vmatpush1.xpose.msra.mxu0 0.0
    %3066 = vmatprep.subr.mxu0 0.0
    %3067 = vmatpush1.xpose.msra.mxu0 0.0
    %3068 = vmatprep.subr.mxu0 0.0
    %3069 = vmatpush1.xpose.msra.mxu0 0.0
    %3070 = vmatprep.subr.mxu0 0.0
    %3071 = vmatpush1.xpose.msra.mxu0 0.0
    %3072 = vmatprep.subr.mxu0 0.0
    %3073 = vmatpush1.xpose.msra.mxu0 0.0
    %3074 = vmatprep.subr.mxu0 0.0
    %3075 = vmatpush1.xpose.msra.mxu0 0.0
    %3076 = vmatprep.subr.mxu0 0.0
    %3077 = vmatpush1.xpose.msra.mxu0 0.0
    %3078 = vmatprep.subr.mxu0 0.0
    %3079 = vmatpush1.xpose.msra.mxu0 0.0
    %3080 = vmatprep.subr.mxu0 0.0
    %3081 = vmatpush1.xpose.msra.mxu0 0.0
    %3082 = vmatprep.subr.mxu0 0.0
    %3083 = vmatpush1.xpose.msra.mxu0 0.0
    %3084 = vmatprep.subr.mxu0 0.0
    %3085 = vmatpush1.xpose.msra.mxu0 0.0
    %3086 = vmatprep.subr.mxu0 0.0
    %3087 = vmatpush1.xpose.msra.mxu0 0.0
    %3088 = vmatprep.subr.mxu0 0.0
    %3089 = vmatpush1.xpose.msra.mxu0 0.0
    %3090 = vmatprep.subr.mxu0 0.0
    %3091 = vmatpush1.xpose.msra.mxu0 0.0
    %3092 = vmatprep.subr.mxu0 0.0
    %3093 = vmatpush1.xpose.msra.mxu0 0.0
    %3094 = vmatprep.subr.mxu0 0.0
    %3095 = vmatpush1.xpose.msra.mxu0 0.0
    %3096 = vmatprep.subr.mxu0 0.0
    %3097 = vmatpush1.xpose.msra.mxu0 0.0
    %3098 = vmatprep.subr.mxu0 0.0
    %3099 = vmatpush1.xpose.msra.mxu0 0.0
    %3100 = vmatprep.subr.mxu0 0.0
    %3101 = vmatpush1.xpose.msra.mxu0 0.0
    %3102 = vmatprep.subr.mxu0 0.0
    %3103 = vmatpush1.xpose.msra.mxu0 0.0
    %3104 = vmatprep.subr.mxu0 0.0
    %3105 = vmatpush1.xpose.msra.mxu0 0.0
    %3106 = vmatprep.subr.mxu0 0.0
    %3107 = vmatpush1.xpose.msra.mxu0 0.0
    %3108 = vmatprep.subr.mxu0 0.0
    %3109 = vmatpush1.xpose.msra.mxu0 0.0
    %3110 = vmatprep.subr.mxu0 0.0
    %3111 = vmatpush1.xpose.msra.mxu0 0.0
    %3112 = vmatprep.subr.mxu0 0.0
    %3113 = vmatpush1.xpose.msra.mxu0 0.0
    %3114 = vmatprep.subr.mxu0 0.0
    %3115 = vmatpush1.xpose.msra.mxu0 0.0
    %3116 = vmatprep.subr.mxu0 0.0
    %3117 = vmatpush1.xpose.msra.mxu0 0.0
    %3118 = vmatprep.subr.mxu0 0.0
    %3119 = vmatpush1.xpose.msra.mxu0 0.0
    %3120 = vmatprep.mubr.f32.mxu0 0.0
    %3121 = vmatmul.mubr.f32.gmra.mrb[0].mxu0 %v3048
    %v3122 = vpop.f32.mrb[0].mxu0
    %v3123 = vadd.f32 0.0, %v3122
    %v3124 = vpop.f32.mrb[0].mxu0
    %3125 = vmatprep.mubr.f32.mxu0 0.0
    %3126 = vmatmul.mubr.f32.gmra.mrb[0].mxu0 %v3050
    %v3127 = vpop.f32.mrb[0].mxu0
    %v3128 = vadd.f32 0.0, %v3127
    %v3129 = vpop.f32.mrb[0].mxu0
    %3130 = vdwg.mxu0
    %v3131 = vmul.f32 %v3123, 0.35355338
    %v3132 = vmul.f32 %v3128, 0.35355338
    %v3133 = vsel %vm344, %v3131, -inf
    %3134 = vmax.xlane.f32.xlu0 %v3133
    %v3135 = vpop.xlane.xlu0 %3134
    %v3136 = vsel %vm348, %v3132, -inf
    %3137 = vmax.xlane.f32.xlu0 %v3136
    %v3138 = vpop.xlane.xlu0 %3137
    %v3139 = vsub.f32 %v3131, %v3135
    %v3140 = vsub.f32 %v3132, %v3138
    %v3141 = vmul.f32 %v3139, 1.442695
    %v3142 = vpow.pop %v3141
    %v3143 = vmul.f32 %v3140, 1.442695
    %v3144 = vpow.pop %v3143
    %v3145 = vsel %vm344, %v3142, 0.0
    %3146 = vadd.xlane.f32.xlu0 %v3145
    %v3147 = vpop.xlane.xlu0 %3146
    %v3148 = vsel %vm348, %v3144, 0.0
    %3149 = vadd.xlane.f32.xlu0 %v3148
    %v3150 = vpop.xlane.xlu0 %3149
    %v3151 = vrcp.pop %v3147
    %v3152 = vrcp.pop %v3150
    %v3153 = vmul.f32 %v3142, %v3151
    %v3154 = vmul.f32 %v3144, %v3152
    %3155 = vrot.lane.b32.xlu0 %v2831, 56
    %v3156 = vpop.permute.xlu0 %3155
    %3157 = vrot.lane.b32.xlu0 %v2836, 56
    %v3158 = vpop.permute.xlu0 %3157
    %v3161 = vsel %vm344, %v3153, 0
    %v3164 = vsel %vm344, %v3154, 0
    %v3166 = vsel %vm379, %v3158, 0
    %3168 = vmatprep.subr.mxu0 0.0
    %3169 = vmatpush1.msra.mxu0 %v3156
    %3170 = vmatprep.subr.mxu0 0.0
    %3171 = vmatpush1.msra.mxu0 %v3166
    %3172 = vmatprep.subr.mxu0 0.0
    %3173 = vmatpush1.msra.mxu0 0.0
    %3174 = vmatprep.subr.mxu0 0.0
    %3175 = vmatpush1.msra.mxu0 0.0
    %3176 = vmatprep.subr.mxu0 0.0
    %3177 = vmatpush1.msra.mxu0 0.0
    %3178 = vmatprep.subr.mxu0 0.0
    %3179 = vmatpush1.msra.mxu0 0.0
    %3180 = vmatprep.subr.mxu0 0.0
    %3181 = vmatpush1.msra.mxu0 0.0
    %3182 = vmatprep.subr.mxu0 0.0
    %3183 = vmatpush1.msra.mxu0 0.0
    %3184 = vmatprep.subr.mxu0 0.0
    %3185 = vmatpush1.msra.mxu0 0.0
    %3186 = vmatprep.subr.mxu0 0.0
    %3187 = vmatpush1.msra.mxu0 0.0
    %3188 = vmatprep.subr.mxu0 0.0
    %3189 = vmatpush1.msra.mxu0 0.0
    %3190 = vmatprep.subr.mxu0 0.0
    %3191 = vmatpush1.msra.mxu0 0.0
    %3192 = vmatprep.subr.mxu0 0.0
    %3193 = vmatpush1.msra.mxu0 0.0
    %3194 = vmatprep.subr.mxu0 0.0
    %3195 = vmatpush1.msra.mxu0 0.0
    %3196 = vmatprep.subr.mxu0 0.0
    %3197 = vmatpush1.msra.mxu0 0.0
    %3198 = vmatprep.subr.mxu0 0.0
    %3199 = vmatpush1.msra.mxu0 0.0
    %3200 = vmatprep.subr.mxu0 0.0
    %3201 = vmatpush1.msra.mxu0 0.0
    %3202 = vmatprep.subr.mxu0 0.0
    %3203 = vmatpush1.msra.mxu0 0.0
    %3204 = vmatprep.subr.mxu0 0.0
    %3205 = vmatpush1.msra.mxu0 0.0
    %3206 = vmatprep.subr.mxu0 0.0
    %3207 = vmatpush1.msra.mxu0 0.0
    %3208 = vmatprep.subr.mxu0 0.0
    %3209 = vmatpush1.msra.mxu0 0.0
    %3210 = vmatprep.subr.mxu0 0.0
    %3211 = vmatpush1.msra.mxu0 0.0
    %3212 = vmatprep.subr.mxu0 0.0
    %3213 = vmatpush1.msra.mxu0 0.0
    %3214 = vmatprep.subr.mxu0 0.0
    %3215 = vmatpush1.msra.mxu0 0.0
    %3216 = vmatprep.subr.mxu0 0.0
    %3217 = vmatpush1.msra.mxu0 0.0
    %3218 = vmatprep.subr.mxu0 0.0
    %3219 = vmatpush1.msra.mxu0 0.0
    %3220 = vmatprep.subr.mxu0 0.0
    %3221 = vmatpush1.msra.mxu0 0.0
    %3222 = vmatprep.subr.mxu0 0.0
    %3223 = vmatpush1.msra.mxu0 0.0
    %3224 = vmatprep.subr.mxu0 0.0
    %3225 = vmatpush1.msra.mxu0 0.0
    %3226 = vmatprep.subr.mxu0 0.0
    %3227 = vmatpush1.msra.mxu0 0.0
    %3228 = vmatprep.subr.mxu0 0.0
    %3229 = vmatpush1.msra.mxu0 0.0
    %3230 = vmatprep.subr.mxu0 0.0
    %3231 = vmatpush1.msra.mxu0 0.0
    %3232 = vmatprep.mubr.f32.mxu0 0.0
    %3233 = vmatmul.mubr.f32.gmra.mrb[0].mxu0 %v3161
    %v3234 = vpop.f32.mrb[0].mxu0
    %v3235 = vadd.f32 0.0, %v3234
    %v3236 = vpop.f32.mrb[0].mxu0
    %3237 = vmatprep.mubr.f32.mxu0 0.0
    %3238 = vmatmul.mubr.f32.gmra.mrb[0].mxu0 %v3164
    %v3239 = vpop.f32.mrb[0].mxu0
    %v3240 = vadd.f32 0.0, %v3239
    %v3241 = vpop.f32.mrb[0].mxu0
    %3242 = vdwg.mxu0
    %3243 = vrot.lane.b32.xlu0 %v2831, 112
    %v3244 = vpop.permute.xlu0 %3243
    %3245 = vrot.lane.b32.xlu0 %v2836, 112
    %v3246 = vpop.permute.xlu0 %3245
    %3247 = vrot.lane.b32.xlu0 %v2831, 80
    %v3248 = vpop.permute.xlu0 %3247
    %3249 = vrot.lane.b32.xlu0 %v2836, 80
    %v3250 = vpop.permute.xlu0 %3249
    %v3251 = vsel %vm258, %v3244, 0
    %v3253 = vsel %vm258, %v3246, 0
    %v3255 = vsel %vm258, %v3248, 0
    %v3257 = vsel %vm258, %v3250, 0
    %3259 = vmatprep.subr.mxu0 0.0
    %3260 = vmatpush1.xpose.msra.mxu0 %v3255
    %3261 = vmatprep.subr.mxu0 0.0
    %3262 = vmatpush1.xpose.msra.mxu0 %v3257
    %3263 = vmatprep.subr.mxu0 0.0
    %3264 = vmatpush1.xpose.msra.mxu0 0.0
    %3265 = vmatprep.subr.mxu0 0.0
    %3266 = vmatpush1.xpose.msra.mxu0 0.0
    %3267 = vmatprep.subr.mxu0 0.0
    %3268 = vmatpush1.xpose.msra.mxu0 0.0
    %3269 = vmatprep.subr.mxu0 0.0
    %3270 = vmatpush1.xpose.msra.mxu0 0.0
    %3271 = vmatprep.subr.mxu0 0.0
    %3272 = vmatpush1.xpose.msra.mxu0 0.0
    %3273 = vmatprep.subr.mxu0 0.0
    %3274 = vmatpush1.xpose.msra.mxu0 0.0
    %3275 = vmatprep.subr.mxu0 0.0
    %3276 = vmatpush1.xpose.msra.mxu0 0.0
    %3277 = vmatprep.subr.mxu0 0.0
    %3278 = vmatpush1.xpose.msra.mxu0 0.0
    %3279 = vmatprep.subr.mxu0 0.0
    %3280 = vmatpush1.xpose.msra.mxu0 0.0
    %3281 = vmatprep.subr.mxu0 0.0
    %3282 = vmatpush1.xpose.msra.mxu0 0.0
    %3283 = vmatprep.subr.mxu0 0.0
    %3284 = vmatpush1.xpose.msra.mxu0 0.0
    %3285 = vmatprep.subr.mxu0 0.0
    %3286 = vmatpush1.xpose.msra.mxu0 0.0
    %3287 = vmatprep.subr.mxu0 0.0
    %3288 = vmatpush1.xpose.msra.mxu0 0.0
    %3289 = vmatprep.subr.mxu0 0.0
    %3290 = vmatpush1.xpose.msra.mxu0 0.0
    %3291 = vmatprep.subr.mxu0 0.0
    %3292 = vmatpush1.xpose.msra.mxu0 0.0
    %3293 = vmatprep.subr.mxu0 0.0
    %3294 = vmatpush1.xpose.msra.mxu0 0.0
    %3295 = vmatprep.subr.mxu0 0.0
    %3296 = vmatpush1.xpose.msra.mxu0 0.0
    %3297 = vmatprep.subr.mxu0 0.0
    %3298 = vmatpush1.xpose.msra.mxu0 0.0
    %3299 = vmatprep.subr.mxu0 0.0
    %3300 = vmatpush1.xpose.msra.mxu0 0.0
    %3301 = vmatprep.subr.mxu0 0.0
    %3302 = vmatpush1.xpose.msra.mxu0 0.0
    %3303 = vmatprep.subr.mxu0 0.0
    %3304 = vmatpush1.xpose.msra.mxu0 0.0
    %3305 = vmatprep.subr.mxu0 0.0
    %3306 = vmatpush1.xpose.msra.mxu0 0.0
    %3307 = vmatprep.subr.mxu0 0.0
    %3308 = vmatpush1.xpose.msra.mxu0 0.0
    %3309 = vmatprep.subr.mxu0 0.0
    %3310 = vmatpush1.xpose.msra.mxu0 0.0
    %3311 = vmatprep.subr.mxu0 0.0
    %3312 = vmatpush1.xpose.msra.mxu0 0.0
    %3313 = vmatprep.subr.mxu0 0.0
    %3314 = vmatpush1.xpose.msra.mxu0 0.0
    %3315 = vmatprep.subr.mxu0 0.0
    %3316 = vmatpush1.xpose.msra.mxu0 0.0
    %3317 = vmatprep.subr.mxu0 0.0
    %3318 = vmatpush1.xpose.msra.mxu0 0.0
    %3319 = vmatprep.subr.mxu0 0.0
    %3320 = vmatpush1.xpose.msra.mxu0 0.0
    %3321 = vmatprep.subr.mxu0 0.0
    %3322 = vmatpush1.xpose.msra.mxu0 0.0
    %3323 = vmatprep.mubr.f32.mxu0 0.0
    %3324 = vmatmul.mubr.f32.gmra.mrb[0].mxu0 %v3251
    %v3325 = vpop.f32.mrb[0].mxu0
    %v3326 = vadd.f32 0.0, %v3325
    %v3327 = vpop.f32.mrb[0].mxu0
    %3328 = vmatprep.mubr.f32.mxu0 0.0
    %3329 = vmatmul.mubr.f32.gmra.mrb[0].mxu0 %v3253
    %v3330 = vpop.f32.mrb[0].mxu0
    %v3331 = vadd.f32 0.0, %v3330
    %v3332 = vpop.f32.mrb[0].mxu0
    %3333 = vdwg.mxu0
    %v3334 = vmul.f32 %v3326, 0.35355338
    %v3335 = vmul.f32 %v3331, 0.35355338
    %v3336 = vsel %vm344, %v3334, -inf
    %3337 = vmax.xlane.f32.xlu0 %v3336
    %v3338 = vpop.xlane.xlu0 %3337
    %v3339 = vsel %vm348, %v3335, -inf
    %3340 = vmax.xlane.f32.xlu0 %v3339
    %v3341 = vpop.xlane.xlu0 %3340
    %v3342 = vsub.f32 %v3334, %v3338
    %v3343 = vsub.f32 %v3335, %v3341
    %v3344 = vmul.f32 %v3342, 1.442695
    %v3345 = vpow.pop %v3344
    %v3346 = vmul.f32 %v3343, 1.442695
    %v3347 = vpow.pop %v3346
    %v3348 = vsel %vm344, %v3345, 0.0
    %3349 = vadd.xlane.f32.xlu0 %v3348
    %v3350 = vpop.xlane.xlu0 %3349
    %v3351 = vsel %vm348, %v3347, 0.0
    %3352 = vadd.xlane.f32.xlu0 %v3351
    %v3353 = vpop.xlane.xlu0 %3352
    %v3354 = vrcp.pop %v3350
    %v3355 = vrcp.pop %v3353
    %v3356 = vmul.f32 %v3345, %v3354
    %v3357 = vmul.f32 %v3347, %v3355
    %3358 = vrot.lane.b32.xlu0 %v2831, 48
    %v3359 = vpop.permute.xlu0 %3358
    %3360 = vrot.lane.b32.xlu0 %v2836, 48
    %v3361 = vpop.permute.xlu0 %3360
    %v3364 = vsel %vm344, %v3356, 0
    %v3367 = vsel %vm344, %v3357, 0
    %v3369 = vsel %vm379, %v3361, 0
    %3371 = vmatprep.subr.mxu0 0.0
    %3372 = vmatpush1.msra.mxu0 %v3359
    %3373 = vmatprep.subr.mxu0 0.0
    %3374 = vmatpush1.msra.mxu0 %v3369
    %3375 = vmatprep.subr.mxu0 0.0
    %3376 = vmatpush1.msra.mxu0 0.0
    %3377 = vmatprep.subr.mxu0 0.0
    %3378 = vmatpush1.msra.mxu0 0.0
    %3379 = vmatprep.subr.mxu0 0.0
    %3380 = vmatpush1.msra.mxu0 0.0
    %3381 = vmatprep.subr.mxu0 0.0
    %3382 = vmatpush1.msra.mxu0 0.0
    %3383 = vmatprep.subr.mxu0 0.0
    %3384 = vmatpush1.msra.mxu0 0.0
    %3385 = vmatprep.subr.mxu0 0.0
    %3386 = vmatpush1.msra.mxu0 0.0
    %3387 = vmatprep.subr.mxu0 0.0
    %3388 = vmatpush1.msra.mxu0 0.0
    %3389 = vmatprep.subr.mxu0 0.0
    %3390 = vmatpush1.msra.mxu0 0.0
    %3391 = vmatprep.subr.mxu0 0.0
    %3392 = vmatpush1.msra.mxu0 0.0
    %3393 = vmatprep.subr.mxu0 0.0
    %3394 = vmatpush1.msra.mxu0 0.0
    %3395 = vmatprep.subr.mxu0 0.0
    %3396 = vmatpush1.msra.mxu0 0.0
    %3397 = vmatprep.subr.mxu0 0.0
    %3398 = vmatpush1.msra.mxu0 0.0
    %3399 = vmatprep.subr.mxu0 0.0
    %3400 = vmatpush1.msra.mxu0 0.0
    %3401 = vmatprep.subr.mxu0 0.0
    %3402 = vmatpush1.msra.mxu0 0.0
    %3403 = vmatprep.subr.mxu0 0.0
    %3404 = vmatpush1.msra.mxu0 0.0
    %3405 = vmatprep.subr.mxu0 0.0
    %3406 = vmatpush1.msra.mxu0 0.0
    %3407 = vmatprep.subr.mxu0 0.0
    %3408 = vmatpush1.msra.mxu0 0.0
    %3409 = vmatprep.subr.mxu0 0.0
    %3410 = vmatpush1.msra.mxu0 0.0
    %3411 = vmatprep.subr.mxu0 0.0
    %3412 = vmatpush1.msra.mxu0 0.0
    %3413 = vmatprep.subr.mxu0 0.0
    %3414 = vmatpush1.msra.mxu0 0.0
    %3415 = vmatprep.subr.mxu0 0.0
    %3416 = vmatpush1.msra.mxu0 0.0
    %3417 = vmatprep.subr.mxu0 0.0
    %3418 = vmatpush1.msra.mxu0 0.0
    %3419 = vmatprep.subr.mxu0 0.0
    %3420 = vmatpush1.msra.mxu0 0.0
    %3421 = vmatprep.subr.mxu0 0.0
    %3422 = vmatpush1.msra.mxu0 0.0
    %3423 = vmatprep.subr.mxu0 0.0
    %3424 = vmatpush1.msra.mxu0 0.0
    %3425 = vmatprep.subr.mxu0 0.0
    %3426 = vmatpush1.msra.mxu0 0.0
    %3427 = vmatprep.subr.mxu0 0.0
    %3428 = vmatpush1.msra.mxu0 0.0
    %3429 = vmatprep.subr.mxu0 0.0
    %3430 = vmatpush1.msra.mxu0 0.0
    %3431 = vmatprep.subr.mxu0 0.0
    %3432 = vmatpush1.msra.mxu0 0.0
    %3433 = vmatprep.subr.mxu0 0.0
    %3434 = vmatpush1.msra.mxu0 0.0
    %3435 = vmatprep.mubr.f32.mxu0 0.0
    %3436 = vmatmul.mubr.f32.gmra.mrb[0].mxu0 %v3364
    %v3437 = vpop.f32.mrb[0].mxu0
    %v3438 = vadd.f32 0.0, %v3437
    %v3439 = vpop.f32.mrb[0].mxu0
    %3440 = vmatprep.mubr.f32.mxu0 0.0
    %3441 = vmatmul.mubr.f32.gmra.mrb[0].mxu0 %v3367
    %v3442 = vpop.f32.mrb[0].mxu0
    %v3443 = vadd.f32 0.0, %v3442
    %v3444 = vpop.f32.mrb[0].mxu0
    %3445 = vdwg.mxu0
    %3446 = vrot.lane.b32.xlu0 %v2831, 104
    %v3447 = vpop.permute.xlu0 %3446
    %3448 = vrot.lane.b32.xlu0 %v2836, 104
    %v3449 = vpop.permute.xlu0 %3448
    %3450 = vrot.lane.b32.xlu0 %v2831, 72
    %v3451 = vpop.permute.xlu0 %3450
    %3452 = vrot.lane.b32.xlu0 %v2836, 72
    %v3453 = vpop.permute.xlu0 %3452
    %v3454 = vsel %vm258, %v3447, 0
    %v3456 = vsel %vm258, %v3449, 0
    %v3458 = vsel %vm258, %v3451, 0
    %v3460 = vsel %vm258, %v3453, 0
    %3462 = vmatprep.subr.mxu0 0.0
    %3463 = vmatpush1.xpose.msra.mxu0 %v3458
    %3464 = vmatprep.subr.mxu0 0.0
    %3465 = vmatpush1.xpose.msra.mxu0 %v3460
    %3466 = vmatprep.subr.mxu0 0.0
    %3467 = vmatpush1.xpose.msra.mxu0 0.0
    %3468 = vmatprep.subr.mxu0 0.0
    %3469 = vmatpush1.xpose.msra.mxu0 0.0
    %3470 = vmatprep.subr.mxu0 0.0
    %3471 = vmatpush1.xpose.msra.mxu0 0.0
    %3472 = vmatprep.subr.mxu0 0.0
    %3473 = vmatpush1.xpose.msra.mxu0 0.0
    %3474 = vmatprep.subr.mxu0 0.0
    %3475 = vmatpush1.xpose.msra.mxu0 0.0
    %3476 = vmatprep.subr.mxu0 0.0
    %3477 = vmatpush1.xpose.msra.mxu0 0.0
    %3478 = vmatprep.subr.mxu0 0.0
    %3479 = vmatpush1.xpose.msra.mxu0 0.0
    %3480 = vmatprep.subr.mxu0 0.0
    %3481 = vmatpush1.xpose.msra.mxu0 0.0
    %3482 = vmatprep.subr.mxu0 0.0
    %3483 = vmatpush1.xpose.msra.mxu0 0.0
    %3484 = vmatprep.subr.mxu0 0.0
    %3485 = vmatpush1.xpose.msra.mxu0 0.0
    %3486 = vmatprep.subr.mxu0 0.0
    %3487 = vmatpush1.xpose.msra.mxu0 0.0
    %3488 = vmatprep.subr.mxu0 0.0
    %3489 = vmatpush1.xpose.msra.mxu0 0.0
    %3490 = vmatprep.subr.mxu0 0.0
    %3491 = vmatpush1.xpose.msra.mxu0 0.0
    %3492 = vmatprep.subr.mxu0 0.0
    %3493 = vmatpush1.xpose.msra.mxu0 0.0
    %3494 = vmatprep.subr.mxu0 0.0
    %3495 = vmatpush1.xpose.msra.mxu0 0.0
    %3496 = vmatprep.subr.mxu0 0.0
    %3497 = vmatpush1.xpose.msra.mxu0 0.0
    %3498 = vmatprep.subr.mxu0 0.0
    %3499 = vmatpush1.xpose.msra.mxu0 0.0
    %3500 = vmatprep.subr.mxu0 0.0
    %3501 = vmatpush1.xpose.msra.mxu0 0.0
    %3502 = vmatprep.subr.mxu0 0.0
    %3503 = vmatpush1.xpose.msra.mxu0 0.0
    %3504 = vmatprep.subr.mxu0 0.0
    %3505 = vmatpush1.xpose.msra.mxu0 0.0
    %3506 = vmatprep.subr.mxu0 0.0
    %3507 = vmatpush1.xpose.msra.mxu0 0.0
    %3508 = vmatprep.subr.mxu0 0.0
    %3509 = vmatpush1.xpose.msra.mxu0 0.0
    %3510 = vmatprep.subr.mxu0 0.0
    %3511 = vmatpush1.xpose.msra.mxu0 0.0
    %3512 = vmatprep.subr.mxu0 0.0
    %3513 = vmatpush1.xpose.msra.mxu0 0.0
    %3514 = vmatprep.subr.mxu0 0.0
    %3515 = vmatpush1.xpose.msra.mxu0 0.0
    %3516 = vmatprep.subr.mxu0 0.0
    %3517 = vmatpush1.xpose.msra.mxu0 0.0
    %3518 = vmatprep.subr.mxu0 0.0
    %3519 = vmatpush1.xpose.msra.mxu0 0.0
    %3520 = vmatprep.subr.mxu0 0.0
    %3521 = vmatpush1.xpose.msra.mxu0 0.0
    %3522 = vmatprep.subr.mxu0 0.0
    %3523 = vmatpush1.xpose.msra.mxu0 0.0
    %3524 = vmatprep.subr.mxu0 0.0
    %3525 = vmatpush1.xpose.msra.mxu0 0.0
    %3526 = vmatprep.mubr.f32.mxu0 0.0
    %3527 = vmatmul.mubr.f32.gmra.mrb[0].mxu0 %v3454
    %v3528 = vpop.f32.mrb[0].mxu0
    %v3529 = vadd.f32 0.0, %v3528
    %v3530 = vpop.f32.mrb[0].mxu0
    %3531 = vmatprep.mubr.f32.mxu0 0.0
    %3532 = vmatmul.mubr.f32.gmra.mrb[0].mxu0 %v3456
    %v3533 = vpop.f32.mrb[0].mxu0
    %v3534 = vadd.f32 0.0, %v3533
    %v3535 = vpop.f32.mrb[0].mxu0
    %3536 = vdwg.mxu0
    %v3537 = vmul.f32 %v3529, 0.35355338
    %v3538 = vmul.f32 %v3534, 0.35355338
    %v3539 = vsel %vm344, %v3537, -inf
    %3540 = vmax.xlane.f32.xlu0 %v3539
    %v3541 = vpop.xlane.xlu0 %3540
    %v3542 = vsel %vm348, %v3538, -inf
    %3543 = vmax.xlane.f32.xlu0 %v3542
    %v3544 = vpop.xlane.xlu0 %3543
    %v3545 = vsub.f32 %v3537, %v3541
    %v3546 = vsub.f32 %v3538, %v3544
    %v3547 = vmul.f32 %v3545, 1.442695
    %v3548 = vpow.pop %v3547
    %v3549 = vmul.f32 %v3546, 1.442695
    %v3550 = vpow.pop %v3549
    %v3551 = vsel %vm344, %v3548, 0.0
    %3552 = vadd.xlane.f32.xlu0 %v3551
    %v3553 = vpop.xlane.xlu0 %3552
    %v3554 = vsel %vm348, %v3550, 0.0
    %3555 = vadd.xlane.f32.xlu0 %v3554
    %v3556 = vpop.xlane.xlu0 %3555
    %v3557 = vrcp.pop %v3553
    %v3558 = vrcp.pop %v3556
    %v3559 = vmul.f32 %v3548, %v3557
    %v3560 = vmul.f32 %v3550, %v3558
    %3561 = vrot.lane.b32.xlu0 %v2831, 40
    %v3562 = vpop.permute.xlu0 %3561
    %3563 = vrot.lane.b32.xlu0 %v2836, 40
    %v3564 = vpop.permute.xlu0 %3563
    %v3567 = vsel %vm344, %v3559, 0
    %v3570 = vsel %vm344, %v3560, 0
    %v3572 = vsel %vm379, %v3564, 0
    %3574 = vmatprep.subr.mxu0 0.0
    %3575 = vmatpush1.msra.mxu0 %v3562
    %3576 = vmatprep.subr.mxu0 0.0
    %3577 = vmatpush1.msra.mxu0 %v3572
    %3578 = vmatprep.subr.mxu0 0.0
    %3579 = vmatpush1.msra.mxu0 0.0
    %3580 = vmatprep.subr.mxu0 0.0
    %3581 = vmatpush1.msra.mxu0 0.0
    %3582 = vmatprep.subr.mxu0 0.0
    %3583 = vmatpush1.msra.mxu0 0.0
    %3584 = vmatprep.subr.mxu0 0.0
    %3585 = vmatpush1.msra.mxu0 0.0
    %3586 = vmatprep.subr.mxu0 0.0
    %3587 = vmatpush1.msra.mxu0 0.0
    %3588 = vmatprep.subr.mxu0 0.0
    %3589 = vmatpush1.msra.mxu0 0.0
    %3590 = vmatprep.subr.mxu0 0.0
    %3591 = vmatpush1.msra.mxu0 0.0
    %3592 = vmatprep.subr.mxu0 0.0
    %3593 = vmatpush1.msra.mxu0 0.0
    %3594 = vmatprep.subr.mxu0 0.0
    %3595 = vmatpush1.msra.mxu0 0.0
    %3596 = vmatprep.subr.mxu0 0.0
    %3597 = vmatpush1.msra.mxu0 0.0
    %3598 = vmatprep.subr.mxu0 0.0
    %3599 = vmatpush1.msra.mxu0 0.0
    %3600 = vmatprep.subr.mxu0 0.0
    %3601 = vmatpush1.msra.mxu0 0.0
    %3602 = vmatprep.subr.mxu0 0.0
    %3603 = vmatpush1.msra.mxu0 0.0
    %3604 = vmatprep.subr.mxu0 0.0
    %3605 = vmatpush1.msra.mxu0 0.0
    %3606 = vmatprep.subr.mxu0 0.0
    %3607 = vmatpush1.msra.mxu0 0.0
    %3608 = vmatprep.subr.mxu0 0.0
    %3609 = vmatpush1.msra.mxu0 0.0
    %3610 = vmatprep.subr.mxu0 0.0
    %3611 = vmatpush1.msra.mxu0 0.0
    %3612 = vmatprep.subr.mxu0 0.0
    %3613 = vmatpush1.msra.mxu0 0.0
    %3614 = vmatprep.subr.mxu0 0.0
    %3615 = vmatpush1.msra.mxu0 0.0
    %3616 = vmatprep.subr.mxu0 0.0
    %3617 = vmatpush1.msra.mxu0 0.0
    %3618 = vmatprep.subr.mxu0 0.0
    %3619 = vmatpush1.msra.mxu0 0.0
    %3620 = vmatprep.subr.mxu0 0.0
    %3621 = vmatpush1.msra.mxu0 0.0
    %3622 = vmatprep.subr.mxu0 0.0
    %3623 = vmatpush1.msra.mxu0 0.0
    %3624 = vmatprep.subr.mxu0 0.0
    %3625 = vmatpush1.msra.mxu0 0.0
    %3626 = vmatprep.subr.mxu0 0.0
    %3627 = vmatpush1.msra.mxu0 0.0
    %3628 = vmatprep.subr.mxu0 0.0
    %3629 = vmatpush1.msra.mxu0 0.0
    %3630 = vmatprep.subr.mxu0 0.0
    %3631 = vmatpush1.msra.mxu0 0.0
    %3632 = vmatprep.subr.mxu0 0.0
    %3633 = vmatpush1.msra.mxu0 0.0
    %3634 = vmatprep.subr.mxu0 0.0
    %3635 = vmatpush1.msra.mxu0 0.0
    %3636 = vmatprep.subr.mxu0 0.0
    %3637 = vmatpush1.msra.mxu0 0.0
    %3638 = vmatprep.mubr.f32.mxu0 0.0
    %3639 = vmatmul.mubr.f32.gmra.mrb[0].mxu0 %v3567
    %v3640 = vpop.f32.mrb[0].mxu0
    %v3641 = vadd.f32 0.0, %v3640
    %v3642 = vpop.f32.mrb[0].mxu0
    %3643 = vmatprep.mubr.f32.mxu0 0.0
    %3644 = vmatmul.mubr.f32.gmra.mrb[0].mxu0 %v3570
    %v3645 = vpop.f32.mrb[0].mxu0
    %v3646 = vadd.f32 0.0, %v3645
    %v3647 = vpop.f32.mrb[0].mxu0
    %3648 = vdwg.mxu0
    %3651 = vrot.lane.b32.xlu0 %v3235, 8
    %v3652 = vpop.permute.xlu0 %3651
    %3653 = vrot.lane.b32.xlu0 %v3240, 8
    %v3654 = vpop.permute.xlu0 %3653
    %3659 = vrot.lane.b32.xlu0 %v3438, 16
    %v3660 = vpop.permute.xlu0 %3659
    %3661 = vrot.lane.b32.xlu0 %v3443, 16
    %v3662 = vpop.permute.xlu0 %3661
    %3667 = vrot.lane.b32.xlu0 %v3641, 24
    %v3668 = vpop.permute.xlu0 %3667
    %3669 = vrot.lane.b32.xlu0 %v3646, 24
    %v3670 = vpop.permute.xlu0 %3669
    %v3673 = vsel %vm258, %v3032, %v3652
    %v3674 = vsel %vm258, %v3037, %v3654
    %v3675 = vsel %vm1092, %v3673, %v3660
    %v3676 = vsel %vm1092, %v3674, %v3662
    %v3677 = vsel %vm1095, %v3675, %v3668
    %v3678 = vsel %vm1095, %v3676, %v3670
    %v3679 = vld [vmem:[%s5] sm:$0xff]
    %v3680 = vld [vmem:[%s5 + $0x8] sm:$0xff]
    %v3681 = vld [vmem:[%s5 + $0x10] sm:$0xff]
    %v3682 = vld [vmem:[%s5 + $0x18] sm:$0xff]
    %v3683 = vld [vmem:[%s6] sm:$0x1]
    %v3685 = vlaneseq
    %v3686 = vshrl.u32 %v3685, 7
    %v3687 = vsub.s32 0, %v3686
    %v3688 = vrot.slane %v3683, %v3687
    %v3691 = vsel %vm170, %v3677, 0
    %v3694 = vsel %vm170, %v3678, 0
    %3696 = vmatprep.subr.mxu0 0.0
    %3697 = vmatpush1.msra.mxu0 %v3679
    %3698 = vmatprep.subr.mxu0 0.0
    %3699 = vmatpush1.msra.mxu0 %v3680
    %3700 = vmatprep.subr.mxu0 0.0
    %3701 = vmatpush1.msra.mxu0 %v3681
    %3702 = vmatprep.subr.mxu0 0.0
    %3703 = vmatpush1.msra.mxu0 %v3682
    %3704 = vmatprep.subr.mxu0 0.0
    %3705 = vmatpush1.msra.mxu0 0.0
    %3706 = vmatprep.subr.mxu0 0.0
    %3707 = vmatpush1.msra.mxu0 0.0
    %3708 = vmatprep.subr.mxu0 0.0
    %3709 = vmatpush1.msra.mxu0 0.0
    %3710 = vmatprep.subr.mxu0 0.0
    %3711 = vmatpush1.msra.mxu0 0.0
    %3712 = vmatprep.subr.mxu0 0.0
    %3713 = vmatpush1.msra.mxu0 0.0
    %3714 = vmatprep.subr.mxu0 0.0
    %3715 = vmatpush1.msra.mxu0 0.0
    %3716 = vmatprep.subr.mxu0 0.0
    %3717 = vmatpush1.msra.mxu0 0.0
    %3718 = vmatprep.subr.mxu0 0.0
    %3719 = vmatpush1.msra.mxu0 0.0
    %3720 = vmatprep.subr.mxu0 0.0
    %3721 = vmatpush1.msra.mxu0 0.0
    %3722 = vmatprep.subr.mxu0 0.0
    %3723 = vmatpush1.msra.mxu0 0.0
    %3724 = vmatprep.subr.mxu0 0.0
    %3725 = vmatpush1.msra.mxu0 0.0
    %3726 = vmatprep.subr.mxu0 0.0
    %3727 = vmatpush1.msra.mxu0 0.0
    %3728 = vmatprep.subr.mxu0 0.0
    %3729 = vmatpush1.msra.mxu0 0.0
    %3730 = vmatprep.subr.mxu0 0.0
    %3731 = vmatpush1.msra.mxu0 0.0
    %3732 = vmatprep.subr.mxu0 0.0
    %3733 = vmatpush1.msra.mxu0 0.0
    %3734 = vmatprep.subr.mxu0 0.0
    %3735 = vmatpush1.msra.mxu0 0.0
    %3736 = vmatprep.subr.mxu0 0.0
    %3737 = vmatpush1.msra.mxu0 0.0
    %3738 = vmatprep.subr.mxu0 0.0
    %3739 = vmatpush1.msra.mxu0 0.0
    %3740 = vmatprep.subr.mxu0 0.0
    %3741 = vmatpush1.msra.mxu0 0.0
    %3742 = vmatprep.subr.mxu0 0.0
    %3743 = vmatpush1.msra.mxu0 0.0
    %3744 = vmatprep.subr.mxu0 0.0
    %3745 = vmatpush1.msra.mxu0 0.0
    %3746 = vmatprep.subr.mxu0 0.0
    %3747 = vmatpush1.msra.mxu0 0.0
    %3748 = vmatprep.subr.mxu0 0.0
    %3749 = vmatpush1.msra.mxu0 0.0
    %3750 = vmatprep.subr.mxu0 0.0
    %3751 = vmatpush1.msra.mxu0 0.0
    %3752 = vmatprep.subr.mxu0 0.0
    %3753 = vmatpush1.msra.mxu0 0.0
    %3754 = vmatprep.subr.mxu0 0.0
    %3755 = vmatpush1.msra.mxu0 0.0
    %3756 = vmatprep.subr.mxu0 0.0
    %3757 = vmatpush1.msra.mxu0 0.0
    %3758 = vmatprep.subr.mxu0 0.0
    %3759 = vmatpush1.msra.mxu0 0.0
    %3760 = vmatprep.mubr.f32.mxu0 0.0
    %3761 = vmatmul.mubr.f32.gmra.mrb[0].mxu0 %v3691
    %v3762 = vpop.f32.mrb[0].mxu0
    %v3763 = vadd.f32 %v3688, %v3762
    %v3764 = vpop.f32.mrb[0].mxu0
    %3765 = vmatprep.mubr.f32.mxu0 0.0
    %3766 = vmatmul.mubr.f32.gmra.mrb[0].mxu0 %v3694
    %v3767 = vpop.f32.mrb[0].mxu0
    %v3768 = vadd.f32 %v3688, %v3767
    %v3769 = vpop.f32.mrb[0].mxu0
    %3770 = vdwg.mxu0
    %v3772 = vsel %vm379, %v3768, 0
    %3774 = vmatprep.subr.mxu0 0.0
    %3775 = vmatpush1.msra.mxu0 %v3763
    %3776 = vmatprep.subr.mxu0 0.0
    %3777 = vmatpush1.msra.mxu0 %v3772
    %3778 = vmatprep.subr.mxu0 0.0
    %3779 = vmatpush1.msra.mxu0 0.0
    %3780 = vmatprep.subr.mxu0 0.0
    %3781 = vmatpush1.msra.mxu0 0.0
    %3782 = vmatprep.subr.mxu0 0.0
    %3783 = vmatpush1.msra.mxu0 0.0
    %3784 = vmatprep.subr.mxu0 0.0
    %3785 = vmatpush1.msra.mxu0 0.0
    %3786 = vmatprep.subr.mxu0 0.0
    %3787 = vmatpush1.msra.mxu0 0.0
    %3788 = vmatprep.subr.mxu0 0.0
    %3789 = vmatpush1.msra.mxu0 0.0
    %3790 = vmatprep.subr.mxu0 0.0
    %3791 = vmatpush1.msra.mxu0 0.0
    %3792 = vmatprep.subr.mxu0 0.0
    %3793 = vmatpush1.msra.mxu0 0.0
    %3794 = vmatprep.subr.mxu0 0.0
    %3795 = vmatpush1.msra.mxu0 0.0
    %3796 = vmatprep.subr.mxu0 0.0
    %3797 = vmatpush1.msra.mxu0 0.0
    %3798 = vmatprep.subr.mxu0 0.0
    %3799 = vmatpush1.msra.mxu0 0.0
    %3800 = vmatprep.subr.mxu0 0.0
    %3801 = vmatpush1.msra.mxu0 0.0
    %3802 = vmatprep.subr.mxu0 0.0
    %3803 = vmatpush1.msra.mxu0 0.0
    %3804 = vmatprep.subr.mxu0 0.0
    %3805 = vmatpush1.msra.mxu0 0.0
    %3806 = vmatprep.subr.mxu0 0.0
    %3807 = vmatpush1.msra.mxu0 0.0
    %3808 = vmatprep.subr.mxu0 0.0
    %3809 = vmatpush1.msra.mxu0 0.0
    %3810 = vmatprep.subr.mxu0 0.0
    %3811 = vmatpush1.msra.mxu0 0.0
    %3812 = vmatprep.subr.mxu0 0.0
    %3813 = vmatpush1.msra.mxu0 0.0
    %3814 = vmatprep.subr.mxu0 0.0
    %3815 = vmatpush1.msra.mxu0 0.0
    %3816 = vmatprep.subr.mxu0 0.0
    %3817 = vmatpush1.msra.mxu0 0.0
    %3818 = vmatprep.subr.mxu0 0.0
    %3819 = vmatpush1.msra.mxu0 0.0
    %3820 = vmatprep.subr.mxu0 0.0
    %3821 = vmatpush1.msra.mxu0 0.0
    %3822 = vmatprep.subr.mxu0 0.0
    %3823 = vmatpush1.msra.mxu0 0.0
    %3824 = vmatprep.subr.mxu0 0.0
    %3825 = vmatpush1.msra.mxu0 0.0
    %3826 = vmatprep.subr.mxu0 0.0
    %3827 = vmatpush1.msra.mxu0 0.0
    %3828 = vmatprep.subr.mxu0 0.0
    %3829 = vmatpush1.msra.mxu0 0.0
    %3830 = vmatprep.subr.mxu0 0.0
    %3831 = vmatpush1.msra.mxu0 0.0
    %3832 = vmatprep.subr.mxu0 0.0
    %3833 = vmatpush1.msra.mxu0 0.0
    %3834 = vmatprep.subr.mxu0 0.0
    %3835 = vmatpush1.msra.mxu0 0.0
    %3836 = vmatprep.subr.mxu0 0.0
    %3837 = vmatpush1.msra.mxu0 0.0
    %3838 = vmatprep.mubr.f32.mxu0 0.0
    %3839 = vmatmul.mubr.f32.gmra.mrb[0].mxu0 %v1191
    %v3840 = vpop.f32.mrb[0].mxu0
    %v3841 = vadd.f32 0.0, %v3840
    %v3842 = vpop.f32.mrb[0].mxu0
    %3843 = vmatprep.mubr.f32.mxu0 0.0
    %3844 = vmatmul.mubr.f32.gmra.mrb[0].mxu0 %v1194
    %v3845 = vpop.f32.mrb[0].mxu0
    %v3846 = vadd.f32 0.0, %v3845
    %v3847 = vpop.f32.mrb[0].mxu0
    %3848 = vdwg.mxu0
    %v3849 = vld [vmem:[%s9] sm:$0xff]
    %v3850 = vld [vmem:[%s10] sm:$0xff]
    %v3851 = vmul.f32 %v3841, %v3849
    %v3852 = vmul.f32 %v3846, %v3850
    %v3853 = vsub.f32 %v3851, %v3852
    %v3854 = vmul.f32 %v3841, %v3850
    %v3855 = vmul.f32 %v3846, %v3849
    %v3856 = vadd.f32 %v3854, %v3855
    %v3857 = vld [vmem:[%s11] sm:$0x1]
    %v3859 = vlaneseq
    %v3860 = vshrl.u32 %v3859, 7
    %v3861 = vsub.s32 0, %v3860
    %v3862 = vrot.slane %v3857, %v3861
    %3864 = vmatprep.subr.mxu0 0.0
    %3865 = vmatpush1.msra.mxu0 %v3853
    %3866 = vmatprep.subr.mxu0 0.0
    %3867 = vmatpush1.msra.mxu0 %v3856
    %3868 = vmatprep.subr.mxu0 0.0
    %3869 = vmatpush1.msra.mxu0 0.0
    %3870 = vmatprep.subr.mxu0 0.0
    %3871 = vmatpush1.msra.mxu0 0.0
    %3872 = vmatprep.subr.mxu0 0.0
    %3873 = vmatpush1.msra.mxu0 0.0
    %3874 = vmatprep.subr.mxu0 0.0
    %3875 = vmatpush1.msra.mxu0 0.0
    %3876 = vmatprep.subr.mxu0 0.0
    %3877 = vmatpush1.msra.mxu0 0.0
    %3878 = vmatprep.subr.mxu0 0.0
    %3879 = vmatpush1.msra.mxu0 0.0
    %3880 = vmatprep.subr.mxu0 0.0
    %3881 = vmatpush1.msra.mxu0 0.0
    %3882 = vmatprep.subr.mxu0 0.0
    %3883 = vmatpush1.msra.mxu0 0.0
    %3884 = vmatprep.subr.mxu0 0.0
    %3885 = vmatpush1.msra.mxu0 0.0
    %3886 = vmatprep.subr.mxu0 0.0
    %3887 = vmatpush1.msra.mxu0 0.0
    %3888 = vmatprep.subr.mxu0 0.0
    %3889 = vmatpush1.msra.mxu0 0.0
    %3890 = vmatprep.subr.mxu0 0.0
    %3891 = vmatpush1.msra.mxu0 0.0
    %3892 = vmatprep.subr.mxu0 0.0
    %3893 = vmatpush1.msra.mxu0 0.0
    %3894 = vmatprep.subr.mxu0 0.0
    %3895 = vmatpush1.msra.mxu0 0.0
    %3896 = vmatprep.subr.mxu0 0.0
    %3897 = vmatpush1.msra.mxu0 0.0
    %3898 = vmatprep.subr.mxu0 0.0
    %3899 = vmatpush1.msra.mxu0 0.0
    %3900 = vmatprep.subr.mxu0 0.0
    %3901 = vmatpush1.msra.mxu0 0.0
    %3902 = vmatprep.subr.mxu0 0.0
    %3903 = vmatpush1.msra.mxu0 0.0
    %3904 = vmatprep.subr.mxu0 0.0
    %3905 = vmatpush1.msra.mxu0 0.0
    %3906 = vmatprep.subr.mxu0 0.0
    %3907 = vmatpush1.msra.mxu0 0.0
    %3908 = vmatprep.subr.mxu0 0.0
    %3909 = vmatpush1.msra.mxu0 0.0
    %3910 = vmatprep.subr.mxu0 0.0
    %3911 = vmatpush1.msra.mxu0 0.0
    %3912 = vmatprep.subr.mxu0 0.0
    %3913 = vmatpush1.msra.mxu0 0.0
    %3914 = vmatprep.subr.mxu0 0.0
    %3915 = vmatpush1.msra.mxu0 0.0
    %3916 = vmatprep.subr.mxu0 0.0
    %3917 = vmatpush1.msra.mxu0 0.0
    %3918 = vmatprep.subr.mxu0 0.0
    %3919 = vmatpush1.msra.mxu0 0.0
    %3920 = vmatprep.subr.mxu0 0.0
    %3921 = vmatpush1.msra.mxu0 0.0
    %3922 = vmatprep.subr.mxu0 0.0
    %3923 = vmatpush1.msra.mxu0 0.0
    %3924 = vmatprep.subr.mxu0 0.0
    %3925 = vmatpush1.msra.mxu0 0.0
    %3926 = vmatprep.subr.mxu0 0.0
    %3927 = vmatpush1.msra.mxu0 0.0
    %3928 = vmatprep.mubr.f32.mxu0 0.0
    %3929 = vmatmul.mubr.f32.gmra.mrb[0].mxu0 %v1290
    %v3930 = vpop.f32.mrb[0].mxu0
    %v3931 = vadd.f32 %v3862, %v3930
    %v3932 = vpop.f32.mrb[0].mxu0
    %3933 = vmatprep.mubr.f32.mxu0 0.0
    %3934 = vmatmul.mubr.f32.gmra.mrb[0].mxu0 %v1293
    %v3935 = vpop.f32.mrb[0].mxu0
    %v3936 = vadd.f32 %v3862, %v3935
    %v3937 = vpop.f32.mrb[0].mxu0
    %3938 = vdwg.mxu0
    %v3939 = vadd.f32 %v3931, %v3763
    %v3940 = vadd.f32 %v3936, %v3768
    %v3941 = vld [vmem:[%s1372] sm:$0xff]
    %v3942 = vld [vmem:[%s1372 + $0x8] sm:$0xff]
    %v3943 = vld [vmem:[%s1372 + $0x10] sm:$0xff]
    %v3944 = vld [vmem:[%s1372 + $0x18] sm:$0xff]
    %v3945 = vld [vmem:[%s1377] sm:$0x1]
    %v3947 = vlaneseq
    %v3948 = vshrl.u32 %v3947, 7
    %v3949 = vsub.s32 0, %v3948
    %v3950 = vrot.slane %v3945, %v3949
    %v3953 = vsel %vm170, %v3939, 0
    %v3956 = vsel %vm170, %v3940, 0
    %3958 = vmatprep.subr.mxu0 0.0
    %3959 = vmatpush1.msra.mxu0 %v3941
    %3960 = vmatprep.subr.mxu0 0.0
    %3961 = vmatpush1.msra.mxu0 %v3942
    %3962 = vmatprep.subr.mxu0 0.0
    %3963 = vmatpush1.msra.mxu0 %v3943
    %3964 = vmatprep.subr.mxu0 0.0
    %3965 = vmatpush1.msra.mxu0 %v3944
    %3966 = vmatprep.subr.mxu0 0.0
    %3967 = vmatpush1.msra.mxu0 0.0
    %3968 = vmatprep.subr.mxu0 0.0
    %3969 = vmatpush1.msra.mxu0 0.0
    %3970 = vmatprep.subr.mxu0 0.0
    %3971 = vmatpush1.msra.mxu0 0.0
    %3972 = vmatprep.subr.mxu0 0.0
    %3973 = vmatpush1.msra.mxu0 0.0
    %3974 = vmatprep.subr.mxu0 0.0
    %3975 = vmatpush1.msra.mxu0 0.0
    %3976 = vmatprep.subr.mxu0 0.0
    %3977 = vmatpush1.msra.mxu0 0.0
    %3978 = vmatprep.subr.mxu0 0.0
    %3979 = vmatpush1.msra.mxu0 0.0
    %3980 = vmatprep.subr.mxu0 0.0
    %3981 = vmatpush1.msra.mxu0 0.0
    %3982 = vmatprep.subr.mxu0 0.0
    %3983 = vmatpush1.msra.mxu0 0.0
    %3984 = vmatprep.subr.mxu0 0.0
    %3985 = vmatpush1.msra.mxu0 0.0
    %3986 = vmatprep.subr.mxu0 0.0
    %3987 = vmatpush1.msra.mxu0 0.0
    %3988 = vmatprep.subr.mxu0 0.0
    %3989 = vmatpush1.msra.mxu0 0.0
    %3990 = vmatprep.subr.mxu0 0.0
    %3991 = vmatpush1.msra.mxu0 0.0
    %3992 = vmatprep.subr.mxu0 0.0
    %3993 = vmatpush1.msra.mxu0 0.0
    %3994 = vmatprep.subr.mxu0 0.0
    %3995 = vmatpush1.msra.mxu0 0.0
    %3996 = vmatprep.subr.mxu0 0.0
    %3997 = vmatpush1.msra.mxu0 0.0
    %3998 = vmatprep.subr.mxu0 0.0
    %3999 = vmatpush1.msra.mxu0 0.0
    %4000 = vmatprep.subr.mxu0 0.0
    %4001 = vmatpush1.msra.mxu0 0.0
    %4002 = vmatprep.subr.mxu0 0.0
    %4003 = vmatpush1.msra.mxu0 0.0
    %4004 = vmatprep.subr.mxu0 0.0
    %4005 = vmatpush1.msra.mxu0 0.0
    %4006 = vmatprep.subr.mxu0 0.0
    %4007 = vmatpush1.msra.mxu0 0.0
    %4008 = vmatprep.subr.mxu0 0.0
    %4009 = vmatpush1.msra.mxu0 0.0
    %4010 = vmatprep.subr.mxu0 0.0
    %4011 = vmatpush1.msra.mxu0 0.0
    %4012 = vmatprep.subr.mxu0 0.0
    %4013 = vmatpush1.msra.mxu0 0.0
    %4014 = vmatprep.subr.mxu0 0.0
    %4015 = vmatpush1.msra.mxu0 0.0
    %4016 = vmatprep.subr.mxu0 0.0
    %4017 = vmatpush1.msra.mxu0 0.0
    %4018 = vmatprep.subr.mxu0 0.0
    %4019 = vmatpush1.msra.mxu0 0.0
    %4020 = vmatprep.subr.mxu0 0.0
    %4021 = vmatpush1.msra.mxu0 0.0
    %4022 = vmatprep.mubr.f32.mxu0 0.0
    %4023 = vmatmul.mubr.f32.gmra.mrb[0].mxu0 %v3953
    %v4024 = vpop.f32.mrb[0].mxu0
    %v4025 = vadd.f32 %v3950, %v4024
    %v4026 = vpop.f32.mrb[0].mxu0
    %4027 = vmatprep.mubr.f32.mxu0 0.0
    %4028 = vmatmul.mubr.f32.gmra.mrb[0].mxu0 %v3956
    %v4029 = vpop.f32.mrb[0].mxu0
    %v4030 = vadd.f32 %v3950, %v4029
    %v4031 = vpop.f32.mrb[0].mxu0
    %4032 = vdwg.mxu0
    %4035 = vrot.lane.b32.xlu0 %v4025, 96
    %v4036 = vpop.permute.xlu0 %4035
    %4037 = vrot.lane.b32.xlu0 %v4030, 96
    %v4038 = vpop.permute.xlu0 %4037
    %v4039 = vsel %vm258, %v4025, 0
    %v4041 = vsel %vm258, %v4030, 0
    %v4043 = vsel %vm258, %v4036, 0
    %v4045 = vsel %vm258, %v4038, 0
    %4047 = vmatprep.subr.mxu0 0.0
    %4048 = vmatpush1.xpose.msra.mxu0 %v4043
    %4049 = vmatprep.subr.mxu0 0.0
    %4050 = vmatpush1.xpose.msra.mxu0 %v4045
    %4051 = vmatprep.subr.mxu0 0.0
    %4052 = vmatpush1.xpose.msra.mxu0 0.0
    %4053 = vmatprep.subr.mxu0 0.0
    %4054 = vmatpush1.xpose.msra.mxu0 0.0
    %4055 = vmatprep.subr.mxu0 0.0
    %4056 = vmatpush1.xpose.msra.mxu0 0.0
    %4057 = vmatprep.subr.mxu0 0.0
    %4058 = vmatpush1.xpose.msra.mxu0 0.0
    %4059 = vmatprep.subr.mxu0 0.0
    %4060 = vmatpush1.xpose.msra.mxu0 0.0
    %4061 = vmatprep.subr.mxu0 0.0
    %4062 = vmatpush1.xpose.msra.mxu0 0.0
    %4063 = vmatprep.subr.mxu0 0.0
    %4064 = vmatpush1.xpose.msra.mxu0 0.0
    %4065 = vmatprep.subr.mxu0 0.0
    %4066 = vmatpush1.xpose.msra.mxu0 0.0
    %4067 = vmatprep.subr.mxu0 0.0
    %4068 = vmatpush1.xpose.msra.mxu0 0.0
    %4069 = vmatprep.subr.mxu0 0.0
    %4070 = vmatpush1.xpose.msra.mxu0 0.0
    %4071 = vmatprep.subr.mxu0 0.0
    %4072 = vmatpush1.xpose.msra.mxu0 0.0
    %4073 = vmatprep.subr.mxu0 0.0
    %4074 = vmatpush1.xpose.msra.mxu0 0.0
    %4075 = vmatprep.subr.mxu0 0.0
    %4076 = vmatpush1.xpose.msra.mxu0 0.0
    %4077 = vmatprep.subr.mxu0 0.0
    %4078 = vmatpush1.xpose.msra.mxu0 0.0
    %4079 = vmatprep.subr.mxu0 0.0
    %4080 = vmatpush1.xpose.msra.mxu0 0.0
    %4081 = vmatprep.subr.mxu0 0.0
    %4082 = vmatpush1.xpose.msra.mxu0 0.0
    %4083 = vmatprep.subr.mxu0 0.0
    %4084 = vmatpush1.xpose.msra.mxu0 0.0
    %4085 = vmatprep.subr.mxu0 0.0
    %4086 = vmatpush1.xpose.msra.mxu0 0.0
    %4087 = vmatprep.subr.mxu0 0.0
    %4088 = vmatpush1.xpose.msra.mxu0 0.0
    %4089 = vmatprep.subr.mxu0 0.0
    %4090 = vmatpush1.xpose.msra.mxu0 0.0
    %4091 = vmatprep.subr.mxu0 0.0
    %4092 = vmatpush1.xpose.msra.mxu0 0.0
    %4093 = vmatprep.subr.mxu0 0.0
    %4094 = vmatpush1.xpose.msra.mxu0 0.0
    %4095 = vmatprep.subr.mxu0 0.0
    %4096 = vmatpush1.xpose.msra.mxu0 0.0
    %4097 = vmatprep.subr.mxu0 0.0
    %4098 = vmatpush1.xpose.msra.mxu0 0.0
    %4099 = vmatprep.subr.mxu0 0.0
    %4100 = vmatpush1.xpose.msra.mxu0 0.0
    %4101 = vmatprep.subr.mxu0 0.0
    %4102 = vmatpush1.xpose.msra.mxu0 0.0
    %4103 = vmatprep.subr.mxu0 0.0
    %4104 = vmatpush1.xpose.msra.mxu0 0.0
    %4105 = vmatprep.subr.mxu0 0.0
    %4106 = vmatpush1.xpose.msra.mxu0 0.0
    %4107 = vmatprep.subr.mxu0 0.0
    %4108 = vmatpush1.xpose.msra.mxu0 0.0
    %4109 = vmatprep.subr.mxu0 0.0
    %4110 = vmatpush1.xpose.msra.mxu0 0.0
    %4111 = vmatprep.mubr.f32.mxu0 0.0
    %4112 = vmatmul.mubr.f32.gmra.mrb[0].mxu0 %v4039
    %v4113 = vpop.f32.mrb[0].mxu0
    %v4114 = vadd.f32 0.0, %v4113
    %v4115 = vpop.f32.mrb[0].mxu0
    %4116 = vmatprep.mubr.f32.mxu0 0.0
    %4117 = vmatmul.mubr.f32.gmra.mrb[0].mxu0 %v4041
    %v4118 = vpop.f32.mrb[0].mxu0
    %v4119 = vadd.f32 0.0, %v4118
    %v4120 = vpop.f32.mrb[0].mxu0
    %4121 = vdwg.mxu0
    %v4122 = vmul.f32 %v4114, 0.35355338
    %v4123 = vmul.f32 %v4119, 0.35355338
    %v4124 = vsel %vm344, %v4122, -inf
    %4125 = vmax.xlane.f32.xlu0 %v4124
    %v4126 = vpop.xlane.xlu0 %4125
    %v4127 = vsel %vm348, %v4123, -inf
    %4128 = vmax.xlane.f32.xlu0 %v4127
    %v4129 = vpop.xlane.xlu0 %4128
    %v4130 = vsub.f32 %v4122, %v4126
    %v4131 = vsub.f32 %v4123, %v4129
    %v4132 = vmul.f32 %v4130, 1.442695
    %v4133 = vpow.pop %v4132
    %v4134 = vmul.f32 %v4131, 1.442695
    %v4135 = vpow.pop %v4134
    %v4136 = vsel %vm344, %v4133, 0.0
    %4137 = vadd.xlane.f32.xlu0 %v4136
    %v4138 = vpop.xlane.xlu0 %4137
    %v4139 = vsel %vm348, %v4135, 0.0
    %4140 = vadd.xlane.f32.xlu0 %v4139
    %v4141 = vpop.xlane.xlu0 %4140
    %v4142 = vrcp.pop %v4138
    %v4143 = vrcp.pop %v4141
    %v4144 = vmul.f32 %v4133, %v4142
    %v4145 = vmul.f32 %v4135, %v4143
    %4146 = vrot.lane.b32.xlu0 %v4025, 64
    %v4147 = vpop.permute.xlu0 %4146
    %4148 = vrot.lane.b32.xlu0 %v4030, 64
    %v4149 = vpop.permute.xlu0 %4148
    %v4152 = vsel %vm344, %v4144, 0
    %v4155 = vsel %vm344, %v4145, 0
    %v4157 = vsel %vm379, %v4149, 0
    %4159 = vmatprep.subr.mxu0 0.0
    %4160 = vmatpush1.msra.mxu0 %v4147
    %4161 = vmatprep.subr.mxu0 0.0
    %4162 = vmatpush1.msra.mxu0 %v4157
    %4163 = vmatprep.subr.mxu0 0.0
    %4164 = vmatpush1.msra.mxu0 0.0
    %4165 = vmatprep.subr.mxu0 0.0
    %4166 = vmatpush1.msra.mxu0 0.0
    %4167 = vmatprep.subr.mxu0 0.0
    %4168 = vmatpush1.msra.mxu0 0.0
    %4169 = vmatprep.subr.mxu0 0.0
    %4170 = vmatpush1.msra.mxu0 0.0
    %4171 = vmatprep.subr.mxu0 0.0
    %4172 = vmatpush1.msra.mxu0 0.0
    %4173 = vmatprep.subr.mxu0 0.0
    %4174 = vmatpush1.msra.mxu0 0.0
    %4175 = vmatprep.subr.mxu0 0.0
    %4176 = vmatpush1.msra.mxu0 0.0
    %4177 = vmatprep.subr.mxu0 0.0
    %4178 = vmatpush1.msra.mxu0 0.0
    %4179 = vmatprep.subr.mxu0 0.0
    %4180 = vmatpush1.msra.mxu0 0.0
    %4181 = vmatprep.subr.mxu0 0.0
    %4182 = vmatpush1.msra.mxu0 0.0
    %4183 = vmatprep.subr.mxu0 0.0
    %4184 = vmatpush1.msra.mxu0 0.0
    %4185 = vmatprep.subr.mxu0 0.0
    %4186 = vmatpush1.msra.mxu0 0.0
    %4187 = vmatprep.subr.mxu0 0.0
    %4188 = vmatpush1.msra.mxu0 0.0
    %4189 = vmatprep.subr.mxu0 0.0
    %4190 = vmatpush1.msra.mxu0 0.0
    %4191 = vmatprep.subr.mxu0 0.0
    %4192 = vmatpush1.msra.mxu0 0.0
    %4193 = vmatprep.subr.mxu0 0.0
    %4194 = vmatpush1.msra.mxu0 0.0
    %4195 = vmatprep.subr.mxu0 0.0
    %4196 = vmatpush1.msra.mxu0 0.0
    %4197 = vmatprep.subr.mxu0 0.0
    %4198 = vmatpush1.msra.mxu0 0.0
    %4199 = vmatprep.subr.mxu0 0.0
    %4200 = vmatpush1.msra.mxu0 0.0
    %4201 = vmatprep.subr.mxu0 0.0
    %4202 = vmatpush1.msra.mxu0 0.0
    %4203 = vmatprep.subr.mxu0 0.0
    %4204 = vmatpush1.msra.mxu0 0.0
    %4205 = vmatprep.subr.mxu0 0.0
    %4206 = vmatpush1.msra.mxu0 0.0
    %4207 = vmatprep.subr.mxu0 0.0
    %4208 = vmatpush1.msra.mxu0 0.0
    %4209 = vmatprep.subr.mxu0 0.0
    %4210 = vmatpush1.msra.mxu0 0.0
    %4211 = vmatprep.subr.mxu0 0.0
    %4212 = vmatpush1.msra.mxu0 0.0
    %4213 = vmatprep.subr.mxu0 0.0
    %4214 = vmatpush1.msra.mxu0 0.0
    %4215 = vmatprep.subr.mxu0 0.0
    %4216 = vmatpush1.msra.mxu0 0.0
    %4217 = vmatprep.subr.mxu0 0.0
    %4218 = vmatpush1.msra.mxu0 0.0
    %4219 = vmatprep.subr.mxu0 0.0
    %4220 = vmatpush1.msra.mxu0 0.0
    %4221 = vmatprep.subr.mxu0 0.0
    %4222 = vmatpush1.msra.mxu0 0.0
    %4223 = vmatprep.mubr.f32.mxu0 0.0
    %4224 = vmatmul.mubr.f32.gmra.mrb[0].mxu0 %v4152
    %v4225 = vpop.f32.mrb[0].mxu0
    %v4226 = vadd.f32 0.0, %v4225
    %v4227 = vpop.f32.mrb[0].mxu0
    %4228 = vmatprep.mubr.f32.mxu0 0.0
    %4229 = vmatmul.mubr.f32.gmra.mrb[0].mxu0 %v4155
    %v4230 = vpop.f32.mrb[0].mxu0
    %v4231 = vadd.f32 0.0, %v4230
    %v4232 = vpop.f32.mrb[0].mxu0
    %4233 = vdwg.mxu0
    %4234 = vrot.lane.b32.xlu0 %v4025, 120
    %v4235 = vpop.permute.xlu0 %4234
    %4236 = vrot.lane.b32.xlu0 %v4030, 120
    %v4237 = vpop.permute.xlu0 %4236
    %4238 = vrot.lane.b32.xlu0 %v4025, 88
    %v4239 = vpop.permute.xlu0 %4238
    %4240 = vrot.lane.b32.xlu0 %v4030, 88
    %v4241 = vpop.permute.xlu0 %4240
    %v4242 = vsel %vm258, %v4235, 0
    %v4244 = vsel %vm258, %v4237, 0
    %v4246 = vsel %vm258, %v4239, 0
    %v4248 = vsel %vm258, %v4241, 0
    %4250 = vmatprep.subr.mxu0 0.0
    %4251 = vmatpush1.xpose.msra.mxu0 %v4246
    %4252 = vmatprep.subr.mxu0 0.0
    %4253 = vmatpush1.xpose.msra.mxu0 %v4248
    %4254 = vmatprep.subr.mxu0 0.0
    %4255 = vmatpush1.xpose.msra.mxu0 0.0
    %4256 = vmatprep.subr.mxu0 0.0
    %4257 = vmatpush1.xpose.msra.mxu0 0.0
    %4258 = vmatprep.subr.mxu0 0.0
    %4259 = vmatpush1.xpose.msra.mxu0 0.0
    %4260 = vmatprep.subr.mxu0 0.0
    %4261 = vmatpush1.xpose.msra.mxu0 0.0
    %4262 = vmatprep.subr.mxu0 0.0
    %4263 = vmatpush1.xpose.msra.mxu0 0.0
    %4264 = vmatprep.subr.mxu0 0.0
    %4265 = vmatpush1.xpose.msra.mxu0 0.0
    %4266 = vmatprep.subr.mxu0 0.0
    %4267 = vmatpush1.xpose.msra.mxu0 0.0
    %4268 = vmatprep.subr.mxu0 0.0
    %4269 = vmatpush1.xpose.msra.mxu0 0.0
    %4270 = vmatprep.subr.mxu0 0.0
    %4271 = vmatpush1.xpose.msra.mxu0 0.0
    %4272 = vmatprep.subr.mxu0 0.0
    %4273 = vmatpush1.xpose.msra.mxu0 0.0
    %4274 = vmatprep.subr.mxu0 0.0
    %4275 = vmatpush1.xpose.msra.mxu0 0.0
    %4276 = vmatprep.subr.mxu0 0.0
    %4277 = vmatpush1.xpose.msra.mxu0 0.0
    %4278 = vmatprep.subr.mxu0 0.0
    %4279 = vmatpush1.xpose.msra.mxu0 0.0
    %4280 = vmatprep.subr.mxu0 0.0
    %4281 = vmatpush1.xpose.msra.mxu0 0.0
    %4282 = vmatprep.subr.mxu0 0.0
    %4283 = vmatpush1.xpose.msra.mxu0 0.0
    %4284 = vmatprep.subr.mxu0 0.0
    %4285 = vmatpush1.xpose.msra.mxu0 0.0
    %4286 = vmatprep.subr.mxu0 0.0
    %4287 = vmatpush1.xpose.msra.mxu0 0.0
    %4288 = vmatprep.subr.mxu0 0.0
    %4289 = vmatpush1.xpose.msra.mxu0 0.0
    %4290 = vmatprep.subr.mxu0 0.0
    %4291 = vmatpush1.xpose.msra.mxu0 0.0
    %4292 = vmatprep.subr.mxu0 0.0
    %4293 = vmatpush1.xpose.msra.mxu0 0.0
    %4294 = vmatprep.subr.mxu0 0.0
    %4295 = vmatpush1.xpose.msra.mxu0 0.0
    %4296 = vmatprep.subr.mxu0 0.0
    %4297 = vmatpush1.xpose.msra.mxu0 0.0
    %4298 = vmatprep.subr.mxu0 0.0
    %4299 = vmatpush1.xpose.msra.mxu0 0.0
    %4300 = vmatprep.subr.mxu0 0.0
    %4301 = vmatpush1.xpose.msra.mxu0 0.0
    %4302 = vmatprep.subr.mxu0 0.0
    %4303 = vmatpush1.xpose.msra.mxu0 0.0
    %4304 = vmatprep.subr.mxu0 0.0
    %4305 = vmatpush1.xpose.msra.mxu0 0.0
    %4306 = vmatprep.subr.mxu0 0.0
    %4307 = vmatpush1.xpose.msra.mxu0 0.0
    %4308 = vmatprep.subr.mxu0 0.0
    %4309 = vmatpush1.xpose.msra.mxu0 0.0
    %4310 = vmatprep.subr.mxu0 0.0
    %4311 = vmatpush1.xpose.msra.mxu0 0.0
    %4312 = vmatprep.subr.mxu0 0.0
    %4313 = vmatpush1.xpose.msra.mxu0 0.0
    %4314 = vmatprep.mubr.f32.mxu0 0.0
    %4315 = vmatmul.mubr.f32.gmra.mrb[0].mxu0 %v4242
    %v4316 = vpop.f32.mrb[0].mxu0
    %v4317 = vadd.f32 0.0, %v4316
    %v4318 = vpop.f32.mrb[0].mxu0
    %4319 = vmatprep.mubr.f32.mxu0 0.0
    %4320 = vmatmul.mubr.f32.gmra.mrb[0].mxu0 %v4244
    %v4321 = vpop.f32.mrb[0].mxu0
    %v4322 = vadd.f32 0.0, %v4321
    %v4323 = vpop.f32.mrb[0].mxu0
    %4324 = vdwg.mxu0
    %v4325 = vmul.f32 %v4317, 0.35355338
    %v4326 = vmul.f32 %v4322, 0.35355338
    %v4327 = vsel %vm344, %v4325, -inf
    %4328 = vmax.xlane.f32.xlu0 %v4327
    %v4329 = vpop.xlane.xlu0 %4328
    %v4330 = vsel %vm348, %v4326, -inf
    %4331 = vmax.xlane.f32.xlu0 %v4330
    %v4332 = vpop.xlane.xlu0 %4331
    %v4333 = vsub.f32 %v4325, %v4329
    %v4334 = vsub.f32 %v4326, %v4332
    %v4335 = vmul.f32 %v4333, 1.442695
    %v4336 = vpow.pop %v4335
    %v4337 = vmul.f32 %v4334, 1.442695
    %v4338 = vpow.pop %v4337
    %v4339 = vsel %vm344, %v4336, 0.0
    %4340 = vadd.xlane.f32.xlu0 %v4339
    %v4341 = vpop.xlane.xlu0 %4340
    %v4342 = vsel %vm348, %v4338, 0.0
    %4343 = vadd.xlane.f32.xlu0 %v4342
    %v4344 = vpop.xlane.xlu0 %4343
    %v4345 = vrcp.pop %v4341
    %v4346 = vrcp.pop %v4344
    %v4347 = vmul.f32 %v4336, %v4345
    %v4348 = vmul.f32 %v4338, %v4346
    %4349 = vrot.lane.b32.xlu0 %v4025, 56
    %v4350 = vpop.permute.xlu0 %4349
    %4351 = vrot.lane.b32.xlu0 %v4030, 56
    %v4352 = vpop.permute.xlu0 %4351
    %v4355 = vsel %vm344, %v4347, 0
    %v4358 = vsel %vm344, %v4348, 0
    %v4360 = vsel %vm379, %v4352, 0
    %4362 = vmatprep.subr.mxu0 0.0
    %4363 = vmatpush1.msra.mxu0 %v4350
    %4364 = vmatprep.subr.mxu0 0.0
    %4365 = vmatpush1.msra.mxu0 %v4360
    %4366 = vmatprep.subr.mxu0 0.0
    %4367 = vmatpush1.msra.mxu0 0.0
    %4368 = vmatprep.subr.mxu0 0.0
    %4369 = vmatpush1.msra.mxu0 0.0
    %4370 = vmatprep.subr.mxu0 0.0
    %4371 = vmatpush1.msra.mxu0 0.0
    %4372 = vmatprep.subr.mxu0 0.0
    %4373 = vmatpush1.msra.mxu0 0.0
    %4374 = vmatprep.subr.mxu0 0.0
    %4375 = vmatpush1.msra.mxu0 0.0
    %4376 = vmatprep.subr.mxu0 0.0
    %4377 = vmatpush1.msra.mxu0 0.0
    %4378 = vmatprep.subr.mxu0 0.0
    %4379 = vmatpush1.msra.mxu0 0.0
    %4380 = vmatprep.subr.mxu0 0.0
    %4381 = vmatpush1.msra.mxu0 0.0
    %4382 = vmatprep.subr.mxu0 0.0
    %4383 = vmatpush1.msra.mxu0 0.0
    %4384 = vmatprep.subr.mxu0 0.0
    %4385 = vmatpush1.msra.mxu0 0.0
    %4386 = vmatprep.subr.mxu0 0.0
    %4387 = vmatpush1.msra.mxu0 0.0
    %4388 = vmatprep.subr.mxu0 0.0
    %4389 = vmatpush1.msra.mxu0 0.0
    %4390 = vmatprep.subr.mxu0 0.0
    %4391 = vmatpush1.msra.mxu0 0.0
    %4392 = vmatprep.subr.mxu0 0.0
    %4393 = vmatpush1.msra.mxu0 0.0
    %4394 = vmatprep.subr.mxu0 0.0
    %4395 = vmatpush1.msra.mxu0 0.0
    %4396 = vmatprep.subr.mxu0 0.0
    %4397 = vmatpush1.msra.mxu0 0.0
    %4398 = vmatprep.subr.mxu0 0.0
    %4399 = vmatpush1.msra.mxu0 0.0
    %4400 = vmatprep.subr.mxu0 0.0
    %4401 = vmatpush1.msra.mxu0 0.0
    %4402 = vmatprep.subr.mxu0 0.0
    %4403 = vmatpush1.msra.mxu0 0.0
    %4404 = vmatprep.subr.mxu0 0.0
    %4405 = vmatpush1.msra.mxu0 0.0
    %4406 = vmatprep.subr.mxu0 0.0
    %4407 = vmatpush1.msra.mxu0 0.0
    %4408 = vmatprep.subr.mxu0 0.0
    %4409 = vmatpush1.msra.mxu0 0.0
    %4410 = vmatprep.subr.mxu0 0.0
    %4411 = vmatpush1.msra.mxu0 0.0
    %4412 = vmatprep.subr.mxu0 0.0
    %4413 = vmatpush1.msra.mxu0 0.0
    %4414 = vmatprep.subr.mxu0 0.0
    %4415 = vmatpush1.msra.mxu0 0.0
    %4416 = vmatprep.subr.mxu0 0.0
    %4417 = vmatpush1.msra.mxu0 0.0
    %4418 = vmatprep.subr.mxu0 0.0
    %4419 = vmatpush1.msra.mxu0 0.0
    %4420 = vmatprep.subr.mxu0 0.0
    %4421 = vmatpush1.msra.mxu0 0.0
    %4422 = vmatprep.subr.mxu0 0.0
    %4423 = vmatpush1.msra.mxu0 0.0
    %4424 = vmatprep.subr.mxu0 0.0
    %4425 = vmatpush1.msra.mxu0 0.0
    %4426 = vmatprep.mubr.f32.mxu0 0.0
    %4427 = vmatmul.mubr.f32.gmra.mrb[0].mxu0 %v4355
    %v4428 = vpop.f32.mrb[0].mxu0
    %v4429 = vadd.f32 0.0, %v4428
    %v4430 = vpop.f32.mrb[0].mxu0
    %4431 = vmatprep.mubr.f32.mxu0 0.0
    %4432 = vmatmul.mubr.f32.gmra.mrb[0].mxu0 %v4358
    %v4433 = vpop.f32.mrb[0].mxu0
    %v4434 = vadd.f32 0.0, %v4433
    %v4435 = vpop.f32.mrb[0].mxu0
    %4436 = vdwg.mxu0
    %4437 = vrot.lane.b32.xlu0 %v4025, 112
    %v4438 = vpop.permute.xlu0 %4437
    %4439 = vrot.lane.b32.xlu0 %v4030, 112
    %v4440 = vpop.permute.xlu0 %4439
    %4441 = vrot.lane.b32.xlu0 %v4025, 80
    %v4442 = vpop.permute.xlu0 %4441
    %4443 = vrot.lane.b32.xlu0 %v4030, 80
    %v4444 = vpop.permute.xlu0 %4443
    %v4445 = vsel %vm258, %v4438, 0
    %v4447 = vsel %vm258, %v4440, 0
    %v4449 = vsel %vm258, %v4442, 0
    %v4451 = vsel %vm258, %v4444, 0
    %4453 = vmatprep.subr.mxu0 0.0
    %4454 = vmatpush1.xpose.msra.mxu0 %v4449
    %4455 = vmatprep.subr.mxu0 0.0
    %4456 = vmatpush1.xpose.msra.mxu0 %v4451
    %4457 = vmatprep.subr.mxu0 0.0
    %4458 = vmatpush1.xpose.msra.mxu0 0.0
    %4459 = vmatprep.subr.mxu0 0.0
    %4460 = vmatpush1.xpose.msra.mxu0 0.0
    %4461 = vmatprep.subr.mxu0 0.0
    %4462 = vmatpush1.xpose.msra.mxu0 0.0
    %4463 = vmatprep.subr.mxu0 0.0
    %4464 = vmatpush1.xpose.msra.mxu0 0.0
    %4465 = vmatprep.subr.mxu0 0.0
    %4466 = vmatpush1.xpose.msra.mxu0 0.0
    %4467 = vmatprep.subr.mxu0 0.0
    %4468 = vmatpush1.xpose.msra.mxu0 0.0
    %4469 = vmatprep.subr.mxu0 0.0
    %4470 = vmatpush1.xpose.msra.mxu0 0.0
    %4471 = vmatprep.subr.mxu0 0.0
    %4472 = vmatpush1.xpose.msra.mxu0 0.0
    %4473 = vmatprep.subr.mxu0 0.0
    %4474 = vmatpush1.xpose.msra.mxu0 0.0
    %4475 = vmatprep.subr.mxu0 0.0
    %4476 = vmatpush1.xpose.msra.mxu0 0.0
    %4477 = vmatprep.subr.mxu0 0.0
    %4478 = vmatpush1.xpose.msra.mxu0 0.0
    %4479 = vmatprep.subr.mxu0 0.0
    %4480 = vmatpush1.xpose.msra.mxu0 0.0
    %4481 = vmatprep.subr.mxu0 0.0
    %4482 = vmatpush1.xpose.msra.mxu0 0.0
    %4483 = vmatprep.subr.mxu0 0.0
    %4484 = vmatpush1.xpose.msra.mxu0 0.0
    %4485 = vmatprep.subr.mxu0 0.0
    %4486 = vmatpush1.xpose.msra.mxu0 0.0
    %4487 = vmatprep.subr.mxu0 0.0
    %4488 = vmatpush1.xpose.msra.mxu0 0.0
    %4489 = vmatprep.subr.mxu0 0.0
    %4490 = vmatpush1.xpose.msra.mxu0 0.0
    %4491 = vmatprep.subr.mxu0 0.0
    %4492 = vmatpush1.xpose.msra.mxu0 0.0
    %4493 = vmatprep.subr.mxu0 0.0
    %4494 = vmatpush1.xpose.msra.mxu0 0.0
    %4495 = vmatprep.subr.mxu0 0.0
    %4496 = vmatpush1.xpose.msra.mxu0 0.0
    %4497 = vmatprep.subr.mxu0 0.0
    %4498 = vmatpush1.xpose.msra.mxu0 0.0
    %4499 = vmatprep.subr.mxu0 0.0
    %4500 = vmatpush1.xpose.msra.mxu0 0.0
    %4501 = vmatprep.subr.mxu0 0.0
    %4502 = vmatpush1.xpose.msra.mxu0 0.0
    %4503 = vmatprep.subr.mxu0 0.0
    %4504 = vmatpush1.xpose.msra.mxu0 0.0
    %4505 = vmatprep.subr.mxu0 0.0
    %4506 = vmatpush1.xpose.msra.mxu0 0.0
    %4507 = vmatprep.subr.mxu0 0.0
    %4508 = vmatpush1.xpose.msra.mxu0 0.0
    %4509 = vmatprep.subr.mxu0 0.0
    %4510 = vmatpush1.xpose.msra.mxu0 0.0
    %4511 = vmatprep.subr.mxu0 0.0
    %4512 = vmatpush1.xpose.msra.mxu0 0.0
    %4513 = vmatprep.subr.mxu0 0.0
    %4514 = vmatpush1.xpose.msra.mxu0 0.0
    %4515 = vmatprep.subr.mxu0 0.0
    %4516 = vmatpush1.xpose.msra.mxu0 0.0
    %4517 = vmatprep.mubr.f32.mxu0 0.0
    %4518 = vmatmul.mubr.f32.gmra.mrb[0].mxu0 %v4445
    %v4519 = vpop.f32.mrb[0].mxu0
    %v4520 = vadd.f32 0.0, %v4519
    %v4521 = vpop.f32.mrb[0].mxu0
    %4522 = vmatprep.mubr.f32.mxu0 0.0
    %4523 = vmatmul.mubr.f32.gmra.mrb[0].mxu0 %v4447
    %v4524 = vpop.f32.mrb[0].mxu0
    %v4525 = vadd.f32 0.0, %v4524
    %v4526 = vpop.f32.mrb[0].mxu0
    %4527 = vdwg.mxu0
    %v4528 = vmul.f32 %v4520, 0.35355338
    %v4529 = vmul.f32 %v4525, 0.35355338
    %v4530 = vsel %vm344, %v4528, -inf
    %4531 = vmax.xlane.f32.xlu0 %v4530
    %v4532 = vpop.xlane.xlu0 %4531
    %v4533 = vsel %vm348, %v4529, -inf
    %4534 = vmax.xlane.f32.xlu0 %v4533
    %v4535 = vpop.xlane.xlu0 %4534
    %v4536 = vsub.f32 %v4528, %v4532
    %v4537 = vsub.f32 %v4529, %v4535
    %v4538 = vmul.f32 %v4536, 1.442695
    %v4539 = vpow.pop %v4538
    %v4540 = vmul.f32 %v4537, 1.442695
    %v4541 = vpow.pop %v4540
    %v4542 = vsel %vm344, %v4539, 0.0
    %4543 = vadd.xlane.f32.xlu0 %v4542
    %v4544 = vpop.xlane.xlu0 %4543
    %v4545 = vsel %vm348, %v4541, 0.0
    %4546 = vadd.xlane.f32.xlu0 %v4545
    %v4547 = vpop.xlane.xlu0 %4546
    %v4548 = vrcp.pop %v4544
    %v4549 = vrcp.pop %v4547
    %v4550 = vmul.f32 %v4539, %v4548
    %v4551 = vmul.f32 %v4541, %v4549
    %4552 = vrot.lane.b32.xlu0 %v4025, 48
    %v4553 = vpop.permute.xlu0 %4552
    %4554 = vrot.lane.b32.xlu0 %v4030, 48
    %v4555 = vpop.permute.xlu0 %4554
    %v4558 = vsel %vm344, %v4550, 0
    %v4561 = vsel %vm344, %v4551, 0
    %v4563 = vsel %vm379, %v4555, 0
    %4565 = vmatprep.subr.mxu0 0.0
    %4566 = vmatpush1.msra.mxu0 %v4553
    %4567 = vmatprep.subr.mxu0 0.0
    %4568 = vmatpush1.msra.mxu0 %v4563
    %4569 = vmatprep.subr.mxu0 0.0
    %4570 = vmatpush1.msra.mxu0 0.0
    %4571 = vmatprep.subr.mxu0 0.0
    %4572 = vmatpush1.msra.mxu0 0.0
    %4573 = vmatprep.subr.mxu0 0.0
    %4574 = vmatpush1.msra.mxu0 0.0
    %4575 = vmatprep.subr.mxu0 0.0
    %4576 = vmatpush1.msra.mxu0 0.0
    %4577 = vmatprep.subr.mxu0 0.0
    %4578 = vmatpush1.msra.mxu0 0.0
    %4579 = vmatprep.subr.mxu0 0.0
    %4580 = vmatpush1.msra.mxu0 0.0
    %4581 = vmatprep.subr.mxu0 0.0
    %4582 = vmatpush1.msra.mxu0 0.0
    %4583 = vmatprep.subr.mxu0 0.0
    %4584 = vmatpush1.msra.mxu0 0.0
    %4585 = vmatprep.subr.mxu0 0.0
    %4586 = vmatpush1.msra.mxu0 0.0
    %4587 = vmatprep.subr.mxu0 0.0
    %4588 = vmatpush1.msra.mxu0 0.0
    %4589 = vmatprep.subr.mxu0 0.0
    %4590 = vmatpush1.msra.mxu0 0.0
    %4591 = vmatprep.subr.mxu0 0.0
    %4592 = vmatpush1.msra.mxu0 0.0
    %4593 = vmatprep.subr.mxu0 0.0
    %4594 = vmatpush1.msra.mxu0 0.0
    %4595 = vmatprep.subr.mxu0 0.0
    %4596 = vmatpush1.msra.mxu0 0.0
    %4597 = vmatprep.subr.mxu0 0.0
    %4598 = vmatpush1.msra.mxu0 0.0
    %4599 = vmatprep.subr.mxu0 0.0
    %4600 = vmatpush1.msra.mxu0 0.0
    %4601 = vmatprep.subr.mxu0 0.0
    %4602 = vmatpush1.msra.mxu0 0.0
    %4603 = vmatprep.subr.mxu0 0.0
    %4604 = vmatpush1.msra.mxu0 0.0
    %4605 = vmatprep.subr.mxu0 0.0
    %4606 = vmatpush1.msra.mxu0 0.0
    %4607 = vmatprep.subr.mxu0 0.0
    %4608 = vmatpush1.msra.mxu0 0.0
    %4609 = vmatprep.subr.mxu0 0.0
    %4610 = vmatpush1.msra.mxu0 0.0
    %4611 = vmatprep.subr.mxu0 0.0
    %4612 = vmatpush1.msra.mxu0 0.0
    %4613 = vmatprep.subr.mxu0 0.0
    %4614 = vmatpush1.msra.mxu0 0.0
    %4615 = vmatprep.subr.mxu0 0.0
    %4616 = vmatpush1.msra.mxu0 0.0
    %4617 = vmatprep.subr.mxu0 0.0
    %4618 = vmatpush1.msra.mxu0 0.0
    %4619 = vmatprep.subr.mxu0 0.0
    %4620 = vmatpush1.msra.mxu0 0.0
    %4621 = vmatprep.subr.mxu0 0.0
    %4622 = vmatpush1.msra.mxu0 0.0
    %4623 = vmatprep.subr.mxu0 0.0
    %4624 = vmatpush1.msra.mxu0 0.0
    %4625 = vmatprep.subr.mxu0 0.0
    %4626 = vmatpush1.msra.mxu0 0.0
    %4627 = vmatprep.subr.mxu0 0.0
    %4628 = vmatpush1.msra.mxu0 0.0
    %4629 = vmatprep.mubr.f32.mxu0 0.0
    %4630 = vmatmul.mubr.f32.gmra.mrb[0].mxu0 %v4558
    %v4631 = vpop.f32.mrb[0].mxu0
    %v4632 = vadd.f32 0.0, %v4631
    %v4633 = vpop.f32.mrb[0].mxu0
    %4634 = vmatprep.mubr.f32.mxu0 0.0
    %4635 = vmatmul.mubr.f32.gmra.mrb[0].mxu0 %v4561
    %v4636 = vpop.f32.mrb[0].mxu0
    %v4637 = vadd.f32 0.0, %v4636
    %v4638 = vpop.f32.mrb[0].mxu0
    %4639 = vdwg.mxu0
    %4640 = vrot.lane.b32.xlu0 %v4025, 104
    %v4641 = vpop.permute.xlu0 %4640
    %4642 = vrot.lane.b32.xlu0 %v4030, 104
    %v4643 = vpop.permute.xlu0 %4642
    %4644 = vrot.lane.b32.xlu0 %v4025, 72
    %v4645 = vpop.permute.xlu0 %4644
    %4646 = vrot.lane.b32.xlu0 %v4030, 72
    %v4647 = vpop.permute.xlu0 %4646
    %v4648 = vsel %vm258, %v4641, 0
    %v4650 = vsel %vm258, %v4643, 0
    %v4652 = vsel %vm258, %v4645, 0
    %v4654 = vsel %vm258, %v4647, 0
    %4656 = vmatprep.subr.mxu0 0.0
    %4657 = vmatpush1.xpose.msra.mxu0 %v4652
    %4658 = vmatprep.subr.mxu0 0.0
    %4659 = vmatpush1.xpose.msra.mxu0 %v4654
    %4660 = vmatprep.subr.mxu0 0.0
    %4661 = vmatpush1.xpose.msra.mxu0 0.0
    %4662 = vmatprep.subr.mxu0 0.0
    %4663 = vmatpush1.xpose.msra.mxu0 0.0
    %4664 = vmatprep.subr.mxu0 0.0
    %4665 = vmatpush1.xpose.msra.mxu0 0.0
    %4666 = vmatprep.subr.mxu0 0.0
    %4667 = vmatpush1.xpose.msra.mxu0 0.0
    %4668 = vmatprep.subr.mxu0 0.0
    %4669 = vmatpush1.xpose.msra.mxu0 0.0
    %4670 = vmatprep.subr.mxu0 0.0
    %4671 = vmatpush1.xpose.msra.mxu0 0.0
    %4672 = vmatprep.subr.mxu0 0.0
    %4673 = vmatpush1.xpose.msra.mxu0 0.0
    %4674 = vmatprep.subr.mxu0 0.0
    %4675 = vmatpush1.xpose.msra.mxu0 0.0
    %4676 = vmatprep.subr.mxu0 0.0
    %4677 = vmatpush1.xpose.msra.mxu0 0.0
    %4678 = vmatprep.subr.mxu0 0.0
    %4679 = vmatpush1.xpose.msra.mxu0 0.0
    %4680 = vmatprep.subr.mxu0 0.0
    %4681 = vmatpush1.xpose.msra.mxu0 0.0
    %4682 = vmatprep.subr.mxu0 0.0
    %4683 = vmatpush1.xpose.msra.mxu0 0.0
    %4684 = vmatprep.subr.mxu0 0.0
    %4685 = vmatpush1.xpose.msra.mxu0 0.0
    %4686 = vmatprep.subr.mxu0 0.0
    %4687 = vmatpush1.xpose.msra.mxu0 0.0
    %4688 = vmatprep.subr.mxu0 0.0
    %4689 = vmatpush1.xpose.msra.mxu0 0.0
    %4690 = vmatprep.subr.mxu0 0.0
    %4691 = vmatpush1.xpose.msra.mxu0 0.0
    %4692 = vmatprep.subr.mxu0 0.0
    %4693 = vmatpush1.xpose.msra.mxu0 0.0
    %4694 = vmatprep.subr.mxu0 0.0
    %4695 = vmatpush1.xpose.msra.mxu0 0.0
    %4696 = vmatprep.subr.mxu0 0.0
    %4697 = vmatpush1.xpose.msra.mxu0 0.0
    %4698 = vmatprep.subr.mxu0 0.0
    %4699 = vmatpush1.xpose.msra.mxu0 0.0
    %4700 = vmatprep.subr.mxu0 0.0
    %4701 = vmatpush1.xpose.msra.mxu0 0.0
    %4702 = vmatprep.subr.mxu0 0.0
    %4703 = vmatpush1.xpose.msra.mxu0 0.0
    %4704 = vmatprep.subr.mxu0 0.0
    %4705 = vmatpush1.xpose.msra.mxu0 0.0
    %4706 = vmatprep.subr.mxu0 0.0
    %4707 = vmatpush1.xpose.msra.mxu0 0.0
    %4708 = vmatprep.subr.mxu0 0.0
    %4709 = vmatpush1.xpose.msra.mxu0 0.0
    %4710 = vmatprep.subr.mxu0 0.0
    %4711 = vmatpush1.xpose.msra.mxu0 0.0
    %4712 = vmatprep.subr.mxu0 0.0
    %4713 = vmatpush1.xpose.msra.mxu0 0.0
    %4714 = vmatprep.subr.mxu0 0.0
    %4715 = vmatpush1.xpose.msra.mxu0 0.0
    %4716 = vmatprep.subr.mxu0 0.0
    %4717 = vmatpush1.xpose.msra.mxu0 0.0
    %4718 = vmatprep.subr.mxu0 0.0
    %4719 = vmatpush1.xpose.msra.mxu0 0.0
    %4720 = vmatprep.mubr.f32.mxu0 0.0
    %4721 = vmatmul.mubr.f32.gmra.mrb[0].mxu0 %v4648
    %v4722 = vpop.f32.mrb[0].mxu0
    %v4723 = vadd.f32 0.0, %v4722
    %v4724 = vpop.f32.mrb[0].mxu0
    %4725 = vmatprep.mubr.f32.mxu0 0.0
    %4726 = vmatmul.mubr.f32.gmra.mrb[0].mxu0 %v4650
    %v4727 = vpop.f32.mrb[0].mxu0
    %v4728 = vadd.f32 0.0, %v4727
    %v4729 = vpop.f32.mrb[0].mxu0
    %4730 = vdwg.mxu0
    %v4731 = vmul.f32 %v4723, 0.35355338
    %v4732 = vmul.f32 %v4728, 0.35355338
    %v4733 = vsel %vm344, %v4731, -inf
    %4734 = vmax.xlane.f32.xlu0 %v4733
    %v4735 = vpop.xlane.xlu0 %4734
    %v4736 = vsel %vm348, %v4732, -inf
    %4737 = vmax.xlane.f32.xlu0 %v4736
    %v4738 = vpop.xlane.xlu0 %4737
    %v4739 = vsub.f32 %v4731, %v4735
    %v4740 = vsub.f32 %v4732, %v4738
    %v4741 = vmul.f32 %v4739, 1.442695
    %v4742 = vpow.pop %v4741
    %v4743 = vmul.f32 %v4740, 1.442695
    %v4744 = vpow.pop %v4743
    %v4745 = vsel %vm344, %v4742, 0.0
    %4746 = vadd.xlane.f32.xlu0 %v4745
    %v4747 = vpop.xlane.xlu0 %4746
    %v4748 = vsel %vm348, %v4744, 0.0
    %4749 = vadd.xlane.f32.xlu0 %v4748
    %v4750 = vpop.xlane.xlu0 %4749
    %v4751 = vrcp.pop %v4747
    %v4752 = vrcp.pop %v4750
    %v4753 = vmul.f32 %v4742, %v4751
    %v4754 = vmul.f32 %v4744, %v4752
    %4755 = vrot.lane.b32.xlu0 %v4025, 40
    %v4756 = vpop.permute.xlu0 %4755
    %4757 = vrot.lane.b32.xlu0 %v4030, 40
    %v4758 = vpop.permute.xlu0 %4757
    %v4761 = vsel %vm344, %v4753, 0
    %v4764 = vsel %vm344, %v4754, 0
    %v4766 = vsel %vm379, %v4758, 0
    %4768 = vmatprep.subr.mxu0 0.0
    %4769 = vmatpush1.msra.mxu0 %v4756
    %4770 = vmatprep.subr.mxu0 0.0
    %4771 = vmatpush1.msra.mxu0 %v4766
    %4772 = vmatprep.subr.mxu0 0.0
    %4773 = vmatpush1.msra.mxu0 0.0
    %4774 = vmatprep.subr.mxu0 0.0
    %4775 = vmatpush1.msra.mxu0 0.0
    %4776 = vmatprep.subr.mxu0 0.0
    %4777 = vmatpush1.msra.mxu0 0.0
    %4778 = vmatprep.subr.mxu0 0.0
    %4779 = vmatpush1.msra.mxu0 0.0
    %4780 = vmatprep.subr.mxu0 0.0
    %4781 = vmatpush1.msra.mxu0 0.0
    %4782 = vmatprep.subr.mxu0 0.0
    %4783 = vmatpush1.msra.mxu0 0.0
    %4784 = vmatprep.subr.mxu0 0.0
    %4785 = vmatpush1.msra.mxu0 0.0
    %4786 = vmatprep.subr.mxu0 0.0
    %4787 = vmatpush1.msra.mxu0 0.0
    %4788 = vmatprep.subr.mxu0 0.0
    %4789 = vmatpush1.msra.mxu0 0.0
    %4790 = vmatprep.subr.mxu0 0.0
    %4791 = vmatpush1.msra.mxu0 0.0
    %4792 = vmatprep.subr.mxu0 0.0
    %4793 = vmatpush1.msra.mxu0 0.0
    %4794 = vmatprep.subr.mxu0 0.0
    %4795 = vmatpush1.msra.mxu0 0.0
    %4796 = vmatprep.subr.mxu0 0.0
    %4797 = vmatpush1.msra.mxu0 0.0
    %4798 = vmatprep.subr.mxu0 0.0
    %4799 = vmatpush1.msra.mxu0 0.0
    %4800 = vmatprep.subr.mxu0 0.0
    %4801 = vmatpush1.msra.mxu0 0.0
    %4802 = vmatprep.subr.mxu0 0.0
    %4803 = vmatpush1.msra.mxu0 0.0
    %4804 = vmatprep.subr.mxu0 0.0
    %4805 = vmatpush1.msra.mxu0 0.0
    %4806 = vmatprep.subr.mxu0 0.0
    %4807 = vmatpush1.msra.mxu0 0.0
    %4808 = vmatprep.subr.mxu0 0.0
    %4809 = vmatpush1.msra.mxu0 0.0
    %4810 = vmatprep.subr.mxu0 0.0
    %4811 = vmatpush1.msra.mxu0 0.0
    %4812 = vmatprep.subr.mxu0 0.0
    %4813 = vmatpush1.msra.mxu0 0.0
    %4814 = vmatprep.subr.mxu0 0.0
    %4815 = vmatpush1.msra.mxu0 0.0
    %4816 = vmatprep.subr.mxu0 0.0
    %4817 = vmatpush1.msra.mxu0 0.0
    %4818 = vmatprep.subr.mxu0 0.0
    %4819 = vmatpush1.msra.mxu0 0.0
    %4820 = vmatprep.subr.mxu0 0.0
    %4821 = vmatpush1.msra.mxu0 0.0
    %4822 = vmatprep.subr.mxu0 0.0
    %4823 = vmatpush1.msra.mxu0 0.0
    %4824 = vmatprep.subr.mxu0 0.0
    %4825 = vmatpush1.msra.mxu0 0.0
    %4826 = vmatprep.subr.mxu0 0.0
    %4827 = vmatpush1.msra.mxu0 0.0
    %4828 = vmatprep.subr.mxu0 0.0
    %4829 = vmatpush1.msra.mxu0 0.0
    %4830 = vmatprep.subr.mxu0 0.0
    %4831 = vmatpush1.msra.mxu0 0.0
    %4832 = vmatprep.mubr.f32.mxu0 0.0
    %4833 = vmatmul.mubr.f32.gmra.mrb[0].mxu0 %v4761
    %v4834 = vpop.f32.mrb[0].mxu0
    %v4835 = vadd.f32 0.0, %v4834
    %v4836 = vpop.f32.mrb[0].mxu0
    %4837 = vmatprep.mubr.f32.mxu0 0.0
    %4838 = vmatmul.mubr.f32.gmra.mrb[0].mxu0 %v4764
    %v4839 = vpop.f32.mrb[0].mxu0
    %v4840 = vadd.f32 0.0, %v4839
    %v4841 = vpop.f32.mrb[0].mxu0
    %4842 = vdwg.mxu0
    %4845 = vrot.lane.b32.xlu0 %v4429, 8
    %v4846 = vpop.permute.xlu0 %4845
    %4847 = vrot.lane.b32.xlu0 %v4434, 8
    %v4848 = vpop.permute.xlu0 %4847
    %4853 = vrot.lane.b32.xlu0 %v4632, 16
    %v4854 = vpop.permute.xlu0 %4853
    %4855 = vrot.lane.b32.xlu0 %v4637, 16
    %v4856 = vpop.permute.xlu0 %4855
    %4861 = vrot.lane.b32.xlu0 %v4835, 24
    %v4862 = vpop.permute.xlu0 %4861
    %4863 = vrot.lane.b32.xlu0 %v4840, 24
    %v4864 = vpop.permute.xlu0 %4863
    %v4867 = vsel %vm258, %v4226, %v4846
    %v4868 = vsel %vm258, %v4231, %v4848
    %v4869 = vsel %vm1092, %v4867, %v4854
    %v4870 = vsel %vm1092, %v4868, %v4856
    %v4871 = vsel %vm1095, %v4869, %v4862
    %v4872 = vsel %vm1095, %v4870, %v4864
    %v4873 = vld [vmem:[%s2306] sm:$0xff]
    %v4874 = vld [vmem:[%s2306 + $0x8] sm:$0xff]
    %v4875 = vld [vmem:[%s2306 + $0x10] sm:$0xff]
    %v4876 = vld [vmem:[%s2306 + $0x18] sm:$0xff]
    %v4877 = vld [vmem:[%s2311] sm:$0x1]
    %v4879 = vlaneseq
    %v4880 = vshrl.u32 %v4879, 7
    %v4881 = vsub.s32 0, %v4880
    %v4882 = vrot.slane %v4877, %v4881
    %v4885 = vsel %vm170, %v4871, 0
    %v4888 = vsel %vm170, %v4872, 0
    %4890 = vmatprep.subr.mxu0 0.0
    %4891 = vmatpush1.msra.mxu0 %v4873
    %4892 = vmatprep.subr.mxu0 0.0
    %4893 = vmatpush1.msra.mxu0 %v4874
    %4894 = vmatprep.subr.mxu0 0.0
    %4895 = vmatpush1.msra.mxu0 %v4875
    %4896 = vmatprep.subr.mxu0 0.0
    %4897 = vmatpush1.msra.mxu0 %v4876
    %4898 = vmatprep.subr.mxu0 0.0
    %4899 = vmatpush1.msra.mxu0 0.0
    %4900 = vmatprep.subr.mxu0 0.0
    %4901 = vmatpush1.msra.mxu0 0.0
    %4902 = vmatprep.subr.mxu0 0.0
    %4903 = vmatpush1.msra.mxu0 0.0
    %4904 = vmatprep.subr.mxu0 0.0
    %4905 = vmatpush1.msra.mxu0 0.0
    %4906 = vmatprep.subr.mxu0 0.0
    %4907 = vmatpush1.msra.mxu0 0.0
    %4908 = vmatprep.subr.mxu0 0.0
    %4909 = vmatpush1.msra.mxu0 0.0
    %4910 = vmatprep.subr.mxu0 0.0
    %4911 = vmatpush1.msra.mxu0 0.0
    %4912 = vmatprep.subr.mxu0 0.0
    %4913 = vmatpush1.msra.mxu0 0.0
    %4914 = vmatprep.subr.mxu0 0.0
    %4915 = vmatpush1.msra.mxu0 0.0
    %4916 = vmatprep.subr.mxu0 0.0
    %4917 = vmatpush1.msra.mxu0 0.0
    %4918 = vmatprep.subr.mxu0 0.0
    %4919 = vmatpush1.msra.mxu0 0.0
    %4920 = vmatprep.subr.mxu0 0.0
    %4921 = vmatpush1.msra.mxu0 0.0
    %4922 = vmatprep.subr.mxu0 0.0
    %4923 = vmatpush1.msra.mxu0 0.0
    %4924 = vmatprep.subr.mxu0 0.0
    %4925 = vmatpush1.msra.mxu0 0.0
    %4926 = vmatprep.subr.mxu0 0.0
    %4927 = vmatpush1.msra.mxu0 0.0
    %4928 = vmatprep.subr.mxu0 0.0
    %4929 = vmatpush1.msra.mxu0 0.0
    %4930 = vmatprep.subr.mxu0 0.0
    %4931 = vmatpush1.msra.mxu0 0.0
    %4932 = vmatprep.subr.mxu0 0.0
    %4933 = vmatpush1.msra.mxu0 0.0
    %4934 = vmatprep.subr.mxu0 0.0
    %4935 = vmatpush1.msra.mxu0 0.0
    %4936 = vmatprep.subr.mxu0 0.0
    %4937 = vmatpush1.msra.mxu0 0.0
    %4938 = vmatprep.subr.mxu0 0.0
    %4939 = vmatpush1.msra.mxu0 0.0
    %4940 = vmatprep.subr.mxu0 0.0
    %4941 = vmatpush1.msra.mxu0 0.0
    %4942 = vmatprep.subr.mxu0 0.0
    %4943 = vmatpush1.msra.mxu0 0.0
    %4944 = vmatprep.subr.mxu0 0.0
    %4945 = vmatpush1.msra.mxu0 0.0
    %4946 = vmatprep.subr.mxu0 0.0
    %4947 = vmatpush1.msra.mxu0 0.0
    %4948 = vmatprep.subr.mxu0 0.0
    %4949 = vmatpush1.msra.mxu0 0.0
    %4950 = vmatprep.subr.mxu0 0.0
    %4951 = vmatpush1.msra.mxu0 0.0
    %4952 = vmatprep.subr.mxu0 0.0
    %4953 = vmatpush1.msra.mxu0 0.0
    %4954 = vmatprep.mubr.f32.mxu0 0.0
    %4955 = vmatmul.mubr.f32.gmra.mrb[0].mxu0 %v4885
    %v4956 = vpop.f32.mrb[0].mxu0
    %v4957 = vadd.f32 %v4882, %v4956
    %v4958 = vpop.f32.mrb[0].mxu0
    %4959 = vmatprep.mubr.f32.mxu0 0.0
    %4960 = vmatmul.mubr.f32.gmra.mrb[0].mxu0 %v4888
    %v4961 = vpop.f32.mrb[0].mxu0
    %v4962 = vadd.f32 %v4882, %v4961
    %v4963 = vpop.f32.mrb[0].mxu0
    %4964 = vdwg.mxu0
    %v4966 = vsel %vm379, %v4962, 0
    %4968 = vmatprep.subr.mxu0 0.0
    %4969 = vmatpush1.msra.mxu0 %v4957
    %4970 = vmatprep.subr.mxu0 0.0
    %4971 = vmatpush1.msra.mxu0 %v4966
    %4972 = vmatprep.subr.mxu0 0.0
    %4973 = vmatpush1.msra.mxu0 0.0
    %4974 = vmatprep.subr.mxu0 0.0
    %4975 = vmatpush1.msra.mxu0 0.0
    %4976 = vmatprep.subr.mxu0 0.0
    %4977 = vmatpush1.msra.mxu0 0.0
    %4978 = vmatprep.subr.mxu0 0.0
    %4979 = vmatpush1.msra.mxu0 0.0
    %4980 = vmatprep.subr.mxu0 0.0
    %4981 = vmatpush1.msra.mxu0 0.0
    %4982 = vmatprep.subr.mxu0 0.0
    %4983 = vmatpush1.msra.mxu0 0.0
    %4984 = vmatprep.subr.mxu0 0.0
    %4985 = vmatpush1.msra.mxu0 0.0
    %4986 = vmatprep.subr.mxu0 0.0
    %4987 = vmatpush1.msra.mxu0 0.0
    %4988 = vmatprep.subr.mxu0 0.0
    %4989 = vmatpush1.msra.mxu0 0.0
    %4990 = vmatprep.subr.mxu0 0.0
    %4991 = vmatpush1.msra.mxu0 0.0
    %4992 = vmatprep.subr.mxu0 0.0
    %4993 = vmatpush1.msra.mxu0 0.0
    %4994 = vmatprep.subr.mxu0 0.0
    %4995 = vmatpush1.msra.mxu0 0.0
    %4996 = vmatprep.subr.mxu0 0.0
    %4997 = vmatpush1.msra.mxu0 0.0
    %4998 = vmatprep.subr.mxu0 0.0
    %4999 = vmatpush1.msra.mxu0 0.0
    %5000 = vmatprep.subr.mxu0 0.0
    %5001 = vmatpush1.msra.mxu0 0.0
    %5002 = vmatprep.subr.mxu0 0.0
    %5003 = vmatpush1.msra.mxu0 0.0
    %5004 = vmatprep.subr.mxu0 0.0
    %5005 = vmatpush1.msra.mxu0 0.0
    %5006 = vmatprep.subr.mxu0 0.0
    %5007 = vmatpush1.msra.mxu0 0.0
    %5008 = vmatprep.subr.mxu0 0.0
    %5009 = vmatpush1.msra.mxu0 0.0
    %5010 = vmatprep.subr.mxu0 0.0
    %5011 = vmatpush1.msra.mxu0 0.0
    %5012 = vmatprep.subr.mxu0 0.0
    %5013 = vmatpush1.msra.mxu0 0.0
    %5014 = vmatprep.subr.mxu0 0.0
    %5015 = vmatpush1.msra.mxu0 0.0
    %5016 = vmatprep.subr.mxu0 0.0
    %5017 = vmatpush1.msra.mxu0 0.0
    %5018 = vmatprep.subr.mxu0 0.0
    %5019 = vmatpush1.msra.mxu0 0.0
    %5020 = vmatprep.subr.mxu0 0.0
    %5021 = vmatpush1.msra.mxu0 0.0
    %5022 = vmatprep.subr.mxu0 0.0
    %5023 = vmatpush1.msra.mxu0 0.0
    %5024 = vmatprep.subr.mxu0 0.0
    %5025 = vmatpush1.msra.mxu0 0.0
    %5026 = vmatprep.subr.mxu0 0.0
    %5027 = vmatpush1.msra.mxu0 0.0
    %5028 = vmatprep.subr.mxu0 0.0
    %5029 = vmatpush1.msra.mxu0 0.0
    %5030 = vmatprep.subr.mxu0 0.0
    %5031 = vmatpush1.msra.mxu0 0.0
    %5032 = vmatprep.mubr.f32.mxu0 0.0
    %5033 = vmatmul.mubr.f32.gmra.mrb[0].mxu0 %v1191
    %v5034 = vpop.f32.mrb[0].mxu0
    %v5035 = vadd.f32 0.0, %v5034
    %v5036 = vpop.f32.mrb[0].mxu0
    %5037 = vmatprep.mubr.f32.mxu0 0.0
    %5038 = vmatmul.mubr.f32.gmra.mrb[0].mxu0 %v1194
    %v5039 = vpop.f32.mrb[0].mxu0
    %v5040 = vadd.f32 0.0, %v5039
    %v5041 = vpop.f32.mrb[0].mxu0
    %5042 = vdwg.mxu0
    %v5043 = vld [vmem:[%s2478] sm:$0xff]
    %v5044 = vld [vmem:[%s2480] sm:$0xff]
    %v5045 = vmul.f32 %v5035, %v5043
    %v5046 = vmul.f32 %v5040, %v5044
    %v5047 = vsub.f32 %v5045, %v5046
    %v5048 = vmul.f32 %v5035, %v5044
    %v5049 = vmul.f32 %v5040, %v5043
    %v5050 = vadd.f32 %v5048, %v5049
    %v5051 = vld [vmem:[%s2488] sm:$0x1]
    %v5053 = vlaneseq
    %v5054 = vshrl.u32 %v5053, 7
    %v5055 = vsub.s32 0, %v5054
    %v5056 = vrot.slane %v5051, %v5055
    %5058 = vmatprep.subr.mxu0 0.0
    %5059 = vmatpush1.msra.mxu0 %v5047
    %5060 = vmatprep.subr.mxu0 0.0
    %5061 = vmatpush1.msra.mxu0 %v5050
    %5062 = vmatprep.subr.mxu0 0.0
    %5063 = vmatpush1.msra.mxu0 0.0
    %5064 = vmatprep.subr.mxu0 0.0
    %5065 = vmatpush1.msra.mxu0 0.0
    %5066 = vmatprep.subr.mxu0 0.0
    %5067 = vmatpush1.msra.mxu0 0.0
    %5068 = vmatprep.subr.mxu0 0.0
    %5069 = vmatpush1.msra.mxu0 0.0
    %5070 = vmatprep.subr.mxu0 0.0
    %5071 = vmatpush1.msra.mxu0 0.0
    %5072 = vmatprep.subr.mxu0 0.0
    %5073 = vmatpush1.msra.mxu0 0.0
    %5074 = vmatprep.subr.mxu0 0.0
    %5075 = vmatpush1.msra.mxu0 0.0
    %5076 = vmatprep.subr.mxu0 0.0
    %5077 = vmatpush1.msra.mxu0 0.0
    %5078 = vmatprep.subr.mxu0 0.0
    %5079 = vmatpush1.msra.mxu0 0.0
    %5080 = vmatprep.subr.mxu0 0.0
    %5081 = vmatpush1.msra.mxu0 0.0
    %5082 = vmatprep.subr.mxu0 0.0
    %5083 = vmatpush1.msra.mxu0 0.0
    %5084 = vmatprep.subr.mxu0 0.0
    %5085 = vmatpush1.msra.mxu0 0.0
    %5086 = vmatprep.subr.mxu0 0.0
    %5087 = vmatpush1.msra.mxu0 0.0
    %5088 = vmatprep.subr.mxu0 0.0
    %5089 = vmatpush1.msra.mxu0 0.0
    %5090 = vmatprep.subr.mxu0 0.0
    %5091 = vmatpush1.msra.mxu0 0.0
    %5092 = vmatprep.subr.mxu0 0.0
    %5093 = vmatpush1.msra.mxu0 0.0
    %5094 = vmatprep.subr.mxu0 0.0
    %5095 = vmatpush1.msra.mxu0 0.0
    %5096 = vmatprep.subr.mxu0 0.0
    %5097 = vmatpush1.msra.mxu0 0.0
    %5098 = vmatprep.subr.mxu0 0.0
    %5099 = vmatpush1.msra.mxu0 0.0
    %5100 = vmatprep.subr.mxu0 0.0
    %5101 = vmatpush1.msra.mxu0 0.0
    %5102 = vmatprep.subr.mxu0 0.0
    %5103 = vmatpush1.msra.mxu0 0.0
    %5104 = vmatprep.subr.mxu0 0.0
    %5105 = vmatpush1.msra.mxu0 0.0
    %5106 = vmatprep.subr.mxu0 0.0
    %5107 = vmatpush1.msra.mxu0 0.0
    %5108 = vmatprep.subr.mxu0 0.0
    %5109 = vmatpush1.msra.mxu0 0.0
    %5110 = vmatprep.subr.mxu0 0.0
    %5111 = vmatpush1.msra.mxu0 0.0
    %5112 = vmatprep.subr.mxu0 0.0
    %5113 = vmatpush1.msra.mxu0 0.0
    %5114 = vmatprep.subr.mxu0 0.0
    %5115 = vmatpush1.msra.mxu0 0.0
    %5116 = vmatprep.subr.mxu0 0.0
    %5117 = vmatpush1.msra.mxu0 0.0
    %5118 = vmatprep.subr.mxu0 0.0
    %5119 = vmatpush1.msra.mxu0 0.0
    %5120 = vmatprep.subr.mxu0 0.0
    %5121 = vmatpush1.msra.mxu0 0.0
    %5122 = vmatprep.mubr.f32.mxu0 0.0
    %5123 = vmatmul.mubr.f32.gmra.mrb[0].mxu0 %v1290
    %v5124 = vpop.f32.mrb[0].mxu0
    %v5125 = vadd.f32 %v5056, %v5124
    %v5126 = vpop.f32.mrb[0].mxu0
    %5127 = vmatprep.mubr.f32.mxu0 0.0
    %5128 = vmatmul.mubr.f32.gmra.mrb[0].mxu0 %v1293
    %v5129 = vpop.f32.mrb[0].mxu0
    %v5130 = vpop.f32.mrb[0].mxu0
    %5131 = vdwg.mxu0
    %v5132 = vadd.f32 %v5125, %v4957
    %v5133 = vsel %vm2571, %v5132, 0.0
    %5134 = vadd.xlane.f32.xlu0 %v5133
    %v5135 = vpop.xlane.xlu0 %5134
    %v5136 = vmul.f32 %v5135, %v2575
    %v5137 = vsub.f32 %v5132, %v5136
    %v5138 = vmul.f32 %v5137, %v5137
    %v5139 = vsel %vm2571, %v5138, 0.0
    %5140 = vadd.xlane.f32.xlu0 %v5139
    %v5141 = vpop.xlane.xlu0 %5140
    %v5142 = vmul.f32 %v5141, %v2575
    %v5143 = vadd.f32 %v5142, 1e-12
    %v5144 = vrsqrt.pop %v5143
    %v5145 = vmul.f32 %v5137, %v5144
    %v5146 = vmul.f32 %v5145, %v68
    %v5147 = vadd.f32 %v5146, %v69
    %v5149 = vsel %vm170, %v5147, 0
    %5151 = vmatprep.subr.mxu0 0.0
    %5152 = vmatpush1.msra.mxu0 %v70
    %5153 = vmatprep.subr.mxu0 0.0
    %5154 = vmatpush1.msra.mxu0 %v71
    %5155 = vmatprep.subr.mxu0 0.0
    %5156 = vmatpush1.msra.mxu0 %v72
    %5157 = vmatprep.subr.mxu0 0.0
    %5158 = vmatpush1.msra.mxu0 %v73
    %5159 = vmatprep.subr.mxu0 0.0
    %5160 = vmatpush1.msra.mxu0 0.0
    %5161 = vmatprep.subr.mxu0 0.0
    %5162 = vmatpush1.msra.mxu0 0.0
    %5163 = vmatprep.subr.mxu0 0.0
    %5164 = vmatpush1.msra.mxu0 0.0
    %5165 = vmatprep.subr.mxu0 0.0
    %5166 = vmatpush1.msra.mxu0 0.0
    %5167 = vmatprep.subr.mxu0 0.0
    %5168 = vmatpush1.msra.mxu0 0.0
    %5169 = vmatprep.subr.mxu0 0.0
    %5170 = vmatpush1.msra.mxu0 0.0
    %5171 = vmatprep.subr.mxu0 0.0
    %5172 = vmatpush1.msra.mxu0 0.0
    %5173 = vmatprep.subr.mxu0 0.0
    %5174 = vmatpush1.msra.mxu0 0.0
    %5175 = vmatprep.subr.mxu0 0.0
    %5176 = vmatpush1.msra.mxu0 0.0
    %5177 = vmatprep.subr.mxu0 0.0
    %5178 = vmatpush1.msra.mxu0 0.0
    %5179 = vmatprep.subr.mxu0 0.0
    %5180 = vmatpush1.msra.mxu0 0.0
    %5181 = vmatprep.subr.mxu0 0.0
    %5182 = vmatpush1.msra.mxu0 0.0
    %5183 = vmatprep.subr.mxu0 0.0
    %5184 = vmatpush1.msra.mxu0 0.0
    %5185 = vmatprep.subr.mxu0 0.0
    %5186 = vmatpush1.msra.mxu0 0.0
    %5187 = vmatprep.subr.mxu0 0.0
    %5188 = vmatpush1.msra.mxu0 0.0
    %5189 = vmatprep.subr.mxu0 0.0
    %5190 = vmatpush1.msra.mxu0 0.0
    %5191 = vmatprep.subr.mxu0 0.0
    %5192 = vmatpush1.msra.mxu0 0.0
    %5193 = vmatprep.subr.mxu0 0.0
    %5194 = vmatpush1.msra.mxu0 0.0
    %5195 = vmatprep.subr.mxu0 0.0
    %5196 = vmatpush1.msra.mxu0 0.0
    %5197 = vmatprep.subr.mxu0 0.0
    %5198 = vmatpush1.msra.mxu0 0.0
    %5199 = vmatprep.subr.mxu0 0.0
    %5200 = vmatpush1.msra.mxu0 0.0
    %5201 = vmatprep.subr.mxu0 0.0
    %5202 = vmatpush1.msra.mxu0 0.0
    %5203 = vmatprep.subr.mxu0 0.0
    %5204 = vmatpush1.msra.mxu0 0.0
    %5205 = vmatprep.subr.mxu0 0.0
    %5206 = vmatpush1.msra.mxu0 0.0
    %5207 = vmatprep.subr.mxu0 0.0
    %5208 = vmatpush1.msra.mxu0 0.0
    %5209 = vmatprep.subr.mxu0 0.0
    %5210 = vmatpush1.msra.mxu0 0.0
    %5211 = vmatprep.subr.mxu0 0.0
    %5212 = vmatpush1.msra.mxu0 0.0
    %5213 = vmatprep.subr.mxu0 0.0
    %5214 = vmatpush1.msra.mxu0 0.0
    %5215 = vmatprep.mubr.f32.mxu0 0.0
    %5216 = vmatmul.mubr.f32.gmra.mrb[0].mxu0 %v5149
    %v5217 = vpop.f32.mrb[0].mxu0
    %v5218 = vadd.f32 %v74, %v5217
    %v5219 = vpop.f32.mrb[0].mxu0
    %5220 = vdwg.mxu0
    %5221 = vst.msk [vmem:[#allocation2 + $0x1] sm:$0x1] %vm2661, %v5218
    // Predicated region
    $region66: #{ast_lora_freq_forward.1} parent=1 // pred_check
      _
    $region67: #{ast_lora_freq_forward.1} parent=1 // pred_check_branch
      %5223 = sbr.rel (0) target = $region69
    $region68: #{ast_lora_freq_forward.1} parent=1 // pred_region
      %s5225 = ssub.s32 32, 32
      %5226 = vsyncadd [#allocation3], %s5225
      %s5228 = sshll.u32 [#allocation2], 4
      %s5229 = int_to_ptr.vmem [resolvable:$true] %s5228
      %5231 = dma.vmem_to_hbm [thread:$0]  %s5229, 32, %s16, [#allocation3]
    $region69: #{ast_lora_freq_forward.1} parent=1 // pred_fallthru
      _
    // Predicated region
    $region70: #{ast_lora_freq_forward.1} parent=1 // pred_check
      _
    $region71: #{ast_lora_freq_forward.1} parent=1 // pred_check_branch
      %5233 = sbr.rel (0) target = $region73
    $region72: #{ast_lora_freq_forward.1} parent=1 // pred_region
      %5234 = dma.done [#allocation3], 32
    $region73: #{ast_lora_freq_forward.1} parent=1 // pred_fallthru
      _
    %5235 = vsyncpa [#allocation3], 1

</llo_original>
